<compile_context>
chip_gen: v7x
topology: tpu7x:2x2x1
jax: 0.10.0
libtpu: 0.0.40
codegen_flags: <defaults>
</compile_context>

<pallas_src>
import numpy as np
import jax
import jax.numpy as jnp
from jax.experimental import pallas as pl
from jax.experimental.pallas import tpu as pltpu

_VMEM = pl.BlockSpec(memory_space=pltpu.MemorySpace.VMEM)
LANES = 128


def _round_up(x, m):
    return ((x + m - 1) // m) * m


# -----------------------------------------------------------------------------
# Fused Pallas kernel: GAT layer 0 (concat=True, ELU, bias) ->
#                      GAT layer 1 (concat=False)            -> linear_last
# -----------------------------------------------------------------------------

def make_fused_eresgat_kernel(n, e, hf, n_pad, e_pad, c):
    """Returns the fused two-layer EResGAT kernel specialized to static sizes."""
    f32 = jnp.float32
    bf16 = jnp.bfloat16
    # Plain Python floats only: jnp scalar closures would be captured constants
    # and reject at pallas trace time.
    NEG_BIG = -1e30
    POS_BIG = 1e30

    def kernel(x_ref, w0_ref, a0_ref, b0_ref,
               w1_ref, a1_ref, wl_ref, bl_ref,
               sidx_ref, tidx_ref, tidx_row_ref,
               final_ref, outn_ref):
        # ---- graph-structure selection matrices built in-kernel from int32
        # ---- edge-index vectors (0/1 values are exact in bf16).  The scatter
        # ---- matrix is built directly in transposed orientation.
        node_ids_e = jax.lax.broadcasted_iota(jnp.int32, (e_pad, n_pad), 1)
        src_oh = jnp.where(sidx_ref[...] == node_ids_e, 1.0, 0.0).astype(bf16)   # (E,N)
        trg_oh = jnp.where(tidx_ref[...] == node_ids_e, 1.0, 0.0).astype(bf16)   # (E,N)
        node_ids_n = jax.lax.broadcasted_iota(jnp.int32, (n_pad, e_pad), 0)
        trg_oh_t = jnp.where(tidx_row_ref[...] == node_ids_n, 1.0, 0.0).astype(bf16)  # (N,E)

        # validity mask: real edges and real head/feature columns only
        row_ids = jax.lax.broadcasted_iota(jnp.int32, (e_pad, c), 0)
        col_ids = jax.lax.broadcasted_iota(jnp.int32, (e_pad, c), 1)
        valid = (row_ids < e) & (col_ids < hf)

        def gat_layer(x, w_ref, a_ref):
            xb = x.astype(bf16)
            proj = jnp.dot(xb, w_ref[...].astype(bf16),
                           preferred_element_type=f32)                       # (N, C)
            projb = proj.astype(bf16)

            # per-head [src | trg] scores in ONE 256-wide matmul; scores are
            # replicated across each head's feature lanes -> no expand matmul.
            scores = jnp.dot(projb, a_ref[...].astype(bf16),
                             preferred_element_type=f32)                     # (N, 2C)
            scoresb = scores.astype(bf16)

            # gather by src: [lifted src score | lifted projected features]
            # as one 256-wide matmul; gather of trg scores separately.
            g_src = jnp.dot(src_oh,
                            jnp.concatenate([scoresb[:, :c], projb], axis=1),
                            preferred_element_type=f32)                      # (E, 2C)
            s_trg_lift = jnp.dot(trg_oh, scoresb[:, c:],
                                 preferred_element_type=f32)                 # (E, C)
            proj_lift = g_src[:, c:]                                          # (E, C)
            e_sc = g_src[:, :c] + s_trg_lift
            e_sc = jnp.where(e_sc > 0.0, e_sc, 0.2 * e_sc)                    # LeakyReLU(0.2)

            # global max/min normalization (as in the PyTorch module), masked so
            # padded edges / padded head columns never participate.  The
            # neg-masked copy feeds both the max AND the exp, so padded entries
            # become exp(huge negative) == 0 exactly.
            e_masked = jnp.where(valid, e_sc, NEG_BIG)
            emax = jnp.max(e_masked)
            emin = jnp.min(jnp.where(valid, e_sc, POS_BIG))
            rng = jnp.maximum(emax - emin, 1e-12)                              # degenerate guard
            exp_e = jnp.exp(3.0 * (e_masked - emax) / rng)                     # (E, C) f32

            # attention weighting + neighborhood-aware softmax.  The denominator
            # is constant per target node, so dividing after the scatter-add is
            # algebraically identical to the per-edge division in the reference
            # (dropout is identity) and drops a whole (E,N) gather matmul.
            weighted = exp_e * proj_lift                                       # (E, C) f32
            node_sums = jnp.dot(
                trg_oh_t,
                jnp.concatenate([exp_e, weighted], axis=1).astype(bf16),
                preferred_element_type=f32)                                    # (N, 2C)
            denom_nodes = node_sums[:, :c]
            numer_nodes = node_sums[:, c:]
            # dropout(attn): identity in inference mode.
            # TODO(synk): training-mode dropout on attention coefficients is not
            # implemented (inference semantics only).
            return numer_nodes * pl.reciprocal(denom_nodes + 1e-16, approx=True)  # (N, C)

        # ---- layer 0: concat=True, + bias, ELU
        out0 = gat_layer(x_ref[...], w0_ref, a0_ref) + b0_ref[...]
        out0 = jnp.where(out0 > 0.0, out0, jnp.exp(out0) - 1.0)               # ELU

        # ---- layer 1: concat=False (no bias, no activation) -> linear_last
        out1 = gat_layer(out0, w1_ref, a1_ref)
        outn_ref[...] = out1
        final_ref[...] = (jnp.dot(out1.astype(bf16), wl_ref[...].astype(bf16),
                                  preferred_element_type=f32) + bl_ref[...])

    return kernel


def run_eresgat_fused(x, w0, a0, b0, w1, a1, wl, bl,
                      src_idx, trg_idx, trg_idx_row, *, n, e, hf):
    n_pad, c = x.shape
    e_pad = src_idx.shape[0]
    kernel = make_fused_eresgat_kernel(n, e, hf, n_pad, e_pad, c)
    # TODO(synk): for graphs whose (E_pad x N_pad) selection matrices approach
    # the VMEM budget (~2x earlier on v7x's 64 MiB), tile the edge axis with a
    # grid ('arbitrary' edge-tile axis, VMEM node accumulators) and add a
    # 'parallel' node-row axis so v7x's second TensorCore is used; for very
    # large graphs switch to scalar-prefetch index-driven gathers / segment sums
    # instead of the dense one-hot MXU formulation.
    return pl.pallas_call(
        kernel,
        out_shape=(jax.ShapeDtypeStruct((n_pad, c), jnp.float32),   # final (lane-padded)
                   jax.ShapeDtypeStruct((n_pad, c), jnp.float32)),  # out_nodes (lane-padded)
        in_specs=[_VMEM] * 11,
        out_specs=(_VMEM, _VMEM),
        compiler_params=pltpu.CompilerParams(vmem_limit_bytes=48 * 1024 * 1024),
    )(x, w0, a0, b0, w1, a1, wl, bl, src_idx, trg_idx, trg_idx_row)


# -----------------------------------------------------------------------------
# Host-side glue: parameter setup, score-replication matrices, graph expansion
# -----------------------------------------------------------------------------

def make_rep_score_mat(a, c):
    """a: (H, F).  Returns (c, c) M with M[h*F:(h+1)*F, h*F+j] = a[h, :], so that
    (proj @ M)[:, h*F + j] == (proj.view(N,H,F) * a).sum(-1)[:, h] for every j
    (i.e. the per-head score replicated across that head's F lanes)."""
    h, f = a.shape
    m = np.zeros((c, c), np.float32)
    for i in range(h):
        for j in range(f):
            m[i * f:(i + 1) * f, i * f + j] = a[i]
    return m


def pad2(a, rows, cols):
    out = np.zeros((rows, cols), np.float32)
    out[:a.shape[0], :a.shape[1]] = a
    return out


def xavier_uniform(key, shape, fan_in, fan_out):
    limit = float(np.sqrt(6.0 / (fan_in + fan_out)))
    return jax.random.uniform(key, shape, jnp.float32, -limit, limit)


def build_edge_index(adj, adj_lists, source_nodes_ids, target_nodes_ids,
                     seen_edges, edges_neigh):
    # Faithful copy of EResGAT.build_edge_index (pure Python, no Pallas equivalent).
    new_neigh = set()
    for edge in edges_neigh:
        nodes = adj[edge]
        for node in nodes:
            neigh = adj_lists.get(node)
            new_neigh = set() if new_neigh is None else new_neigh
            neigh = set() if neigh is None else neigh
            new_neigh = new_neigh.union(neigh)
            for edge_neigh in neigh:
                if (edge, edge_neigh) not in seen_edges and \
                   (edge_neigh, edge) not in seen_edges:
                    source_nodes_ids.append(edge)
                    target_nodes_ids.append(edge_neigh)
                    seen_edges.add((edge, edge_neigh))
    return source_nodes_ids, target_nodes_ids, seen_edges, new_neigh


if __name__ == "__main__":
    # ---------------- deterministic small problem ----------------
    # original graph: 6 nodes, 10 (undirected) edges; GAT runs on the line graph.
    adj = {0: (0, 1), 1: (1, 2), 2: (2, 3), 3: (3, 4), 4: (4, 5),
           5: (5, 0), 6: (0, 2), 7: (1, 3), 8: (2, 4), 9: (3, 5)}
    adj_lists = {}
    for eid, (u, v) in adj.items():
        adj_lists.setdefault(u, set()).add(eid)
        adj_lists.setdefault(v, set()).add(eid)
    edge_idx = [0, 3, 7]                     # seed edges (input to EResGAT.forward)

    key = jax.random.PRNGKey(0)
    keys = jax.random.split(key, 10)
    num_edges_total, f0 = 10, 8
    edge_feat = np.asarray(jax.random.normal(keys[0], (num_edges_total, f0),
                                             jnp.float32))

    # ---------------- EResGAT.forward graph expansion (host glue) ----------------
    source_nodes_ids, target_nodes_ids = [], []
    seen_edges = set()
    edges = set(edge_idx)
    edges_neigh = set(edge_idx)
    for _ in range(2):
        source_nodes_ids, target_nodes_ids, seen_edges, edges_neigh = \
            build_edge_index(adj, adj_lists, source_nodes_ids, target_nodes_ids,
                             seen_edges, edges_neigh)
        edges = edges.union(edges_neigh)

    in_nodes_features = edge_feat[list(edges)]                 # (N, F0)
    unique_map = {edge: idx for idx, edge in enumerate(edges)}
    src_ids = np.array([unique_map[i] for i in source_nodes_ids], np.int64)
    trg_ids = np.array([unique_map[i] for i in target_nodes_ids], np.int64)
    map_edge_idx = np.array([unique_map[i] for i in edge_idx], np.int64)

    N = in_nodes_features.shape[0]
    E = src_ids.shape[0]

    # ---------------- model config ----------------
    # EResGAT(num_of_layers=2, num_heads_per_layer=[2,2],
    #         num_features_per_layer=[8,8,8], residual=False,
    #         add_skip_connection=False, bias=True, dropout=0.2)
    H, F_out = 2, 8
    HF = H * F_out
    C = LANES                                 # lane-padded feature width (128)
    N_pad = _round_up(max(N, 8), LANES)
    E_pad = _round_up(max(E, 8), LANES)

    # int32 edge-index tables (padded entries point at an unused padded node)
    src_idx = np.full((E_pad, 1), N, np.int32)
    trg_idx = np.full((E_pad, 1), N, np.int32)
    src_idx[:E, 0] = src_ids
    trg_idx[:E, 0] = trg_ids
    trg_idx_row = np.ascontiguousarray(trg_idx.reshape(1, E_pad))

    x_pad = np.zeros((N_pad, C), np.float32)
    x_pad[:N, :f0] = in_nodes_features

    # ---------------- parameters (Glorot-style, matching the PyTorch init) ----------------
    # layer 0: in=8, out=8, heads=2, concat=True, ELU, bias (zeros)
    w0 = np.asarray(xavier_uniform(keys[1], (f0, HF), f0, HF))
    a_src0 = np.asarray(xavier_uniform(keys[2], (H, F_out), H * F_out, F_out))
    a_trg0 = np.asarray(xavier_uniform(keys[3], (H, F_out), H * F_out, F_out))
    # layer 1: in=16, out=8, heads=2, concat=False, no activation, linear_last->10
    w1 = np.asarray(xavier_uniform(keys[4], (HF, HF), HF, HF))
    a_src1 = np.asarray(xavier_uniform(keys[5], (H, F_out), H * F_out, F_out))
    a_trg1 = np.asarray(xavier_uniform(keys[6], (H, F_out), H * F_out, F_out))
    bound = 1.0 / np.sqrt(HF)
    w_last = np.asarray(jax.random.uniform(keys[7], (HF, 10), jnp.float32, -bound, bound))
    b_last = np.asarray(jax.random.uniform(keys[8], (1, 10), jnp.float32, -bound, bound))

    # [a_src | a_trg] replicated-score matrices concatenated host-side -> one
    # 256-wide RHS per layer for the score matmul.
    a0_cat = np.concatenate([make_rep_score_mat(a_src0, C),
                             make_rep_score_mat(a_trg0, C)], axis=1)   # (C, 2C)
    a1_cat = np.concatenate([make_rep_score_mat(a_src1, C),
                             make_rep_score_mat(a_trg1, C)], axis=1)   # (C, 2C)

    args = dict(
        x=jnp.asarray(x_pad),
        w0=jnp.asarray(pad2(w0, C, C)),
        a0=jnp.asarray(a0_cat),
        b0=jnp.zeros((1, C), jnp.float32),               # GATLayer bias init: zeros
        w1=jnp.asarray(pad2(w1, C, C)),
        a1=jnp.asarray(a1_cat),
        wl=jnp.asarray(pad2(w_last, C, C)),
        bl=jnp.asarray(pad2(b_last, 1, C)),
        src_idx=jnp.asarray(src_idx),
        trg_idx=jnp.asarray(trg_idx),
        trg_idx_row=jnp.asarray(trg_idx_row),
    )

    # ---------------- fused kernel: layer0 (concat) -> layer1 -> linear_last ----------------
    final_pad, outn_pad = run_eresgat_fused(**args, n=N, e=E, hf=HF)

    identity_features = jnp.asarray(in_nodes_features)
    final_features = final_pad[:N, :10]          # (N, 10)
    out_nodes_features = outn_pad[:N, :HF]       # (N, 16)

    # module return: ((identity, final, edge_index, map_edge_idx), out_nodes_features)
    result = ((identity_features, final_features,
               jnp.asarray(np.stack([src_ids, trg_ids])), jnp.asarray(map_edge_idx)),
              out_nodes_features)
    jax.block_until_ready((final_features, out_nodes_features))

    assert final_features.shape == (N, 10)
    assert out_nodes_features.shape == (N, HF)
    assert bool(jnp.all(jnp.isfinite(final_features)))
    assert bool(jnp.all(jnp.isfinite(out_nodes_features)))
    print("KERNEL_OK")
</pallas_src>

<mosaic_0001>
module attributes {stable_mosaic.version = 11 : i64} {
  func.func @kernel(%arg0: memref<128x128xf32, #tpu.memory_space<vmem>>, %arg1: memref<128x128xf32, #tpu.memory_space<vmem>>, %arg2: memref<128x256xf32, #tpu.memory_space<vmem>>, %arg3: memref<1x128xf32, #tpu.memory_space<vmem>>, %arg4: memref<128x128xf32, #tpu.memory_space<vmem>>, %arg5: memref<128x256xf32, #tpu.memory_space<vmem>>, %arg6: memref<128x128xf32, #tpu.memory_space<vmem>>, %arg7: memref<1x128xf32, #tpu.memory_space<vmem>>, %arg8: memref<128x1xi32, #tpu.memory_space<vmem>>, %arg9: memref<128x1xi32, #tpu.memory_space<vmem>>, %arg10: memref<1x128xi32, #tpu.memory_space<vmem>>, %arg11: memref<128x128xf32, #tpu.memory_space<vmem>>, %arg12: memref<128x128xf32, #tpu.memory_space<vmem>>) attributes {dimension_semantics = [], scalar_prefetch = 0 : i64, scratch_operands = 0 : i64, tpu.core_type = #tpu.core_type<tc>} {
    %0 = tpu.iota {dimensions = array<i32: 1>} : vector<128x128xi32>
    %c0 = arith.constant 0 : index
    %c0_0 = arith.constant 0 : index
    %1 = vector.load %arg8[%c0, %c0_0] : memref<128x1xi32, #tpu.memory_space<vmem>>, vector<128x1xi32>
    %2 = vector.broadcast %1 : vector<128x1xi32> to vector<128x128xi32>
    %3 = arith.cmpi eq, %2, %0 : vector<128x128xi32>
    %cst = arith.constant 1.000000e+00 : f32
    %cst_1 = arith.constant 0.000000e+00 : f32
    %4 = vector.broadcast %cst : f32 to vector<128x128xf32>
    %5 = vector.broadcast %cst_1 : f32 to vector<128x128xf32>
    %6 = arith.select %3, %4, %5 : vector<128x128xi1>, vector<128x128xf32>
    %7 = arith.truncf %6 : vector<128x128xf32> to vector<128x128xbf16>
    %c0_2 = arith.constant 0 : index
    %c0_3 = arith.constant 0 : index
    %8 = vector.load %arg9[%c0_2, %c0_3] : memref<128x1xi32, #tpu.memory_space<vmem>>, vector<128x1xi32>
    %9 = vector.broadcast %8 : vector<128x1xi32> to vector<128x128xi32>
    %10 = arith.cmpi eq, %9, %0 : vector<128x128xi32>
    %cst_4 = arith.constant 1.000000e+00 : f32
    %cst_5 = arith.constant 0.000000e+00 : f32
    %11 = vector.broadcast %cst_4 : f32 to vector<128x128xf32>
    %12 = vector.broadcast %cst_5 : f32 to vector<128x128xf32>
    %13 = arith.select %10, %11, %12 : vector<128x128xi1>, vector<128x128xf32>
    %14 = arith.truncf %13 : vector<128x128xf32> to vector<128x128xbf16>
    %15 = tpu.iota {dimensions = array<i32: 0>} : vector<128x128xi32>
    %c0_6 = arith.constant 0 : index
    %c0_7 = arith.constant 0 : index
    %16 = vector.load %arg10[%c0_6, %c0_7] : memref<1x128xi32, #tpu.memory_space<vmem>>, vector<1x128xi32>
    %17 = vector.broadcast %16 : vector<1x128xi32> to vector<128x128xi32>
    %18 = arith.cmpi eq, %17, %15 : vector<128x128xi32>
    %cst_8 = arith.constant 1.000000e+00 : f32
    %cst_9 = arith.constant 0.000000e+00 : f32
    %19 = vector.broadcast %cst_8 : f32 to vector<128x128xf32>
    %20 = vector.broadcast %cst_9 : f32 to vector<128x128xf32>
    %21 = arith.select %18, %19, %20 : vector<128x128xi1>, vector<128x128xf32>
    %22 = arith.truncf %21 : vector<128x128xf32> to vector<128x128xbf16>
    %23 = tpu.iota {dimensions = array<i32: 0>} : vector<128x128xi32>
    %24 = tpu.iota {dimensions = array<i32: 1>} : vector<128x128xi32>
    %c34_i32 = arith.constant 34 : i32
    %25 = vector.broadcast %c34_i32 : i32 to vector<128x128xi32>
    %26 = arith.cmpi slt, %23, %25 : vector<128x128xi32>
    %c16_i32 = arith.constant 16 : i32
    %27 = vector.broadcast %c16_i32 : i32 to vector<128x128xi32>
    %28 = arith.cmpi slt, %24, %27 : vector<128x128xi32>
    %29 = arith.andi %26, %28 : vector<128x128xi1>
    %c0_10 = arith.constant 0 : index
    %c0_11 = arith.constant 0 : index
    %30 = vector.load %arg0[%c0_10, %c0_11] : memref<128x128xf32, #tpu.memory_space<vmem>>, vector<128x128xf32>
    %31 = arith.truncf %30 : vector<128x128xf32> to vector<128x128xbf16>
    %c0_12 = arith.constant 0 : index
    %c0_13 = arith.constant 0 : index
    %32 = vector.load %arg1[%c0_12, %c0_13] : memref<128x128xf32, #tpu.memory_space<vmem>>, vector<128x128xf32>
    %33 = arith.truncf %32 : vector<128x128xf32> to vector<128x128xbf16>
    %cst_14 = arith.constant dense<0.000000e+00> : vector<128x128xf32>
    %34 = tpu.matmul %31, %33, %cst_14 {dimension_numbers = #tpu.dot_dimension_numbers<[1], [0], [0], [1], [0, 0, 1, 1], [], []>} : vector<128x128xbf16>, vector<128x128xbf16>, vector<128x128xf32> -> vector<128x128xf32>
    %35 = arith.truncf %34 : vector<128x128xf32> to vector<128x128xbf16>
    %c0_15 = arith.constant 0 : index
    %c0_16 = arith.constant 0 : index
    %36 = vector.load %arg2[%c0_15, %c0_16] : memref<128x256xf32, #tpu.memory_space<vmem>>, vector<128x256xf32>
    %37 = arith.truncf %36 : vector<128x256xf32> to vector<128x256xbf16>
    %cst_17 = arith.constant dense<0.000000e+00> : vector<128x256xf32>
    %38 = tpu.matmul %35, %37, %cst_17 {dimension_numbers = #tpu.dot_dimension_numbers<[1], [0], [0], [1], [0, 0, 1, 1], [], []>} : vector<128x128xbf16>, vector<128x256xbf16>, vector<128x256xf32> -> vector<128x256xf32>
    %39 = arith.truncf %38 : vector<128x256xf32> to vector<128x256xbf16>
    %40 = vector.extract_strided_slice %39 {offsets = [0, 0], sizes = [128, 128], strides = [1, 1]} : vector<128x256xbf16> to vector<128x128xbf16>
    %41 = tpu.concatenate %40, %35 in 1 : vector<128x128xbf16>, vector<128x128xbf16> -> vector<128x256xbf16>
    %cst_18 = arith.constant dense<0.000000e+00> : vector<128x256xf32>
    %42 = tpu.matmul %7, %41, %cst_18 {dimension_numbers = #tpu.dot_dimension_numbers<[1], [0], [0], [1], [0, 0, 1, 1], [], []>} : vector<128x128xbf16>, vector<128x256xbf16>, vector<128x256xf32> -> vector<128x256xf32>
    %43 = vector.extract_strided_slice %39 {offsets = [0, 128], sizes = [128, 128], strides = [1, 1]} : vector<128x256xbf16> to vector<128x128xbf16>
    %cst_19 = arith.constant dense<0.000000e+00> : vector<128x128xf32>
    %44 = tpu.matmul %14, %43, %cst_19 {dimension_numbers = #tpu.dot_dimension_numbers<[1], [0], [0], [1], [0, 0, 1, 1], [], []>} : vector<128x128xbf16>, vector<128x128xbf16>, vector<128x128xf32> -> vector<128x128xf32>
    %45 = vector.extract_strided_slice %42 {offsets = [0, 128], sizes = [128, 128], strides = [1, 1]} : vector<128x256xf32> to vector<128x128xf32>
    %46 = vector.extract_strided_slice %42 {offsets = [0, 0], sizes = [128, 128], strides = [1, 1]} : vector<128x256xf32> to vector<128x128xf32>
    %47 = arith.addf %46, %44 : vector<128x128xf32>
    %cst_20 = arith.constant 0.000000e+00 : f32
    %48 = vector.broadcast %cst_20 : f32 to vector<128x128xf32>
    %49 = arith.cmpf ogt, %47, %48 : vector<128x128xf32>
    %cst_21 = arith.constant 2.000000e-01 : f32
    %50 = vector.broadcast %cst_21 : f32 to vector<128x128xf32>
    %51 = arith.mulf %50, %47 : vector<128x128xf32>
    %52 = arith.select %49, %47, %51 : vector<128x128xi1>, vector<128x128xf32>
    %cst_22 = arith.constant -1.000000e+30 : f32
    %53 = vector.broadcast %cst_22 : f32 to vector<128x128xf32>
    %54 = arith.select %29, %52, %53 : vector<128x128xi1>, vector<128x128xf32>
    %55 = vector.shape_cast %54 : vector<128x128xf32> to vector<1x128x128xf32>
    %cst_23 = arith.constant dense<0xFF800000> : vector<1xf32>
    %56 = vector.multi_reduction <maximumf>, %55, %cst_23 [1, 2] : vector<1x128x128xf32> to vector<1xf32>
    %57 = vector.shape_cast %56 : vector<1xf32> to vector<1x1x1xf32>
    %58 = vector.extract %57[0, 0, 0] : f32 from vector<1x1x1xf32>
    %cst_24 = arith.constant 1.000000e+30 : f32
    %59 = vector.broadcast %cst_24 : f32 to vector<128x128xf32>
    %60 = arith.select %29, %52, %59 : vector<128x128xi1>, vector<128x128xf32>
    %61 = vector.shape_cast %60 : vector<128x128xf32> to vector<1x128x128xf32>
    %cst_25 = arith.constant dense<0x7F800000> : vector<1xf32>
    %62 = vector.multi_reduction <minimumf>, %61, %cst_25 [1, 2] : vector<1x128x128xf32> to vector<1xf32>
    %63 = vector.shape_cast %62 : vector<1xf32> to vector<1x1x1xf32>
    %64 = vector.extract %63[0, 0, 0] : f32 from vector<1x1x1xf32>
    %65 = arith.subf %58, %64 : f32
    %cst_26 = arith.constant 9.99999996E-13 : f32
    %66 = arith.maximumf %65, %cst_26 : f32
    %67 = vector.broadcast %58 : f32 to vector<128x128xf32>
    %68 = arith.subf %54, %67 : vector<128x128xf32>
    %cst_27 = arith.constant 3.000000e+00 : f32
    %69 = vector.broadcast %cst_27 : f32 to vector<128x128xf32>
    %70 = arith.mulf %69, %68 : vector<128x128xf32>
    %71 = vector.broadcast %66 : f32 to vector<128x128xf32>
    %72 = arith.divf %70, %71 : vector<128x128xf32>
    %73 = math.exp %72 : vector<128x128xf32>
    %74 = arith.mulf %73, %45 : vector<128x128xf32>
    %75 = tpu.concatenate %73, %74 in 1 : vector<128x128xf32>, vector<128x128xf32> -> vector<128x256xf32>
    %76 = arith.truncf %75 : vector<128x256xf32> to vector<128x256xbf16>
    %cst_28 = arith.constant dense<0.000000e+00> : vector<128x256xf32>
    %77 = tpu.matmul %22, %76, %cst_28 {dimension_numbers = #tpu.dot_dimension_numbers<[1], [0], [0], [1], [0, 0, 1, 1], [], []>} : vector<128x128xbf16>, vector<128x256xbf16>, vector<128x256xf32> -> vector<128x256xf32>
    %78 = vector.extract_strided_slice %77 {offsets = [0, 0], sizes = [128, 128], strides = [1, 1]} : vector<128x256xf32> to vector<128x128xf32>
    %79 = vector.extract_strided_slice %77 {offsets = [0, 128], sizes = [128, 128], strides = [1, 1]} : vector<128x256xf32> to vector<128x128xf32>
    %cst_29 = arith.constant 1.000000e-16 : f32
    %80 = vector.broadcast %cst_29 : f32 to vector<128x128xf32>
    %81 = arith.addf %78, %80 : vector<128x128xf32>
    %82 = tpu.reciprocal %81 {approx = true} : vector<128x128xf32> -> vector<128x128xf32>
    %83 = arith.mulf %79, %82 : vector<128x128xf32>
    %c0_30 = arith.constant 0 : index
    %c0_31 = arith.constant 0 : index
    %84 = vector.load %arg3[%c0_30, %c0_31] : memref<1x128xf32, #tpu.memory_space<vmem>>, vector<1x128xf32>
    %85 = vector.broadcast %84 : vector<1x128xf32> to vector<128x128xf32>
    %86 = arith.addf %83, %85 : vector<128x128xf32>
    %cst_32 = arith.constant 0.000000e+00 : f32
    %87 = vector.broadcast %cst_32 : f32 to vector<128x128xf32>
    %88 = arith.cmpf ogt, %86, %87 : vector<128x128xf32>
    %89 = math.exp %86 : vector<128x128xf32>
    %cst_33 = arith.constant 1.000000e+00 : f32
    %90 = vector.broadcast %cst_33 : f32 to vector<128x128xf32>
    %91 = arith.subf %89, %90 : vector<128x128xf32>
    %92 = arith.select %88, %86, %91 : vector<128x128xi1>, vector<128x128xf32>
    %93 = arith.truncf %92 : vector<128x128xf32> to vector<128x128xbf16>
    %c0_34 = arith.constant 0 : index
    %c0_35 = arith.constant 0 : index
    %94 = vector.load %arg4[%c0_34, %c0_35] : memref<128x128xf32, #tpu.memory_space<vmem>>, vector<128x128xf32>
    %95 = arith.truncf %94 : vector<128x128xf32> to vector<128x128xbf16>
    %cst_36 = arith.constant dense<0.000000e+00> : vector<128x128xf32>
    %96 = tpu.matmul %93, %95, %cst_36 {dimension_numbers = #tpu.dot_dimension_numbers<[1], [0], [0], [1], [0, 0, 1, 1], [], []>} : vector<128x128xbf16>, vector<128x128xbf16>, vector<128x128xf32> -> vector<128x128xf32>
    %97 = arith.truncf %96 : vector<128x128xf32> to vector<128x128xbf16>
    %c0_37 = arith.constant 0 : index
    %c0_38 = arith.constant 0 : index
    %98 = vector.load %arg5[%c0_37, %c0_38] : memref<128x256xf32, #tpu.memory_space<vmem>>, vector<128x256xf32>
    %99 = arith.truncf %98 : vector<128x256xf32> to vector<128x256xbf16>
    %cst_39 = arith.constant dense<0.000000e+00> : vector<128x256xf32>
    %100 = tpu.matmul %97, %99, %cst_39 {dimension_numbers = #tpu.dot_dimension_numbers<[1], [0], [0], [1], [0, 0, 1, 1], [], []>} : vector<128x128xbf16>, vector<128x256xbf16>, vector<128x256xf32> -> vector<128x256xf32>
    %101 = arith.truncf %100 : vector<128x256xf32> to vector<128x256xbf16>
    %102 = vector.extract_strided_slice %101 {offsets = [0, 0], sizes = [128, 128], strides = [1, 1]} : vector<128x256xbf16> to vector<128x128xbf16>
    %103 = tpu.concatenate %102, %97 in 1 : vector<128x128xbf16>, vector<128x128xbf16> -> vector<128x256xbf16>
    %cst_40 = arith.constant dense<0.000000e+00> : vector<128x256xf32>
    %104 = tpu.matmul %7, %103, %cst_40 {dimension_numbers = #tpu.dot_dimension_numbers<[1], [0], [0], [1], [0, 0, 1, 1], [], []>} : vector<128x128xbf16>, vector<128x256xbf16>, vector<128x256xf32> -> vector<128x256xf32>
    %105 = vector.extract_strided_slice %101 {offsets = [0, 128], sizes = [128, 128], strides = [1, 1]} : vector<128x256xbf16> to vector<128x128xbf16>
    %cst_41 = arith.constant dense<0.000000e+00> : vector<128x128xf32>
    %106 = tpu.matmul %14, %105, %cst_41 {dimension_numbers = #tpu.dot_dimension_numbers<[1], [0], [0], [1], [0, 0, 1, 1], [], []>} : vector<128x128xbf16>, vector<128x128xbf16>, vector<128x128xf32> -> vector<128x128xf32>
    %107 = vector.extract_strided_slice %104 {offsets = [0, 128], sizes = [128, 128], strides = [1, 1]} : vector<128x256xf32> to vector<128x128xf32>
    %108 = vector.extract_strided_slice %104 {offsets = [0, 0], sizes = [128, 128], strides = [1, 1]} : vector<128x256xf32> to vector<128x128xf32>
    %109 = arith.addf %108, %106 : vector<128x128xf32>
    %cst_42 = arith.constant 0.000000e+00 : f32
    %110 = vector.broadcast %cst_42 : f32 to vector<128x128xf32>
    %111 = arith.cmpf ogt, %109, %110 : vector<128x128xf32>
    %cst_43 = arith.constant 2.000000e-01 : f32
    %112 = vector.broadcast %cst_43 : f32 to vector<128x128xf32>
    %113 = arith.mulf %112, %109 : vector<128x128xf32>
    %114 = arith.select %111, %109, %113 : vector<128x128xi1>, vector<128x128xf32>
    %cst_44 = arith.constant -1.000000e+30 : f32
    %115 = vector.broadcast %cst_44 : f32 to vector<128x128xf32>
    %116 = arith.select %29, %114, %115 : vector<128x128xi1>, vector<128x128xf32>
    %117 = vector.shape_cast %116 : vector<128x128xf32> to vector<1x128x128xf32>
    %cst_45 = arith.constant dense<0xFF800000> : vector<1xf32>
    %118 = vector.multi_reduction <maximumf>, %117, %cst_45 [1, 2] : vector<1x128x128xf32> to vector<1xf32>
    %119 = vector.shape_cast %118 : vector<1xf32> to vector<1x1x1xf32>
    %120 = vector.extract %119[0, 0, 0] : f32 from vector<1x1x1xf32>
    %cst_46 = arith.constant 1.000000e+30 : f32
    %121 = vector.broadcast %cst_46 : f32 to vector<128x128xf32>
    %122 = arith.select %29, %114, %121 : vector<128x128xi1>, vector<128x128xf32>
    %123 = vector.shape_cast %122 : vector<128x128xf32> to vector<1x128x128xf32>
    %cst_47 = arith.constant dense<0x7F800000> : vector<1xf32>
    %124 = vector.multi_reduction <minimumf>, %123, %cst_47 [1, 2] : vector<1x128x128xf32> to vector<1xf32>
    %125 = vector.shape_cast %124 : vector<1xf32> to vector<1x1x1xf32>
    %126 = vector.extract %125[0, 0, 0] : f32 from vector<1x1x1xf32>
    %127 = arith.subf %120, %126 : f32
    %cst_48 = arith.constant 9.99999996E-13 : f32
    %128 = arith.maximumf %127, %cst_48 : f32
    %129 = vector.broadcast %120 : f32 to vector<128x128xf32>
    %130 = arith.subf %116, %129 : vector<128x128xf32>
    %cst_49 = arith.constant 3.000000e+00 : f32
    %131 = vector.broadcast %cst_49 : f32 to vector<128x128xf32>
    %132 = arith.mulf %131, %130 : vector<128x128xf32>
    %133 = vector.broadcast %128 : f32 to vector<128x128xf32>
    %134 = arith.divf %132, %133 : vector<128x128xf32>
    %135 = math.exp %134 : vector<128x128xf32>
    %136 = arith.mulf %135, %107 : vector<128x128xf32>
    %137 = tpu.concatenate %135, %136 in 1 : vector<128x128xf32>, vector<128x128xf32> -> vector<128x256xf32>
    %138 = arith.truncf %137 : vector<128x256xf32> to vector<128x256xbf16>
    %cst_50 = arith.constant dense<0.000000e+00> : vector<128x256xf32>
    %139 = tpu.matmul %22, %138, %cst_50 {dimension_numbers = #tpu.dot_dimension_numbers<[1], [0], [0], [1], [0, 0, 1, 1], [], []>} : vector<128x128xbf16>, vector<128x256xbf16>, vector<128x256xf32> -> vector<128x256xf32>
    %140 = vector.extract_strided_slice %139 {offsets = [0, 0], sizes = [128, 128], strides = [1, 1]} : vector<128x256xf32> to vector<128x128xf32>
    %141 = vector.extract_strided_slice %139 {offsets = [0, 128], sizes = [128, 128], strides = [1, 1]} : vector<128x256xf32> to vector<128x128xf32>
    %cst_51 = arith.constant 1.000000e-16 : f32
    %142 = vector.broadcast %cst_51 : f32 to vector<128x128xf32>
    %143 = arith.addf %140, %142 : vector<128x128xf32>
    %144 = tpu.reciprocal %143 {approx = true} : vector<128x128xf32> -> vector<128x128xf32>
    %145 = arith.mulf %141, %144 : vector<128x128xf32>
    %c0_52 = arith.constant 0 : index
    %c0_53 = arith.constant 0 : index
    %146 = vector.load %arg12[%c0_52, %c0_53] : memref<128x128xf32, #tpu.memory_space<vmem>>, vector<128x128xf32>
    tpu.vector_store %arg12[%c0_52, %c0_53], %145 {strides = array<i32>} : memref<128x128xf32, #tpu.memory_space<vmem>>, vector<128x128xf32>,
    %147 = arith.truncf %145 : vector<128x128xf32> to vector<128x128xbf16>
    %c0_54 = arith.constant 0 : index
    %c0_55 = arith.constant 0 : index
    %148 = vector.load %arg6[%c0_54, %c0_55] : memref<128x128xf32, #tpu.memory_space<vmem>>, vector<128x128xf32>
    %149 = arith.truncf %148 : vector<128x128xf32> to vector<128x128xbf16>
    %cst_56 = arith.constant dense<0.000000e+00> : vector<128x128xf32>
    %150 = tpu.matmul %147, %149, %cst_56 {dimension_numbers = #tpu.dot_dimension_numbers<[1], [0], [0], [1], [0, 0, 1, 1], [], []>} : vector<128x128xbf16>, vector<128x128xbf16>, vector<128x128xf32> -> vector<128x128xf32>
    %c0_57 = arith.constant 0 : index
    %c0_58 = arith.constant 0 : index
    %151 = vector.load %arg7[%c0_57, %c0_58] : memref<1x128xf32, #tpu.memory_space<vmem>>, vector<1x128xf32>
    %152 = vector.broadcast %151 : vector<1x128xf32> to vector<128x128xf32>
    %153 = arith.addf %150, %152 : vector<128x128xf32>
    %c0_59 = arith.constant 0 : index
    %c0_60 = arith.constant 0 : index
    %154 = vector.load %arg11[%c0_59, %c0_60] : memref<128x128xf32, #tpu.memory_space<vmem>>, vector<128x128xf32>
    tpu.vector_store %arg11[%c0_59, %c0_60], %153 {strides = array<i32>} : memref<128x128xf32, #tpu.memory_space<vmem>>, vector<128x128xf32>,
    return
  }
}

</mosaic_0001>

<llo_original>
// kernel: tpu_custom_call.1
$region0: #{tpu_custom_call.1}
  #allocation0 [shape = 'u32[]', space=smem, size = 0x4, offset = 0x4, fixed_abs, tag = 'smem constant byte address 0x4 - core index']
  #allocation1 [shape = 'u32[144,128]{1,0:T(1,128)}', space=vmem, size = 0x12000, scoped, tag = 'internal scratch']
  %s0 = inlined_call_operand.hbm [shape: f32[128,128], index: 0, kind: input, shape index: {}]
  %s1 = inlined_call_operand.hbm [shape: f32[128,128], index: 1, kind: input, shape index: {}]
  %s2 = inlined_call_operand.vmem [shape: f32[128,256], index: 2, kind: input, shape index: {}]
  %s3 = inlined_call_operand.vmem [shape: f32[1,128], index: 3, kind: input, shape index: {}]
  %s4 = inlined_call_operand.hbm [shape: f32[128,128], index: 4, kind: input, shape index: {}]
  %s5 = inlined_call_operand.hbm [shape: f32[128,256], index: 5, kind: input, shape index: {}]
  %s6 = inlined_call_operand.hbm [shape: f32[128,128], index: 6, kind: input, shape index: {}]
  %s7 = inlined_call_operand.vmem [shape: f32[1,128], index: 7, kind: input, shape index: {}]
  %s8 = inlined_call_operand.vmem [shape: s32[128,1], index: 8, kind: input, shape index: {}]
  %s9 = inlined_call_operand.vmem [shape: s32[128,1], index: 9, kind: input, shape index: {}]
  %s10 = inlined_call_operand.vmem [shape: s32[1,128], index: 10, kind: input, shape index: {}]
  %s11 = inlined_call_operand.hbm [shape: f32[128,128], index: 11, kind: output, shape index: {0}]
  %s12 = inlined_call_operand.hbm [shape: f32[128,128], index: 12, kind: output, shape index: {1}]
  %13 = xla_tuple %s11, %s12
  %s14 = sld [smem:[#allocation0]]
  $region82: #{tpu_custom_call.1} parent=0
    _
  %s16 = ssub.s32 1, %s14
  %s17 = scalar_select 0, %s16, %s14
  $region1: #{tpu_custom_call.1} parent=0
    #allocation2 [shape = 'u8[65536]{0}', space=vmem, size = 0x10000, scoped, tag = 'input window, operand 0, single buffered']
    #allocation3 [shape = 's32[1]{0}', space=sflag, size = 0x4, scoped, tag = 'scoped memory for tpu_custom_call.1']
    #allocation4 [shape = 's32[1]{0}', space=sflag, size = 0x4, scoped, tag = 'scoped memory for tpu_custom_call.1']
    #allocation5 [shape = 'u8[65536]{0}', space=vmem, size = 0x10000, scoped, tag = 'input window, operand 1, single buffered']
    #allocation6 [shape = 's32[1]{0}', space=sflag, size = 0x4, scoped, tag = 'scoped memory for tpu_custom_call.1']
    #allocation7 [shape = 'u8[65536]{0}', space=vmem, size = 0x10000, scoped, tag = 'input window, operand 4, single buffered']
    #allocation8 [shape = 'u8[131072]{0}', space=vmem, size = 0x20000, scoped, tag = 'input window, operand 5, single buffered']
    #allocation9 [shape = 's32[1]{0}', space=sflag, size = 0x4, scoped, tag = 'scoped memory for tpu_custom_call.1']
    #allocation10 [shape = 'u8[65536]{0}', space=vmem, size = 0x10000, scoped, tag = 'input window, operand 6, single buffered']
    #allocation11 [shape = 'u8[65536]{0}', space=vmem, size = 0x10000, scoped, tag = 'output window, operand 0, single buffered']
    #allocation12 [shape = 'u8[65536]{0}', space=vmem, size = 0x10000, scoped, tag = 'output window, operand 1, single buffered']
    #allocation13 [shape = 's32[1]{0}', space=sflag, size = 0x4, scoped, tag = 'scoped memory for tpu_custom_call.1']
    %18 = vsyncpa [#allocation3], 0
    %19 = vsyncpa [#allocation6], 0
    %20 = vsyncpa [#allocation9], 0
    %21 = vsyncpa [#allocation4], 0
    %22 = vsyncpa [#allocation13], 0
    // Predicated region
    $region2: #{tpu_custom_call.1} parent=1 // pred_check
      _
    $region3: #{tpu_custom_call.1} parent=1 // pred_check_branch
      %24 = sbr.rel (0) target = $region5
    $region4: #{tpu_custom_call.1} parent=1 // pred_region
      %s26 = ssub.s32 2048, 2048
      %27 = vsyncadd [#allocation3], %s26
      %s28 = sshll.u32 [#allocation2], 4
      %s29 = int_to_ptr.vmem [resolvable:$true] %s28
      %34 = dma.hbm_to_vmem [thread:$0]  %s0, 2048, %s29, [#allocation3], 128, 128, 8
    $region5: #{tpu_custom_call.1} parent=1 // pred_fallthru
      _
    // Predicated region
    $region6: #{tpu_custom_call.1} parent=1 // pred_check
      _
    $region7: #{tpu_custom_call.1} parent=1 // pred_check_branch
      %36 = sbr.rel (0) target = $region9
    $region8: #{tpu_custom_call.1} parent=1 // pred_region
      %s38 = ssub.s32 2048, 2048
      %39 = vsyncadd [#allocation6], %s38
      %s40 = sshll.u32 [#allocation5], 4
      %s41 = int_to_ptr.vmem [resolvable:$true] %s40
      %46 = dma.hbm_to_vmem [thread:$0]  %s1, 2048, %s41, [#allocation6], 128, 128, 8
    $region9: #{tpu_custom_call.1} parent=1 // pred_fallthru
      _
    // Predicated region
    $region10: #{tpu_custom_call.1} parent=1 // pred_check
      _
    $region11: #{tpu_custom_call.1} parent=1 // pred_check_branch
      %48 = sbr.rel (0) target = $region13
    $region12: #{tpu_custom_call.1} parent=1 // pred_region
      _
    $region13: #{tpu_custom_call.1} parent=1 // pred_fallthru
      _
    // Predicated region
    $region14: #{tpu_custom_call.1} parent=1 // pred_check
      _
    $region15: #{tpu_custom_call.1} parent=1 // pred_check_branch
      %50 = sbr.rel (0) target = $region17
    $region16: #{tpu_custom_call.1} parent=1 // pred_region
      _
    $region17: #{tpu_custom_call.1} parent=1 // pred_fallthru
      _
    // Predicated region
    $region18: #{tpu_custom_call.1} parent=1 // pred_check
      _
    $region19: #{tpu_custom_call.1} parent=1 // pred_check_branch
      %52 = sbr.rel (0) target = $region21
    $region20: #{tpu_custom_call.1} parent=1 // pred_region
      %s54 = ssub.s32 2048, 2048
      %55 = vsyncadd [#allocation6], %s54
      %s56 = sshll.u32 [#allocation7], 4
      %s57 = int_to_ptr.vmem [resolvable:$true] %s56
      %62 = dma.hbm_to_vmem [thread:$0]  %s4, 2048, %s57, [#allocation6], 128, 128, 8
    $region21: #{tpu_custom_call.1} parent=1 // pred_fallthru
      _
    // Predicated region
    $region22: #{tpu_custom_call.1} parent=1 // pred_check
      _
    $region23: #{tpu_custom_call.1} parent=1 // pred_check_branch
      %64 = sbr.rel (0) target = $region25
    $region24: #{tpu_custom_call.1} parent=1 // pred_region
      %s66 = ssub.s32 4096, 4096
      %67 = vsyncadd [#allocation9], %s66
      %s68 = sshll.u32 [#allocation8], 4
      %s69 = int_to_ptr.vmem [resolvable:$true] %s68
      %74 = dma.hbm_to_vmem [thread:$0]  %s5, 4096, %s69, [#allocation9], 256, 256, 16
    $region25: #{tpu_custom_call.1} parent=1 // pred_fallthru
      _
    // Predicated region
    $region26: #{tpu_custom_call.1} parent=1 // pred_check
      _
    $region27: #{tpu_custom_call.1} parent=1 // pred_check_branch
      %76 = sbr.rel (0) target = $region29
    $region28: #{tpu_custom_call.1} parent=1 // pred_region
      %s78 = ssub.s32 2048, 2048
      %79 = vsyncadd [#allocation9], %s78
      %s80 = sshll.u32 [#allocation10], 4
      %s81 = int_to_ptr.vmem [resolvable:$true] %s80
      %86 = dma.hbm_to_vmem [thread:$0]  %s6, 2048, %s81, [#allocation9], 128, 128, 8
    $region29: #{tpu_custom_call.1} parent=1 // pred_fallthru
      _
    // Predicated region
    $region30: #{tpu_custom_call.1} parent=1 // pred_check
      _
    $region31: #{tpu_custom_call.1} parent=1 // pred_check_branch
      %88 = sbr.rel (0) target = $region33
    $region32: #{tpu_custom_call.1} parent=1 // pred_region
      _
    $region33: #{tpu_custom_call.1} parent=1 // pred_fallthru
      _
    // Predicated region
    $region34: #{tpu_custom_call.1} parent=1 // pred_check
      _
    $region35: #{tpu_custom_call.1} parent=1 // pred_check_branch
      %90 = sbr.rel (0) target = $region37
    $region36: #{tpu_custom_call.1} parent=1 // pred_region
      _
    $region37: #{tpu_custom_call.1} parent=1 // pred_fallthru
      _
    // Predicated region
    $region38: #{tpu_custom_call.1} parent=1 // pred_check
      _
    $region39: #{tpu_custom_call.1} parent=1 // pred_check_branch
      %92 = sbr.rel (0) target = $region41
    $region40: #{tpu_custom_call.1} parent=1 // pred_region
      _
    $region41: #{tpu_custom_call.1} parent=1 // pred_fallthru
      _
    // Predicated region
    $region42: #{tpu_custom_call.1} parent=1 // pred_check
      _
    $region43: #{tpu_custom_call.1} parent=1 // pred_check_branch
      %94 = sbr.rel (0) target = $region45
    $region44: #{tpu_custom_call.1} parent=1 // pred_region
      _
    $region45: #{tpu_custom_call.1} parent=1 // pred_fallthru
      _
    // Predicated region
    $region46: #{tpu_custom_call.1} parent=1 // pred_check
      _
    $region47: #{tpu_custom_call.1} parent=1 // pred_check_branch
      %96 = sbr.rel (0) target = $region49
    $region48: #{tpu_custom_call.1} parent=1 // pred_region
      %97 = dma.done [#allocation3], 2048
    $region49: #{tpu_custom_call.1} parent=1 // pred_fallthru
      _
    // Predicated region
    $region50: #{tpu_custom_call.1} parent=1 // pred_check
      _
    $region51: #{tpu_custom_call.1} parent=1 // pred_check_branch
      %99 = sbr.rel (0) target = $region53
    $region52: #{tpu_custom_call.1} parent=1 // pred_region
      %100 = dma.done [#allocation6], 2048
    $region53: #{tpu_custom_call.1} parent=1 // pred_fallthru
      _
    // Predicated region
    $region54: #{tpu_custom_call.1} parent=1 // pred_check
      _
    $region55: #{tpu_custom_call.1} parent=1 // pred_check_branch
      %102 = sbr.rel (0) target = $region57
    $region56: #{tpu_custom_call.1} parent=1 // pred_region
      %103 = dma.done [#allocation6], 2048
    $region57: #{tpu_custom_call.1} parent=1 // pred_fallthru
      _
    // Predicated region
    $region58: #{tpu_custom_call.1} parent=1 // pred_check
      _
    $region59: #{tpu_custom_call.1} parent=1 // pred_check_branch
      %105 = sbr.rel (0) target = $region61
    $region60: #{tpu_custom_call.1} parent=1 // pred_region
      %106 = dma.done [#allocation9], 4096
    $region61: #{tpu_custom_call.1} parent=1 // pred_fallthru
      _
    // Predicated region
    $region62: #{tpu_custom_call.1} parent=1 // pred_check
      _
    $region63: #{tpu_custom_call.1} parent=1 // pred_check_branch
      %108 = sbr.rel (0) target = $region65
    $region64: #{tpu_custom_call.1} parent=1 // pred_region
      %109 = dma.done [#allocation9], 2048
    $region65: #{tpu_custom_call.1} parent=1 // pred_fallthru
      _
    %v111 = vlaneseq
    %v112 = vand.u32 %v111, 127
    %v113 = vld [vmem:[%s8] sm:$0xff]
    %v114 = vld [vmem:[%s8 + $0x8] sm:$0xff]
    %v115 = vld [vmem:[%s8 + $0x10] sm:$0xff]
    %v116 = vld [vmem:[%s8 + $0x18] sm:$0xff]
    %v117 = vld [vmem:[%s8 + $0x20] sm:$0xff]
    %v118 = vld [vmem:[%s8 + $0x28] sm:$0xff]
    %v119 = vld [vmem:[%s8 + $0x30] sm:$0xff]
    %v120 = vld [vmem:[%s8 + $0x38] sm:$0xff]
    %v121 = vld [vmem:[%s8 + $0x40] sm:$0xff]
    %v122 = vld [vmem:[%s8 + $0x48] sm:$0xff]
    %v123 = vld [vmem:[%s8 + $0x50] sm:$0xff]
    %v124 = vld [vmem:[%s8 + $0x58] sm:$0xff]
    %v125 = vld [vmem:[%s8 + $0x60] sm:$0xff]
    %v126 = vld [vmem:[%s8 + $0x68] sm:$0xff]
    %v127 = vld [vmem:[%s8 + $0x70] sm:$0xff]
    %v128 = vld [vmem:[%s8 + $0x78] sm:$0xff]
    %129 = vset.pattern.permute.xlu0 0
    %130 = vperm.xlu0 %129, %v113
    %v131 = vpop.permute.xlu0 %130
    %132 = vset.pattern.permute.xlu0 0
    %133 = vperm.xlu0 %132, %v114
    %v134 = vpop.permute.xlu0 %133
    %135 = vset.pattern.permute.xlu0 0
    %136 = vperm.xlu0 %135, %v115
    %v137 = vpop.permute.xlu0 %136
    %138 = vset.pattern.permute.xlu0 0
    %139 = vperm.xlu0 %138, %v116
    %v140 = vpop.permute.xlu0 %139
    %141 = vset.pattern.permute.xlu0 0
    %142 = vperm.xlu0 %141, %v117
    %v143 = vpop.permute.xlu0 %142
    %144 = vset.pattern.permute.xlu0 0
    %145 = vperm.xlu0 %144, %v118
    %v146 = vpop.permute.xlu0 %145
    %147 = vset.pattern.permute.xlu0 0
    %148 = vperm.xlu0 %147, %v119
    %v149 = vpop.permute.xlu0 %148
    %150 = vset.pattern.permute.xlu0 0
    %151 = vperm.xlu0 %150, %v120
    %v152 = vpop.permute.xlu0 %151
    %153 = vset.pattern.permute.xlu0 0
    %154 = vperm.xlu0 %153, %v121
    %v155 = vpop.permute.xlu0 %154
    %156 = vset.pattern.permute.xlu0 0
    %157 = vperm.xlu0 %156, %v122
    %v158 = vpop.permute.xlu0 %157
    %159 = vset.pattern.permute.xlu0 0
    %160 = vperm.xlu0 %159, %v123
    %v161 = vpop.permute.xlu0 %160
    %162 = vset.pattern.permute.xlu0 0
    %163 = vperm.xlu0 %162, %v124
    %v164 = vpop.permute.xlu0 %163
    %165 = vset.pattern.permute.xlu0 0
    %166 = vperm.xlu0 %165, %v125
    %v167 = vpop.permute.xlu0 %166
    %168 = vset.pattern.permute.xlu0 0
    %169 = vperm.xlu0 %168, %v126
    %v170 = vpop.permute.xlu0 %169
    %171 = vset.pattern.permute.xlu0 0
    %172 = vperm.xlu0 %171, %v127
    %v173 = vpop.permute.xlu0 %172
    %174 = vset.pattern.permute.xlu0 0
    %175 = vperm.xlu0 %174, %v128
    %v176 = vpop.permute.xlu0 %175
    %vm177 = vcmp.eq.s32.totalorder %v131, %v112
    %vm178 = vcmp.eq.s32.totalorder %v134, %v112
    %vm179 = vcmp.eq.s32.totalorder %v137, %v112
    %vm180 = vcmp.eq.s32.totalorder %v140, %v112
    %vm181 = vcmp.eq.s32.totalorder %v143, %v112
    %vm182 = vcmp.eq.s32.totalorder %v146, %v112
    %vm183 = vcmp.eq.s32.totalorder %v149, %v112
    %vm184 = vcmp.eq.s32.totalorder %v152, %v112
    %vm185 = vcmp.eq.s32.totalorder %v155, %v112
    %vm186 = vcmp.eq.s32.totalorder %v158, %v112
    %vm187 = vcmp.eq.s32.totalorder %v161, %v112
    %vm188 = vcmp.eq.s32.totalorder %v164, %v112
    %vm189 = vcmp.eq.s32.totalorder %v167, %v112
    %vm190 = vcmp.eq.s32.totalorder %v170, %v112
    %vm191 = vcmp.eq.s32.totalorder %v173, %v112
    %vm192 = vcmp.eq.s32.totalorder %v176, %v112
    %v193 = vsel %vm177, 1.0, 0.0
    %v194 = vsel %vm178, 1.0, 0.0
    %v195 = vsel %vm179, 1.0, 0.0
    %v196 = vsel %vm180, 1.0, 0.0
    %v197 = vsel %vm181, 1.0, 0.0
    %v198 = vsel %vm182, 1.0, 0.0
    %v199 = vsel %vm183, 1.0, 0.0
    %v200 = vsel %vm184, 1.0, 0.0
    %v201 = vsel %vm185, 1.0, 0.0
    %v202 = vsel %vm186, 1.0, 0.0
    %v203 = vsel %vm187, 1.0, 0.0
    %v204 = vsel %vm188, 1.0, 0.0
    %v205 = vsel %vm189, 1.0, 0.0
    %v206 = vsel %vm190, 1.0, 0.0
    %v207 = vsel %vm191, 1.0, 0.0
    %v208 = vsel %vm192, 1.0, 0.0
    %v209 = vpack.c.bf16 %v194, %v193
    %v210 = vpack.c.bf16 %v196, %v195
    %v211 = vpack.c.bf16 %v198, %v197
    %v212 = vpack.c.bf16 %v200, %v199
    %v213 = vpack.c.bf16 %v202, %v201
    %v214 = vpack.c.bf16 %v204, %v203
    %v215 = vpack.c.bf16 %v206, %v205
    %v216 = vpack.c.bf16 %v208, %v207
    %v217 = vld [vmem:[%s9] sm:$0xff]
    %v218 = vld [vmem:[%s9 + $0x8] sm:$0xff]
    %v219 = vld [vmem:[%s9 + $0x10] sm:$0xff]
    %v220 = vld [vmem:[%s9 + $0x18] sm:$0xff]
    %v221 = vld [vmem:[%s9 + $0x20] sm:$0xff]
    %v222 = vld [vmem:[%s9 + $0x28] sm:$0xff]
    %v223 = vld [vmem:[%s9 + $0x30] sm:$0xff]
    %v224 = vld [vmem:[%s9 + $0x38] sm:$0xff]
    %v225 = vld [vmem:[%s9 + $0x40] sm:$0xff]
    %v226 = vld [vmem:[%s9 + $0x48] sm:$0xff]
    %v227 = vld [vmem:[%s9 + $0x50] sm:$0xff]
    %v228 = vld [vmem:[%s9 + $0x58] sm:$0xff]
    %v229 = vld [vmem:[%s9 + $0x60] sm:$0xff]
    %v230 = vld [vmem:[%s9 + $0x68] sm:$0xff]
    %v231 = vld [vmem:[%s9 + $0x70] sm:$0xff]
    %v232 = vld [vmem:[%s9 + $0x78] sm:$0xff]
    %233 = vset.pattern.permute.xlu0 0
    %234 = vperm.xlu0 %233, %v217
    %v235 = vpop.permute.xlu0 %234
    %236 = vset.pattern.permute.xlu0 0
    %237 = vperm.xlu0 %236, %v218
    %v238 = vpop.permute.xlu0 %237
    %239 = vset.pattern.permute.xlu0 0
    %240 = vperm.xlu0 %239, %v219
    %v241 = vpop.permute.xlu0 %240
    %242 = vset.pattern.permute.xlu0 0
    %243 = vperm.xlu0 %242, %v220
    %v244 = vpop.permute.xlu0 %243
    %245 = vset.pattern.permute.xlu0 0
    %246 = vperm.xlu0 %245, %v221
    %v247 = vpop.permute.xlu0 %246
    %248 = vset.pattern.permute.xlu0 0
    %249 = vperm.xlu0 %248, %v222
    %v250 = vpop.permute.xlu0 %249
    %251 = vset.pattern.permute.xlu0 0
    %252 = vperm.xlu0 %251, %v223
    %v253 = vpop.permute.xlu0 %252
    %254 = vset.pattern.permute.xlu0 0
    %255 = vperm.xlu0 %254, %v224
    %v256 = vpop.permute.xlu0 %255
    %257 = vset.pattern.permute.xlu0 0
    %258 = vperm.xlu0 %257, %v225
    %v259 = vpop.permute.xlu0 %258
    %260 = vset.pattern.permute.xlu0 0
    %261 = vperm.xlu0 %260, %v226
    %v262 = vpop.permute.xlu0 %261
    %263 = vset.pattern.permute.xlu0 0
    %264 = vperm.xlu0 %263, %v227
    %v265 = vpop.permute.xlu0 %264
    %266 = vset.pattern.permute.xlu0 0
    %267 = vperm.xlu0 %266, %v228
    %v268 = vpop.permute.xlu0 %267
    %269 = vset.pattern.permute.xlu0 0
    %270 = vperm.xlu0 %269, %v229
    %v271 = vpop.permute.xlu0 %270
    %272 = vset.pattern.permute.xlu0 0
    %273 = vperm.xlu0 %272, %v230
    %v274 = vpop.permute.xlu0 %273
    %275 = vset.pattern.permute.xlu0 0
    %276 = vperm.xlu0 %275, %v231
    %v277 = vpop.permute.xlu0 %276
    %278 = vset.pattern.permute.xlu0 0
    %279 = vperm.xlu0 %278, %v232
    %v280 = vpop.permute.xlu0 %279
    %vm281 = vcmp.eq.s32.totalorder %v235, %v112
    %vm282 = vcmp.eq.s32.totalorder %v238, %v112
    %vm283 = vcmp.eq.s32.totalorder %v241, %v112
    %vm284 = vcmp.eq.s32.totalorder %v244, %v112
    %vm285 = vcmp.eq.s32.totalorder %v247, %v112
    %vm286 = vcmp.eq.s32.totalorder %v250, %v112
    %vm287 = vcmp.eq.s32.totalorder %v253, %v112
    %vm288 = vcmp.eq.s32.totalorder %v256, %v112
    %vm289 = vcmp.eq.s32.totalorder %v259, %v112
    %vm290 = vcmp.eq.s32.totalorder %v262, %v112
    %vm291 = vcmp.eq.s32.totalorder %v265, %v112
    %vm292 = vcmp.eq.s32.totalorder %v268, %v112
    %vm293 = vcmp.eq.s32.totalorder %v271, %v112
    %vm294 = vcmp.eq.s32.totalorder %v274, %v112
    %vm295 = vcmp.eq.s32.totalorder %v277, %v112
    %vm296 = vcmp.eq.s32.totalorder %v280, %v112
    %v297 = vsel %vm281, 1.0, 0.0
    %v298 = vsel %vm282, 1.0, 0.0
    %v299 = vsel %vm283, 1.0, 0.0
    %v300 = vsel %vm284, 1.0, 0.0
    %v301 = vsel %vm285, 1.0, 0.0
    %v302 = vsel %vm286, 1.0, 0.0
    %v303 = vsel %vm287, 1.0, 0.0
    %v304 = vsel %vm288, 1.0, 0.0
    %v305 = vsel %vm289, 1.0, 0.0
    %v306 = vsel %vm290, 1.0, 0.0
    %v307 = vsel %vm291, 1.0, 0.0
    %v308 = vsel %vm292, 1.0, 0.0
    %v309 = vsel %vm293, 1.0, 0.0
    %v310 = vsel %vm294, 1.0, 0.0
    %v311 = vsel %vm295, 1.0, 0.0
    %v312 = vsel %vm296, 1.0, 0.0
    %v313 = vpack.c.bf16 %v298, %v297
    %v314 = vpack.c.bf16 %v300, %v299
    %v315 = vpack.c.bf16 %v302, %v301
    %v316 = vpack.c.bf16 %v304, %v303
    %v317 = vpack.c.bf16 %v306, %v305
    %v318 = vpack.c.bf16 %v308, %v307
    %v319 = vpack.c.bf16 %v310, %v309
    %v320 = vpack.c.bf16 %v312, %v311
    %v321 = vlaneseq
    %v322 = vshrl.u32 %v321, 7
    %v323 = vadd.s32 %v322, 8
    %v324 = vadd.s32 %v322, 16
    %v325 = vadd.s32 %v322, 24
    %v326 = vadd.s32 %v322, 32
    %v327 = vadd.s32 %v322, 40
    %v328 = vadd.s32 %v322, 48
    %v329 = vadd.s32 %v322, 56
    %v330 = vadd.s32 %v322, 64
    %v331 = vadd.s32 %v322, 72
    %v332 = vadd.s32 %v322, 80
    %v333 = vadd.s32 %v322, 88
    %v334 = vadd.s32 %v322, 96
    %v335 = vadd.s32 %v322, 104
    %v336 = vadd.s32 %v322, 112
    %v337 = vadd.s32 %v322, 120
    %v338 = vld [vmem:[%s10] sm:$0x1]
    %v339 = vlaneseq
    %v340 = vshrl.u32 %v339, 7
    %v341 = vsub.s32 0, %v340
    %v342 = vrot.slane %v338, %v341
    %vm343 = vcmp.eq.s32.totalorder %v342, %v322
    %vm344 = vcmp.eq.s32.totalorder %v342, %v323
    %vm345 = vcmp.eq.s32.totalorder %v342, %v324
    %vm346 = vcmp.eq.s32.totalorder %v342, %v325
    %vm347 = vcmp.eq.s32.totalorder %v342, %v326
    %vm348 = vcmp.eq.s32.totalorder %v342, %v327
    %vm349 = vcmp.eq.s32.totalorder %v342, %v328
    %vm350 = vcmp.eq.s32.totalorder %v342, %v329
    %vm351 = vcmp.eq.s32.totalorder %v342, %v330
    %vm352 = vcmp.eq.s32.totalorder %v342, %v331
    %vm353 = vcmp.eq.s32.totalorder %v342, %v332
    %vm354 = vcmp.eq.s32.totalorder %v342, %v333
    %vm355 = vcmp.eq.s32.totalorder %v342, %v334
    %vm356 = vcmp.eq.s32.totalorder %v342, %v335
    %vm357 = vcmp.eq.s32.totalorder %v342, %v336
    %vm358 = vcmp.eq.s32.totalorder %v342, %v337
    %v359 = vsel %vm343, 1.0, 0.0
    %v360 = vsel %vm344, 1.0, 0.0
    %v361 = vsel %vm345, 1.0, 0.0
    %v362 = vsel %vm346, 1.0, 0.0
    %v363 = vsel %vm347, 1.0, 0.0
    %v364 = vsel %vm348, 1.0, 0.0
    %v365 = vsel %vm349, 1.0, 0.0
    %v366 = vsel %vm350, 1.0, 0.0
    %v367 = vsel %vm351, 1.0, 0.0
    %v368 = vsel %vm352, 1.0, 0.0
    %v369 = vsel %vm353, 1.0, 0.0
    %v370 = vsel %vm354, 1.0, 0.0
    %v371 = vsel %vm355, 1.0, 0.0
    %v372 = vsel %vm356, 1.0, 0.0
    %v373 = vsel %vm357, 1.0, 0.0
    %v374 = vsel %vm358, 1.0, 0.0
    %v375 = vpack.c.bf16 %v360, %v359
    %v376 = vpack.c.bf16 %v362, %v361
    %v377 = vpack.c.bf16 %v364, %v363
    %v378 = vpack.c.bf16 %v366, %v365
    %v379 = vpack.c.bf16 %v368, %v367
    %v380 = vpack.c.bf16 %v370, %v369
    %v381 = vpack.c.bf16 %v372, %v371
    %v382 = vpack.c.bf16 %v374, %v373
    %vm383 = vcmp.lt.s32.totalorder %v322, 34
    %vm384 = vcmp.lt.s32.totalorder %v323, 34
    %vm385 = vcmp.lt.s32.totalorder %v324, 34
    %vm386 = vcmp.lt.s32.totalorder %v325, 34
    %vm387 = vcmp.lt.s32.totalorder %v326, 34
    %vm388 = vcmp.lt.s32.totalorder %v327, 34
    %vm389 = vcmp.lt.s32.totalorder %v328, 34
    %vm390 = vcmp.lt.s32.totalorder %v329, 34
    %vm391 = vcmp.lt.s32.totalorder %v330, 34
    %vm392 = vcmp.lt.s32.totalorder %v331, 34
    %vm393 = vcmp.lt.s32.totalorder %v332, 34
    %vm394 = vcmp.lt.s32.totalorder %v333, 34
    %vm395 = vcmp.lt.s32.totalorder %v334, 34
    %vm396 = vcmp.lt.s32.totalorder %v335, 34
    %vm397 = vcmp.lt.s32.totalorder %v336, 34
    %vm398 = vcmp.lt.s32.totalorder %v337, 34
    %vm399 = vcmp.lt.s32.totalorder %v112, 16
    %vm400 = vmand %vm383, %vm399
    %vm401 = vmand %vm384, %vm399
    %vm402 = vmand %vm385, %vm399
    %vm403 = vmand %vm386, %vm399
    %vm404 = vmand %vm387, %vm399
    %vm405 = vmand %vm388, %vm399
    %vm406 = vmand %vm389, %vm399
    %vm407 = vmand %vm390, %vm399
    %vm408 = vmand %vm391, %vm399
    %vm409 = vmand %vm392, %vm399
    %vm410 = vmand %vm393, %vm399
    %vm411 = vmand %vm394, %vm399
    %vm412 = vmand %vm395, %vm399
    %vm413 = vmand %vm396, %vm399
    %vm414 = vmand %vm397, %vm399
    %vm415 = vmand %vm398, %vm399
    %v416 = vld [vmem:[#allocation2] sm:$0xff]
    %v417 = vld [vmem:[#allocation2 + $0x8] sm:$0xff]
    %v418 = vld [vmem:[#allocation2 + $0x10] sm:$0xff]
    %v419 = vld [vmem:[#allocation2 + $0x18] sm:$0xff]
    %v420 = vld [vmem:[#allocation2 + $0x20] sm:$0xff]
    %v421 = vld [vmem:[#allocation2 + $0x28] sm:$0xff]
    %v422 = vld [vmem:[#allocation2 + $0x30] sm:$0xff]
    %v423 = vld [vmem:[#allocation2 + $0x38] sm:$0xff]
    %v424 = vld [vmem:[#allocation2 + $0x40] sm:$0xff]
    %v425 = vld [vmem:[#allocation2 + $0x48] sm:$0xff]
    %v426 = vld [vmem:[#allocation2 + $0x50] sm:$0xff]
    %v427 = vld [vmem:[#allocation2 + $0x58] sm:$0xff]
    %v428 = vld [vmem:[#allocation2 + $0x60] sm:$0xff]
    %v429 = vld [vmem:[#allocation2 + $0x68] sm:$0xff]
    %v430 = vld [vmem:[#allocation2 + $0x70] sm:$0xff]
    %v431 = vld [vmem:[#allocation2 + $0x78] sm:$0xff]
    %v432 = vpack.c.bf16 %v417, %v416
    %v433 = vpack.c.bf16 %v419, %v418
    %v434 = vpack.c.bf16 %v421, %v420
    %v435 = vpack.c.bf16 %v423, %v422
    %v436 = vpack.c.bf16 %v425, %v424
    %v437 = vpack.c.bf16 %v427, %v426
    %v438 = vpack.c.bf16 %v429, %v428
    %v439 = vpack.c.bf16 %v431, %v430
    %v440 = vld [vmem:[#allocation5] sm:$0xff]
    %v441 = vld [vmem:[#allocation5 + $0x8] sm:$0xff]
    %v442 = vld [vmem:[#allocation5 + $0x10] sm:$0xff]
    %v443 = vld [vmem:[#allocation5 + $0x18] sm:$0xff]
    %v444 = vld [vmem:[#allocation5 + $0x20] sm:$0xff]
    %v445 = vld [vmem:[#allocation5 + $0x28] sm:$0xff]
    %v446 = vld [vmem:[#allocation5 + $0x30] sm:$0xff]
    %v447 = vld [vmem:[#allocation5 + $0x38] sm:$0xff]
    %v448 = vld [vmem:[#allocation5 + $0x40] sm:$0xff]
    %v449 = vld [vmem:[#allocation5 + $0x48] sm:$0xff]
    %v450 = vld [vmem:[#allocation5 + $0x50] sm:$0xff]
    %v451 = vld [vmem:[#allocation5 + $0x58] sm:$0xff]
    %v452 = vld [vmem:[#allocation5 + $0x60] sm:$0xff]
    %v453 = vld [vmem:[#allocation5 + $0x68] sm:$0xff]
    %v454 = vld [vmem:[#allocation5 + $0x70] sm:$0xff]
    %v455 = vld [vmem:[#allocation5 + $0x78] sm:$0xff]
    %v456 = vpack.c.bf16 %v441, %v440
    %v457 = vpack.c.bf16 %v443, %v442
    %v458 = vpack.c.bf16 %v445, %v444
    %v459 = vpack.c.bf16 %v447, %v446
    %v460 = vpack.c.bf16 %v449, %v448
    %v461 = vpack.c.bf16 %v451, %v450
    %v462 = vpack.c.bf16 %v453, %v452
    %v463 = vpack.c.bf16 %v455, %v454
    %464 = vmatprep.subr.bf16.mxu0 0
    %465 = vmatpush1.bf16.msra.mxu0 %v456
    %466 = vmatprep.subr.bf16.mxu0 0
    %467 = vmatpush1.bf16.msra.mxu0 %v457
    %468 = vmatprep.subr.bf16.mxu0 0
    %469 = vmatpush1.bf16.msra.mxu0 %v458
    %470 = vmatprep.subr.bf16.mxu0 0
    %471 = vmatpush1.bf16.msra.mxu0 %v459
    %472 = vmatprep.subr.bf16.mxu0 0
    %473 = vmatpush1.bf16.msra.mxu0 %v460
    %474 = vmatprep.subr.bf16.mxu0 0
    %475 = vmatpush1.bf16.msra.mxu0 %v461
    %476 = vmatprep.subr.bf16.mxu0 0
    %477 = vmatpush1.bf16.msra.mxu0 %v462
    %478 = vmatprep.subr.bf16.mxu0 0
    %479 = vmatpush1.bf16.msra.mxu0 %v463
    %480 = vmatprep.subr.bf16.mxu0 0
    %481 = vmatpush1.bf16.msra.mxu0 0
    %482 = vmatprep.subr.bf16.mxu0 0
    %483 = vmatpush1.bf16.msra.mxu0 0
    %484 = vmatprep.subr.bf16.mxu0 0
    %485 = vmatpush1.bf16.msra.mxu0 0
    %486 = vmatprep.subr.bf16.mxu0 0
    %487 = vmatpush1.bf16.msra.mxu0 0
    %488 = vmatprep.subr.bf16.mxu0 0
    %489 = vmatpush1.bf16.msra.mxu0 0
    %490 = vmatprep.subr.bf16.mxu0 0
    %491 = vmatpush1.bf16.msra.mxu0 0
    %492 = vmatprep.subr.bf16.mxu0 0
    %493 = vmatpush1.bf16.msra.mxu0 0
    %494 = vmatprep.subr.bf16.mxu0 0
    %495 = vmatpush1.bf16.msra.mxu0 0
    %496 = vmatprep.mubr.bf16.mxu0 0
    %497 = vmatmul.mubr.bf16.gmra.mrb[0].mxu0 %v432
    %v498 = vpop.f32.mrb[0].mxu0
    %v499 = vadd.f32 0.0, %v498
    %v500 = vpop.f32.mrb[0].mxu0
    %v501 = vpop.f32.mrb[0].mxu0
    %v502 = vadd.f32 0.0, %v501
    %v503 = vpop.f32.mrb[0].mxu0
    %504 = vmatprep.mubr.bf16.mxu0 0
    %505 = vmatmul.mubr.bf16.gmra.mrb[0].mxu0 %v433
    %v506 = vpop.f32.mrb[0].mxu0
    %v507 = vadd.f32 0.0, %v506
    %v508 = vpop.f32.mrb[0].mxu0
    %v509 = vpop.f32.mrb[0].mxu0
    %v510 = vadd.f32 0.0, %v509
    %v511 = vpop.f32.mrb[0].mxu0
    %512 = vmatprep.mubr.bf16.mxu0 0
    %513 = vmatmul.mubr.bf16.gmra.mrb[0].mxu0 %v434
    %v514 = vpop.f32.mrb[0].mxu0
    %v515 = vadd.f32 0.0, %v514
    %v516 = vpop.f32.mrb[0].mxu0
    %v517 = vpop.f32.mrb[0].mxu0
    %v518 = vadd.f32 0.0, %v517
    %v519 = vpop.f32.mrb[0].mxu0
    %520 = vmatprep.mubr.bf16.mxu0 0
    %521 = vmatmul.mubr.bf16.gmra.mrb[0].mxu0 %v435
    %v522 = vpop.f32.mrb[0].mxu0
    %v523 = vadd.f32 0.0, %v522
    %v524 = vpop.f32.mrb[0].mxu0
    %v525 = vpop.f32.mrb[0].mxu0
    %v526 = vadd.f32 0.0, %v525
    %v527 = vpop.f32.mrb[0].mxu0
    %528 = vmatprep.mubr.bf16.mxu0 0
    %529 = vmatmul.mubr.bf16.gmra.mrb[0].mxu0 %v436
    %v530 = vpop.f32.mrb[0].mxu0
    %v531 = vadd.f32 0.0, %v530
    %v532 = vpop.f32.mrb[0].mxu0
    %v533 = vpop.f32.mrb[0].mxu0
    %v534 = vadd.f32 0.0, %v533
    %v535 = vpop.f32.mrb[0].mxu0
    %536 = vmatprep.mubr.bf16.mxu0 0
    %537 = vmatmul.mubr.bf16.gmra.mrb[0].mxu0 %v437
    %v538 = vpop.f32.mrb[0].mxu0
    %v539 = vadd.f32 0.0, %v538
    %v540 = vpop.f32.mrb[0].mxu0
    %v541 = vpop.f32.mrb[0].mxu0
    %v542 = vadd.f32 0.0, %v541
    %v543 = vpop.f32.mrb[0].mxu0
    %544 = vmatprep.mubr.bf16.mxu0 0
    %545 = vmatmul.mubr.bf16.gmra.mrb[0].mxu0 %v438
    %v546 = vpop.f32.mrb[0].mxu0
    %v547 = vadd.f32 0.0, %v546
    %v548 = vpop.f32.mrb[0].mxu0
    %v549 = vpop.f32.mrb[0].mxu0
    %v550 = vadd.f32 0.0, %v549
    %v551 = vpop.f32.mrb[0].mxu0
    %552 = vmatprep.mubr.bf16.mxu0 0
    %553 = vmatmul.mubr.bf16.gmra.mrb[0].mxu0 %v439
    %v554 = vpop.f32.mrb[0].mxu0
    %v555 = vadd.f32 0.0, %v554
    %v556 = vpop.f32.mrb[0].mxu0
    %v557 = vpop.f32.mrb[0].mxu0
    %v558 = vadd.f32 0.0, %v557
    %v559 = vpop.f32.mrb[0].mxu0
    %560 = vdwg.mxu0
    %v561 = vpack.c.bf16 %v502, %v499
    %v562 = vpack.c.bf16 %v510, %v507
    %v563 = vpack.c.bf16 %v518, %v515
    %v564 = vpack.c.bf16 %v526, %v523
    %v565 = vpack.c.bf16 %v534, %v531
    %v566 = vpack.c.bf16 %v542, %v539
    %v567 = vpack.c.bf16 %v550, %v547
    %v568 = vpack.c.bf16 %v558, %v555
    %v569 = vld [vmem:[%s2] sm:$0xff]
    %v570 = vld [vmem:[%s2 + $0x8] sm:$0xff]
    %v571 = vld [vmem:[%s2 + $0x10] sm:$0xff]
    %v572 = vld [vmem:[%s2 + $0x18] sm:$0xff]
    %v573 = vld [vmem:[%s2 + $0x20] sm:$0xff]
    %v574 = vld [vmem:[%s2 + $0x28] sm:$0xff]
    %v575 = vld [vmem:[%s2 + $0x30] sm:$0xff]
    %v576 = vld [vmem:[%s2 + $0x38] sm:$0xff]
    %v577 = vld [vmem:[%s2 + $0x40] sm:$0xff]
    %v578 = vld [vmem:[%s2 + $0x48] sm:$0xff]
    %v579 = vld [vmem:[%s2 + $0x50] sm:$0xff]
    %v580 = vld [vmem:[%s2 + $0x58] sm:$0xff]
    %v581 = vld [vmem:[%s2 + $0x60] sm:$0xff]
    %v582 = vld [vmem:[%s2 + $0x68] sm:$0xff]
    %v583 = vld [vmem:[%s2 + $0x70] sm:$0xff]
    %v584 = vld [vmem:[%s2 + $0x78] sm:$0xff]
    %v585 = vld [vmem:[%s2 + $0x80] sm:$0xff]
    %v586 = vld [vmem:[%s2 + $0x88] sm:$0xff]
    %v587 = vld [vmem:[%s2 + $0x90] sm:$0xff]
    %v588 = vld [vmem:[%s2 + $0x98] sm:$0xff]
    %v589 = vld [vmem:[%s2 + $0xa0] sm:$0xff]
    %v590 = vld [vmem:[%s2 + $0xa8] sm:$0xff]
    %v591 = vld [vmem:[%s2 + $0xb0] sm:$0xff]
    %v592 = vld [vmem:[%s2 + $0xb8] sm:$0xff]
    %v593 = vld [vmem:[%s2 + $0xc0] sm:$0xff]
    %v594 = vld [vmem:[%s2 + $0xc8] sm:$0xff]
    %v595 = vld [vmem:[%s2 + $0xd0] sm:$0xff]
    %v596 = vld [vmem:[%s2 + $0xd8] sm:$0xff]
    %v597 = vld [vmem:[%s2 + $0xe0] sm:$0xff]
    %v598 = vld [vmem:[%s2 + $0xe8] sm:$0xff]
    %v599 = vld [vmem:[%s2 + $0xf0] sm:$0xff]
    %v600 = vld [vmem:[%s2 + $0xf8] sm:$0xff]
    %v601 = vpack.c.bf16 %v571, %v569
    %v602 = vpack.c.bf16 %v572, %v570
    %v603 = vpack.c.bf16 %v575, %v573
    %v604 = vpack.c.bf16 %v576, %v574
    %v605 = vpack.c.bf16 %v579, %v577
    %v606 = vpack.c.bf16 %v580, %v578
    %v607 = vpack.c.bf16 %v583, %v581
    %v608 = vpack.c.bf16 %v584, %v582
    %v609 = vpack.c.bf16 %v587, %v585
    %v610 = vpack.c.bf16 %v588, %v586
    %v611 = vpack.c.bf16 %v591, %v589
    %v612 = vpack.c.bf16 %v592, %v590
    %v613 = vpack.c.bf16 %v595, %v593
    %v614 = vpack.c.bf16 %v596, %v594
    %v615 = vpack.c.bf16 %v599, %v597
    %v616 = vpack.c.bf16 %v600, %v598
    %617 = vmatprep.subr.bf16.mxu0 %v602
    %618 = vmatpush1.bf16.msra.mxu0 %v601
    %619 = vmatprep.subr.bf16.mxu0 %v604
    %620 = vmatpush1.bf16.msra.mxu0 %v603
    %621 = vmatprep.subr.bf16.mxu0 %v606
    %622 = vmatpush1.bf16.msra.mxu0 %v605
    %623 = vmatprep.subr.bf16.mxu0 %v608
    %624 = vmatpush1.bf16.msra.mxu0 %v607
    %625 = vmatprep.subr.bf16.mxu0 %v610
    %626 = vmatpush1.bf16.msra.mxu0 %v609
    %627 = vmatprep.subr.bf16.mxu0 %v612
    %628 = vmatpush1.bf16.msra.mxu0 %v611
    %629 = vmatprep.subr.bf16.mxu0 %v614
    %630 = vmatpush1.bf16.msra.mxu0 %v613
    %631 = vmatprep.subr.bf16.mxu0 %v616
    %632 = vmatpush1.bf16.msra.mxu0 %v615
    %633 = vmatprep.subr.bf16.mxu0 0
    %634 = vmatpush1.bf16.msra.mxu0 0
    %635 = vmatprep.subr.bf16.mxu0 0
    %636 = vmatpush1.bf16.msra.mxu0 0
    %637 = vmatprep.subr.bf16.mxu0 0
    %638 = vmatpush1.bf16.msra.mxu0 0
    %639 = vmatprep.subr.bf16.mxu0 0
    %640 = vmatpush1.bf16.msra.mxu0 0
    %641 = vmatprep.subr.bf16.mxu0 0
    %642 = vmatpush1.bf16.msra.mxu0 0
    %643 = vmatprep.subr.bf16.mxu0 0
    %644 = vmatpush1.bf16.msra.mxu0 0
    %645 = vmatprep.subr.bf16.mxu0 0
    %646 = vmatpush1.bf16.msra.mxu0 0
    %647 = vmatprep.subr.bf16.mxu0 0
    %648 = vmatpush1.bf16.msra.mxu0 0
    %649 = vmatprep.mubr.bf16.mxu0 0
    %650 = vmatmul.mubr.bf16.gmra.mrb[0].mxu0 %v561
    %v651 = vpop.f32.mrb[0].mxu0
    %v652 = vadd.f32 0.0, %v651
    %v653 = vpop.f32.mrb[0].mxu0
    %v654 = vadd.f32 0.0, %v653
    %v655 = vpop.f32.mrb[0].mxu0
    %v656 = vadd.f32 0.0, %v655
    %v657 = vpop.f32.mrb[0].mxu0
    %v658 = vadd.f32 0.0, %v657
    %659 = vmatprep.mubr.bf16.mxu0 0
    %660 = vmatmul.mubr.bf16.gmra.mrb[0].mxu0 %v562
    %v661 = vpop.f32.mrb[0].mxu0
    %v662 = vadd.f32 0.0, %v661
    %v663 = vpop.f32.mrb[0].mxu0
    %v664 = vadd.f32 0.0, %v663
    %v665 = vpop.f32.mrb[0].mxu0
    %v666 = vadd.f32 0.0, %v665
    %v667 = vpop.f32.mrb[0].mxu0
    %v668 = vadd.f32 0.0, %v667
    %669 = vmatprep.mubr.bf16.mxu0 0
    %670 = vmatmul.mubr.bf16.gmra.mrb[0].mxu0 %v563
    %v671 = vpop.f32.mrb[0].mxu0
    %v672 = vadd.f32 0.0, %v671
    %v673 = vpop.f32.mrb[0].mxu0
    %v674 = vadd.f32 0.0, %v673
    %v675 = vpop.f32.mrb[0].mxu0
    %v676 = vadd.f32 0.0, %v675
    %v677 = vpop.f32.mrb[0].mxu0
    %v678 = vadd.f32 0.0, %v677
    %679 = vmatprep.mubr.bf16.mxu0 0
    %680 = vmatmul.mubr.bf16.gmra.mrb[0].mxu0 %v564
    %v681 = vpop.f32.mrb[0].mxu0
    %v682 = vadd.f32 0.0, %v681
    %v683 = vpop.f32.mrb[0].mxu0
    %v684 = vadd.f32 0.0, %v683
    %v685 = vpop.f32.mrb[0].mxu0
    %v686 = vadd.f32 0.0, %v685
    %v687 = vpop.f32.mrb[0].mxu0
    %v688 = vadd.f32 0.0, %v687
    %689 = vmatprep.mubr.bf16.mxu0 0
    %690 = vmatmul.mubr.bf16.gmra.mrb[0].mxu0 %v565
    %v691 = vpop.f32.mrb[0].mxu0
    %v692 = vadd.f32 0.0, %v691
    %v693 = vpop.f32.mrb[0].mxu0
    %v694 = vadd.f32 0.0, %v693
    %v695 = vpop.f32.mrb[0].mxu0
    %v696 = vadd.f32 0.0, %v695
    %v697 = vpop.f32.mrb[0].mxu0
    %v698 = vadd.f32 0.0, %v697
    %699 = vmatprep.mubr.bf16.mxu0 0
    %700 = vmatmul.mubr.bf16.gmra.mrb[0].mxu0 %v566
    %v701 = vpop.f32.mrb[0].mxu0
    %v702 = vadd.f32 0.0, %v701
    %v703 = vpop.f32.mrb[0].mxu0
    %v704 = vadd.f32 0.0, %v703
    %v705 = vpop.f32.mrb[0].mxu0
    %v706 = vadd.f32 0.0, %v705
    %v707 = vpop.f32.mrb[0].mxu0
    %v708 = vadd.f32 0.0, %v707
    %709 = vmatprep.mubr.bf16.mxu0 0
    %710 = vmatmul.mubr.bf16.gmra.mrb[0].mxu0 %v567
    %v711 = vpop.f32.mrb[0].mxu0
    %v712 = vadd.f32 0.0, %v711
    %v713 = vpop.f32.mrb[0].mxu0
    %v714 = vadd.f32 0.0, %v713
    %v715 = vpop.f32.mrb[0].mxu0
    %v716 = vadd.f32 0.0, %v715
    %v717 = vpop.f32.mrb[0].mxu0
    %v718 = vadd.f32 0.0, %v717
    %719 = vmatprep.mubr.bf16.mxu0 0
    %720 = vmatmul.mubr.bf16.gmra.mrb[0].mxu0 %v568
    %v721 = vpop.f32.mrb[0].mxu0
    %v722 = vadd.f32 0.0, %v721
    %v723 = vpop.f32.mrb[0].mxu0
    %v724 = vadd.f32 0.0, %v723
    %v725 = vpop.f32.mrb[0].mxu0
    %v726 = vadd.f32 0.0, %v725
    %v727 = vpop.f32.mrb[0].mxu0
    %v728 = vadd.f32 0.0, %v727
    %729 = vdwg.mxu0
    %v730 = vpack.c.bf16 %v656, %v652
    %v731 = vpack.c.bf16 %v658, %v654
    %v732 = vpack.c.bf16 %v666, %v662
    %v733 = vpack.c.bf16 %v668, %v664
    %v734 = vpack.c.bf16 %v676, %v672
    %v735 = vpack.c.bf16 %v678, %v674
    %v736 = vpack.c.bf16 %v686, %v682
    %v737 = vpack.c.bf16 %v688, %v684
    %v738 = vpack.c.bf16 %v696, %v692
    %v739 = vpack.c.bf16 %v698, %v694
    %v740 = vpack.c.bf16 %v706, %v702
    %v741 = vpack.c.bf16 %v708, %v704
    %v742 = vpack.c.bf16 %v716, %v712
    %v743 = vpack.c.bf16 %v718, %v714
    %v744 = vpack.c.bf16 %v726, %v722
    %v745 = vpack.c.bf16 %v728, %v724
    %746 = vmatprep.subr.bf16.mxu0 %v561
    %747 = vmatpush1.bf16.msra.mxu0 %v730
    %748 = vmatprep.subr.bf16.mxu0 %v562
    %749 = vmatpush1.bf16.msra.mxu0 %v732
    %750 = vmatprep.subr.bf16.mxu0 %v563
    %751 = vmatpush1.bf16.msra.mxu0 %v734
    %752 = vmatprep.subr.bf16.mxu0 %v564
    %753 = vmatpush1.bf16.msra.mxu0 %v736
    %754 = vmatprep.subr.bf16.mxu0 %v565
    %755 = vmatpush1.bf16.msra.mxu0 %v738
    %756 = vmatprep.subr.bf16.mxu0 %v566
    %757 = vmatpush1.bf16.msra.mxu0 %v740
    %758 = vmatprep.subr.bf16.mxu0 %v567
    %759 = vmatpush1.bf16.msra.mxu0 %v742
    %760 = vmatprep.subr.bf16.mxu0 %v568
    %761 = vmatpush1.bf16.msra.mxu0 %v744
    %762 = vmatprep.subr.bf16.mxu0 0
    %763 = vmatpush1.bf16.msra.mxu0 0
    %764 = vmatprep.subr.bf16.mxu0 0
    %765 = vmatpush1.bf16.msra.mxu0 0
    %766 = vmatprep.subr.bf16.mxu0 0
    %767 = vmatpush1.bf16.msra.mxu0 0
    %768 = vmatprep.subr.bf16.mxu0 0
    %769 = vmatpush1.bf16.msra.mxu0 0
    %770 = vmatprep.subr.bf16.mxu0 0
    %771 = vmatpush1.bf16.msra.mxu0 0
    %772 = vmatprep.subr.bf16.mxu0 0
    %773 = vmatpush1.bf16.msra.mxu0 0
    %774 = vmatprep.subr.bf16.mxu0 0
    %775 = vmatpush1.bf16.msra.mxu0 0
    %776 = vmatprep.subr.bf16.mxu0 0
    %777 = vmatpush1.bf16.msra.mxu0 0
    %778 = vmatprep.mubr.bf16.mxu0 0
    %779 = vmatmul.mubr.bf16.gmra.mrb[0].mxu0 %v209
    %v780 = vpop.f32.mrb[0].mxu0
    %v781 = vadd.f32 0.0, %v780
    %v782 = vpop.f32.mrb[0].mxu0
    %v783 = vadd.f32 0.0, %v782
    %v784 = vpop.f32.mrb[0].mxu0
    %v785 = vadd.f32 0.0, %v784
    %v786 = vpop.f32.mrb[0].mxu0
    %v787 = vadd.f32 0.0, %v786
    %788 = vmatprep.mubr.bf16.mxu0 0
    %789 = vmatmul.mubr.bf16.gmra.mrb[0].mxu0 %v210
    %v790 = vpop.f32.mrb[0].mxu0
    %v791 = vadd.f32 0.0, %v790
    %v792 = vpop.f32.mrb[0].mxu0
    %v793 = vadd.f32 0.0, %v792
    %v794 = vpop.f32.mrb[0].mxu0
    %v795 = vadd.f32 0.0, %v794
    %v796 = vpop.f32.mrb[0].mxu0
    %v797 = vadd.f32 0.0, %v796
    %798 = vmatprep.mubr.bf16.mxu0 0
    %799 = vmatmul.mubr.bf16.gmra.mrb[0].mxu0 %v211
    %v800 = vpop.f32.mrb[0].mxu0
    %v801 = vadd.f32 0.0, %v800
    %v802 = vpop.f32.mrb[0].mxu0
    %v803 = vadd.f32 0.0, %v802
    %v804 = vpop.f32.mrb[0].mxu0
    %v805 = vadd.f32 0.0, %v804
    %v806 = vpop.f32.mrb[0].mxu0
    %v807 = vadd.f32 0.0, %v806
    %808 = vmatprep.mubr.bf16.mxu0 0
    %809 = vmatmul.mubr.bf16.gmra.mrb[0].mxu0 %v212
    %v810 = vpop.f32.mrb[0].mxu0
    %v811 = vadd.f32 0.0, %v810
    %v812 = vpop.f32.mrb[0].mxu0
    %v813 = vadd.f32 0.0, %v812
    %v814 = vpop.f32.mrb[0].mxu0
    %v815 = vadd.f32 0.0, %v814
    %v816 = vpop.f32.mrb[0].mxu0
    %v817 = vadd.f32 0.0, %v816
    %818 = vmatprep.mubr.bf16.mxu0 0
    %819 = vmatmul.mubr.bf16.gmra.mrb[0].mxu0 %v213
    %v820 = vpop.f32.mrb[0].mxu0
    %v821 = vadd.f32 0.0, %v820
    %v822 = vpop.f32.mrb[0].mxu0
    %v823 = vadd.f32 0.0, %v822
    %v824 = vpop.f32.mrb[0].mxu0
    %v825 = vadd.f32 0.0, %v824
    %v826 = vpop.f32.mrb[0].mxu0
    %v827 = vadd.f32 0.0, %v826
    %828 = vmatprep.mubr.bf16.mxu0 0
    %829 = vmatmul.mubr.bf16.gmra.mrb[0].mxu0 %v214
    %v830 = vpop.f32.mrb[0].mxu0
    %v831 = vadd.f32 0.0, %v830
    %v832 = vpop.f32.mrb[0].mxu0
    %v833 = vadd.f32 0.0, %v832
    %v834 = vpop.f32.mrb[0].mxu0
    %v835 = vadd.f32 0.0, %v834
    %v836 = vpop.f32.mrb[0].mxu0
    %v837 = vadd.f32 0.0, %v836
    %838 = vmatprep.mubr.bf16.mxu0 0
    %839 = vmatmul.mubr.bf16.gmra.mrb[0].mxu0 %v215
    %v840 = vpop.f32.mrb[0].mxu0
    %v841 = vadd.f32 0.0, %v840
    %v842 = vpop.f32.mrb[0].mxu0
    %v843 = vadd.f32 0.0, %v842
    %v844 = vpop.f32.mrb[0].mxu0
    %v845 = vadd.f32 0.0, %v844
    %v846 = vpop.f32.mrb[0].mxu0
    %v847 = vadd.f32 0.0, %v846
    %848 = vmatprep.mubr.bf16.mxu0 0
    %849 = vmatmul.mubr.bf16.gmra.mrb[0].mxu0 %v216
    %v850 = vpop.f32.mrb[0].mxu0
    %v851 = vadd.f32 0.0, %v850
    %v852 = vpop.f32.mrb[0].mxu0
    %v853 = vadd.f32 0.0, %v852
    %v854 = vpop.f32.mrb[0].mxu0
    %v855 = vadd.f32 0.0, %v854
    %v856 = vpop.f32.mrb[0].mxu0
    %v857 = vadd.f32 0.0, %v856
    %858 = vdwg.mxu0
    %859 = vmatprep.subr.bf16.mxu0 0
    %860 = vmatpush1.bf16.msra.mxu0 %v731
    %861 = vmatprep.subr.bf16.mxu0 0
    %862 = vmatpush1.bf16.msra.mxu0 %v733
    %863 = vmatprep.subr.bf16.mxu0 0
    %864 = vmatpush1.bf16.msra.mxu0 %v735
    %865 = vmatprep.subr.bf16.mxu0 0
    %866 = vmatpush1.bf16.msra.mxu0 %v737
    %867 = vmatprep.subr.bf16.mxu0 0
    %868 = vmatpush1.bf16.msra.mxu0 %v739
    %869 = vmatprep.subr.bf16.mxu0 0
    %870 = vmatpush1.bf16.msra.mxu0 %v741
    %871 = vmatprep.subr.bf16.mxu0 0
    %872 = vmatpush1.bf16.msra.mxu0 %v743
    %873 = vmatprep.subr.bf16.mxu0 0
    %874 = vmatpush1.bf16.msra.mxu0 %v745
    %875 = vmatprep.subr.bf16.mxu0 0
    %876 = vmatpush1.bf16.msra.mxu0 0
    %877 = vmatprep.subr.bf16.mxu0 0
    %878 = vmatpush1.bf16.msra.mxu0 0
    %879 = vmatprep.subr.bf16.mxu0 0
    %880 = vmatpush1.bf16.msra.mxu0 0
    %881 = vmatprep.subr.bf16.mxu0 0
    %882 = vmatpush1.bf16.msra.mxu0 0
    %883 = vmatprep.subr.bf16.mxu0 0
    %884 = vmatpush1.bf16.msra.mxu0 0
    %885 = vmatprep.subr.bf16.mxu0 0
    %886 = vmatpush1.bf16.msra.mxu0 0
    %887 = vmatprep.subr.bf16.mxu0 0
    %888 = vmatpush1.bf16.msra.mxu0 0
    %889 = vmatprep.subr.bf16.mxu0 0
    %890 = vmatpush1.bf16.msra.mxu0 0
    %891 = vmatprep.mubr.bf16.mxu0 0
    %892 = vmatmul.mubr.bf16.gmra.mrb[0].mxu0 %v313
    %v893 = vpop.f32.mrb[0].mxu0
    %v894 = vadd.f32 0.0, %v893
    %v895 = vpop.f32.mrb[0].mxu0
    %v896 = vpop.f32.mrb[0].mxu0
    %v897 = vadd.f32 0.0, %v896
    %v898 = vpop.f32.mrb[0].mxu0
    %899 = vmatprep.mubr.bf16.mxu0 0
    %900 = vmatmul.mubr.bf16.gmra.mrb[0].mxu0 %v314
    %v901 = vpop.f32.mrb[0].mxu0
    %v902 = vadd.f32 0.0, %v901
    %v903 = vpop.f32.mrb[0].mxu0
    %v904 = vpop.f32.mrb[0].mxu0
    %v905 = vadd.f32 0.0, %v904
    %v906 = vpop.f32.mrb[0].mxu0
    %907 = vmatprep.mubr.bf16.mxu0 0
    %908 = vmatmul.mubr.bf16.gmra.mrb[0].mxu0 %v315
    %v909 = vpop.f32.mrb[0].mxu0
    %v910 = vadd.f32 0.0, %v909
    %v911 = vpop.f32.mrb[0].mxu0
    %v912 = vpop.f32.mrb[0].mxu0
    %v913 = vadd.f32 0.0, %v912
    %v914 = vpop.f32.mrb[0].mxu0
    %915 = vmatprep.mubr.bf16.mxu0 0
    %916 = vmatmul.mubr.bf16.gmra.mrb[0].mxu0 %v316
    %v917 = vpop.f32.mrb[0].mxu0
    %v918 = vadd.f32 0.0, %v917
    %v919 = vpop.f32.mrb[0].mxu0
    %v920 = vpop.f32.mrb[0].mxu0
    %v921 = vadd.f32 0.0, %v920
    %v922 = vpop.f32.mrb[0].mxu0
    %923 = vmatprep.mubr.bf16.mxu0 0
    %924 = vmatmul.mubr.bf16.gmra.mrb[0].mxu0 %v317
    %v925 = vpop.f32.mrb[0].mxu0
    %v926 = vadd.f32 0.0, %v925
    %v927 = vpop.f32.mrb[0].mxu0
    %v928 = vpop.f32.mrb[0].mxu0
    %v929 = vadd.f32 0.0, %v928
    %v930 = vpop.f32.mrb[0].mxu0
    %931 = vmatprep.mubr.bf16.mxu0 0
    %932 = vmatmul.mubr.bf16.gmra.mrb[0].mxu0 %v318
    %v933 = vpop.f32.mrb[0].mxu0
    %v934 = vadd.f32 0.0, %v933
    %v935 = vpop.f32.mrb[0].mxu0
    %v936 = vpop.f32.mrb[0].mxu0
    %v937 = vadd.f32 0.0, %v936
    %v938 = vpop.f32.mrb[0].mxu0
    %939 = vmatprep.mubr.bf16.mxu0 0
    %940 = vmatmul.mubr.bf16.gmra.mrb[0].mxu0 %v319
    %v941 = vpop.f32.mrb[0].mxu0
    %v942 = vadd.f32 0.0, %v941
    %v943 = vpop.f32.mrb[0].mxu0
    %v944 = vpop.f32.mrb[0].mxu0
    %v945 = vadd.f32 0.0, %v944
    %v946 = vpop.f32.mrb[0].mxu0
    %947 = vmatprep.mubr.bf16.mxu0 0
    %948 = vmatmul.mubr.bf16.gmra.mrb[0].mxu0 %v320
    %v949 = vpop.f32.mrb[0].mxu0
    %v950 = vadd.f32 0.0, %v949
    %v951 = vpop.f32.mrb[0].mxu0
    %v952 = vpop.f32.mrb[0].mxu0
    %v953 = vadd.f32 0.0, %v952
    %v954 = vpop.f32.mrb[0].mxu0
    %955 = vdwg.mxu0
    %v956 = vadd.f32 %v781, %v894
    %v957 = vadd.f32 %v785, %v897
    %v958 = vadd.f32 %v791, %v902
    %v959 = vadd.f32 %v795, %v905
    %v960 = vadd.f32 %v801, %v910
    %v961 = vadd.f32 %v805, %v913
    %v962 = vadd.f32 %v811, %v918
    %v963 = vadd.f32 %v815, %v921
    %v964 = vadd.f32 %v821, %v926
    %v965 = vadd.f32 %v825, %v929
    %v966 = vadd.f32 %v831, %v934
    %v967 = vadd.f32 %v835, %v937
    %v968 = vadd.f32 %v841, %v942
    %v969 = vadd.f32 %v845, %v945
    %v970 = vadd.f32 %v851, %v950
    %v971 = vadd.f32 %v855, %v953
    %vm972 = vcmp.gt.f32.partialorder %v956, 0.0
    %vm973 = vcmp.gt.f32.partialorder %v957, 0.0
    %vm974 = vcmp.gt.f32.partialorder %v958, 0.0
    %vm975 = vcmp.gt.f32.partialorder %v959, 0.0
    %vm976 = vcmp.gt.f32.partialorder %v960, 0.0
    %vm977 = vcmp.gt.f32.partialorder %v961, 0.0
    %vm978 = vcmp.gt.f32.partialorder %v962, 0.0
    %vm979 = vcmp.gt.f32.partialorder %v963, 0.0
    %vm980 = vcmp.gt.f32.partialorder %v964, 0.0
    %vm981 = vcmp.gt.f32.partialorder %v965, 0.0
    %vm982 = vcmp.gt.f32.partialorder %v966, 0.0
    %vm983 = vcmp.gt.f32.partialorder %v967, 0.0
    %vm984 = vcmp.gt.f32.partialorder %v968, 0.0
    %vm985 = vcmp.gt.f32.partialorder %v969, 0.0
    %vm986 = vcmp.gt.f32.partialorder %v970, 0.0
    %vm987 = vcmp.gt.f32.partialorder %v971, 0.0
    %v988 = vmul.f32 %v956, 0.2
    %v989 = vmul.f32 %v957, 0.2
    %v990 = vmul.f32 %v958, 0.2
    %v991 = vmul.f32 %v959, 0.2
    %v992 = vmul.f32 %v960, 0.2
    %v993 = vmul.f32 %v961, 0.2
    %v994 = vmul.f32 %v962, 0.2
    %v995 = vmul.f32 %v963, 0.2
    %v996 = vmul.f32 %v964, 0.2
    %v997 = vmul.f32 %v965, 0.2
    %v998 = vmul.f32 %v966, 0.2
    %v999 = vmul.f32 %v967, 0.2
    %v1000 = vmul.f32 %v968, 0.2
    %v1001 = vmul.f32 %v969, 0.2
    %v1002 = vmul.f32 %v970, 0.2
    %v1003 = vmul.f32 %v971, 0.2
    %v1004 = vsel %vm972, %v956, %v988
    %v1005 = vsel %vm973, %v957, %v989
    %v1006 = vsel %vm974, %v958, %v990
    %v1007 = vsel %vm975, %v959, %v991
    %v1008 = vsel %vm976, %v960, %v992
    %v1009 = vsel %vm977, %v961, %v993
    %v1010 = vsel %vm978, %v962, %v994
    %v1011 = vsel %vm979, %v963, %v995
    %v1012 = vsel %vm980, %v964, %v996
    %v1013 = vsel %vm981, %v965, %v997
    %v1014 = vsel %vm982, %v966, %v998
    %v1015 = vsel %vm983, %v967, %v999
    %v1016 = vsel %vm984, %v968, %v1000
    %v1017 = vsel %vm985, %v969, %v1001
    %v1018 = vsel %vm986, %v970, %v1002
    %v1019 = vsel %vm987, %v971, %v1003
    %v1020 = vsel %vm400, %v1004, -1e+30
    %v1021 = vsel %vm401, %v1005, -1e+30
    %v1022 = vsel %vm402, %v1006, -1e+30
    %v1023 = vsel %vm403, %v1007, -1e+30
    %v1024 = vsel %vm404, %v1008, -1e+30
    %v1025 = vsel %vm405, %v1009, -1e+30
    %v1026 = vsel %vm406, %v1010, -1e+30
    %v1027 = vsel %vm407, %v1011, -1e+30
    %v1028 = vsel %vm408, %v1012, -1e+30
    %v1029 = vsel %vm409, %v1013, -1e+30
    %v1030 = vsel %vm410, %v1014, -1e+30
    %v1031 = vsel %vm411, %v1015, -1e+30
    %v1032 = vsel %vm412, %v1016, -1e+30
    %v1033 = vsel %vm413, %v1017, -1e+30
    %v1034 = vsel %vm414, %v1018, -1e+30
    %v1035 = vsel %vm415, %v1019, -1e+30
    %v1036 = vmax.f32 %v1020, %v1024
    %v1037 = vmax.f32 %v1021, %v1025
    %v1038 = vmax.f32 %v1022, %v1026
    %v1039 = vmax.f32 %v1023, %v1027
    %v1040 = vmax.f32 %v1036, %v1028
    %v1041 = vmax.f32 %v1037, %v1029
    %v1042 = vmax.f32 %v1038, %v1030
    %v1043 = vmax.f32 %v1039, %v1031
    %v1044 = vmax.f32 %v1040, %v1032
    %v1045 = vmax.f32 %v1041, %v1033
    %v1046 = vmax.f32 %v1042, %v1034
    %v1047 = vmax.f32 %v1043, %v1035
    %v1048 = vmax.f32 %v1044, %v1045
    %v1049 = vmax.f32 %v1046, %v1047
    %v1050 = vmax.f32 %v1048, %v1049
    %1051 = vmax.xlane.f32.xlu0 %v1050
    %v1052 = vpop.xlane.xlu0 %1051
    %v1053 = vrot.slane %v1052, 4
    %v1054 = vmax.f32 %v1052, %v1053
    %v1055 = vrot.slane %v1054, 2
    %v1056 = vmax.f32 %v1054, %v1055
    %v1057 = vrot.slane %v1056, 1
    %v1058 = vmax.f32 %v1056, %v1057
    %s1059 = vtos %v1058
    %v1060 = vsel %vm400, %v1004, 1e+30
    %v1061 = vsel %vm401, %v1005, 1e+30
    %v1062 = vsel %vm402, %v1006, 1e+30
    %v1063 = vsel %vm403, %v1007, 1e+30
    %v1064 = vsel %vm404, %v1008, 1e+30
    %v1065 = vsel %vm405, %v1009, 1e+30
    %v1066 = vsel %vm406, %v1010, 1e+30
    %v1067 = vsel %vm407, %v1011, 1e+30
    %v1068 = vsel %vm408, %v1012, 1e+30
    %v1069 = vsel %vm409, %v1013, 1e+30
    %v1070 = vsel %vm410, %v1014, 1e+30
    %v1071 = vsel %vm411, %v1015, 1e+30
    %v1072 = vsel %vm412, %v1016, 1e+30
    %v1073 = vsel %vm413, %v1017, 1e+30
    %v1074 = vsel %vm414, %v1018, 1e+30
    %v1075 = vsel %vm415, %v1019, 1e+30
    %v1076 = vmin.f32 %v1060, %v1064
    %v1077 = vmin.f32 %v1061, %v1065
    %v1078 = vmin.f32 %v1062, %v1066
    %v1079 = vmin.f32 %v1063, %v1067
    %v1080 = vmin.f32 %v1076, %v1068
    %v1081 = vmin.f32 %v1077, %v1069
    %v1082 = vmin.f32 %v1078, %v1070
    %v1083 = vmin.f32 %v1079, %v1071
    %v1084 = vmin.f32 %v1080, %v1072
    %v1085 = vmin.f32 %v1081, %v1073
    %v1086 = vmin.f32 %v1082, %v1074
    %v1087 = vmin.f32 %v1083, %v1075
    %v1088 = vmin.f32 %v1084, %v1085
    %v1089 = vmin.f32 %v1086, %v1087
    %v1090 = vmin.f32 %v1088, %v1089
    %1091 = vmin.xlane.f32.xlu0 %v1090
    %v1092 = vpop.xlane.xlu0 %1091
    %v1093 = vrot.slane %v1092, 4
    %v1094 = vmin.f32 %v1092, %v1093
    %v1095 = vrot.slane %v1094, 2
    %v1096 = vmin.f32 %v1094, %v1095
    %v1097 = vrot.slane %v1096, 1
    %v1098 = vmin.f32 %v1096, %v1097
    %s1099 = vtos %v1098
    %s1100 = ssub.f32 %s1059, %s1099
    %s1101 = smax.f32 %s1100, 1e-12
    %v1102 = vstv %s1059
    %v1103 = vsub.f32 %v1020, %v1102
    %v1104 = vsub.f32 %v1021, %v1102
    %v1105 = vsub.f32 %v1022, %v1102
    %v1106 = vsub.f32 %v1023, %v1102
    %v1107 = vsub.f32 %v1024, %v1102
    %v1108 = vsub.f32 %v1025, %v1102
    %v1109 = vsub.f32 %v1026, %v1102
    %v1110 = vsub.f32 %v1027, %v1102
    %v1111 = vsub.f32 %v1028, %v1102
    %v1112 = vsub.f32 %v1029, %v1102
    %v1113 = vsub.f32 %v1030, %v1102
    %v1114 = vsub.f32 %v1031, %v1102
    %v1115 = vsub.f32 %v1032, %v1102
    %v1116 = vsub.f32 %v1033, %v1102
    %v1117 = vsub.f32 %v1034, %v1102
    %v1118 = vsub.f32 %v1035, %v1102
    %v1119 = vmul.f32 %v1103, 3.0
    %v1120 = vmul.f32 %v1104, 3.0
    %v1121 = vmul.f32 %v1105, 3.0
    %v1122 = vmul.f32 %v1106, 3.0
    %v1123 = vmul.f32 %v1107, 3.0
    %v1124 = vmul.f32 %v1108, 3.0
    %v1125 = vmul.f32 %v1109, 3.0
    %v1126 = vmul.f32 %v1110, 3.0
    %v1127 = vmul.f32 %v1111, 3.0
    %v1128 = vmul.f32 %v1112, 3.0
    %v1129 = vmul.f32 %v1113, 3.0
    %v1130 = vmul.f32 %v1114, 3.0
    %v1131 = vmul.f32 %v1115, 3.0
    %v1132 = vmul.f32 %v1116, 3.0
    %v1133 = vmul.f32 %v1117, 3.0
    %v1134 = vmul.f32 %v1118, 3.0
    %v1135 = vstv %s1101
    %v1136 = vrcp.pop %v1135
    %v1137 = vmul.f32 %v1119, %v1136
    %v1138 = vmul.f32 %v1120, %v1136
    %v1139 = vmul.f32 %v1121, %v1136
    %v1140 = vmul.f32 %v1122, %v1136
    %v1141 = vmul.f32 %v1123, %v1136
    %v1142 = vmul.f32 %v1124, %v1136
    %v1143 = vmul.f32 %v1125, %v1136
    %v1144 = vmul.f32 %v1126, %v1136
    %v1145 = vmul.f32 %v1127, %v1136
    %v1146 = vmul.f32 %v1128, %v1136
    %v1147 = vmul.f32 %v1129, %v1136
    %v1148 = vmul.f32 %v1130, %v1136
    %v1149 = vmul.f32 %v1131, %v1136
    %v1150 = vmul.f32 %v1132, %v1136
    %v1151 = vmul.f32 %v1133, %v1136
    %v1152 = vmul.f32 %v1134, %v1136
    %v1153 = vmul.f32 %v1137, 1.442695
    %v1154 = vpow.pop %v1153
    %v1155 = vmul.f32 %v1138, 1.442695
    %v1156 = vpow.pop %v1155
    %v1157 = vmul.f32 %v1139, 1.442695
    %v1158 = vpow.pop %v1157
    %v1159 = vmul.f32 %v1140, 1.442695
    %v1160 = vpow.pop %v1159
    %v1161 = vmul.f32 %v1141, 1.442695
    %v1162 = vpow.pop %v1161
    %v1163 = vmul.f32 %v1142, 1.442695
    %v1164 = vpow.pop %v1163
    %v1165 = vmul.f32 %v1143, 1.442695
    %v1166 = vpow.pop %v1165
    %v1167 = vmul.f32 %v1144, 1.442695
    %v1168 = vpow.pop %v1167
    %v1169 = vmul.f32 %v1145, 1.442695
    %v1170 = vpow.pop %v1169
    %v1171 = vmul.f32 %v1146, 1.442695
    %v1172 = vpow.pop %v1171
    %v1173 = vmul.f32 %v1147, 1.442695
    %v1174 = vpow.pop %v1173
    %v1175 = vmul.f32 %v1148, 1.442695
    %v1176 = vpow.pop %v1175
    %v1177 = vmul.f32 %v1149, 1.442695
    %v1178 = vpow.pop %v1177
    %v1179 = vmul.f32 %v1150, 1.442695
    %v1180 = vpow.pop %v1179
    %v1181 = vmul.f32 %v1151, 1.442695
    %v1182 = vpow.pop %v1181
    %v1183 = vmul.f32 %v1152, 1.442695
    %v1184 = vpow.pop %v1183
    %v1185 = vmul.f32 %v1154, %v783
    %v1186 = vmul.f32 %v1156, %v787
    %v1187 = vmul.f32 %v1158, %v793
    %v1188 = vmul.f32 %v1160, %v797
    %v1189 = vmul.f32 %v1162, %v803
    %v1190 = vmul.f32 %v1164, %v807
    %v1191 = vmul.f32 %v1166, %v813
    %v1192 = vmul.f32 %v1168, %v817
    %v1193 = vmul.f32 %v1170, %v823
    %v1194 = vmul.f32 %v1172, %v827
    %v1195 = vmul.f32 %v1174, %v833
    %v1196 = vmul.f32 %v1176, %v837
    %v1197 = vmul.f32 %v1178, %v843
    %v1198 = vmul.f32 %v1180, %v847
    %v1199 = vmul.f32 %v1182, %v853
    %v1200 = vmul.f32 %v1184, %v857
    %v1201 = vpack.c.bf16 %v1156, %v1154
    %v1202 = vpack.c.bf16 %v1186, %v1185
    %v1203 = vpack.c.bf16 %v1160, %v1158
    %v1204 = vpack.c.bf16 %v1188, %v1187
    %v1205 = vpack.c.bf16 %v1164, %v1162
    %v1206 = vpack.c.bf16 %v1190, %v1189
    %v1207 = vpack.c.bf16 %v1168, %v1166
    %v1208 = vpack.c.bf16 %v1192, %v1191
    %v1209 = vpack.c.bf16 %v1172, %v1170
    %v1210 = vpack.c.bf16 %v1194, %v1193
    %v1211 = vpack.c.bf16 %v1176, %v1174
    %v1212 = vpack.c.bf16 %v1196, %v1195
    %v1213 = vpack.c.bf16 %v1180, %v1178
    %v1214 = vpack.c.bf16 %v1198, %v1197
    %v1215 = vpack.c.bf16 %v1184, %v1182
    %v1216 = vpack.c.bf16 %v1200, %v1199
    %1217 = vmatprep.subr.bf16.mxu0 %v1202
    %1218 = vmatpush1.bf16.msra.mxu0 %v1201
    %1219 = vmatprep.subr.bf16.mxu0 %v1204
    %1220 = vmatpush1.bf16.msra.mxu0 %v1203
    %1221 = vmatprep.subr.bf16.mxu0 %v1206
    %1222 = vmatpush1.bf16.msra.mxu0 %v1205
    %1223 = vmatprep.subr.bf16.mxu0 %v1208
    %1224 = vmatpush1.bf16.msra.mxu0 %v1207
    %1225 = vmatprep.subr.bf16.mxu0 %v1210
    %1226 = vmatpush1.bf16.msra.mxu0 %v1209
    %1227 = vmatprep.subr.bf16.mxu0 %v1212
    %1228 = vmatpush1.bf16.msra.mxu0 %v1211
    %1229 = vmatprep.subr.bf16.mxu0 %v1214
    %1230 = vmatpush1.bf16.msra.mxu0 %v1213
    %1231 = vmatprep.subr.bf16.mxu0 %v1216
    %1232 = vmatpush1.bf16.msra.mxu0 %v1215
    %1233 = vmatprep.subr.bf16.mxu0 0
    %1234 = vmatpush1.bf16.msra.mxu0 0
    %1235 = vmatprep.subr.bf16.mxu0 0
    %1236 = vmatpush1.bf16.msra.mxu0 0
    %1237 = vmatprep.subr.bf16.mxu0 0
    %1238 = vmatpush1.bf16.msra.mxu0 0
    %1239 = vmatprep.subr.bf16.mxu0 0
    %1240 = vmatpush1.bf16.msra.mxu0 0
    %1241 = vmatprep.subr.bf16.mxu0 0
    %1242 = vmatpush1.bf16.msra.mxu0 0
    %1243 = vmatprep.subr.bf16.mxu0 0
    %1244 = vmatpush1.bf16.msra.mxu0 0
    %1245 = vmatprep.subr.bf16.mxu0 0
    %1246 = vmatpush1.bf16.msra.mxu0 0
    %1247 = vmatprep.subr.bf16.mxu0 0
    %1248 = vmatpush1.bf16.msra.mxu0 0
    %1249 = vmatprep.mubr.bf16.mxu0 0
    %1250 = vmatmul.mubr.bf16.gmra.mrb[0].mxu0 %v375
    %v1251 = vpop.f32.mrb[0].mxu0
    %v1252 = vadd.f32 0.0, %v1251
    %v1253 = vpop.f32.mrb[0].mxu0
    %v1254 = vadd.f32 0.0, %v1253
    %v1255 = vpop.f32.mrb[0].mxu0
    %v1256 = vadd.f32 0.0, %v1255
    %v1257 = vpop.f32.mrb[0].mxu0
    %v1258 = vadd.f32 0.0, %v1257
    %1259 = vmatprep.mubr.bf16.mxu0 0
    %1260 = vmatmul.mubr.bf16.gmra.mrb[0].mxu0 %v376
    %v1261 = vpop.f32.mrb[0].mxu0
    %v1262 = vadd.f32 0.0, %v1261
    %v1263 = vpop.f32.mrb[0].mxu0
    %v1264 = vadd.f32 0.0, %v1263
    %v1265 = vpop.f32.mrb[0].mxu0
    %v1266 = vadd.f32 0.0, %v1265
    %v1267 = vpop.f32.mrb[0].mxu0
    %v1268 = vadd.f32 0.0, %v1267
    %1269 = vmatprep.mubr.bf16.mxu0 0
    %1270 = vmatmul.mubr.bf16.gmra.mrb[0].mxu0 %v377
    %v1271 = vpop.f32.mrb[0].mxu0
    %v1272 = vadd.f32 0.0, %v1271
    %v1273 = vpop.f32.mrb[0].mxu0
    %v1274 = vadd.f32 0.0, %v1273
    %v1275 = vpop.f32.mrb[0].mxu0
    %v1276 = vadd.f32 0.0, %v1275
    %v1277 = vpop.f32.mrb[0].mxu0
    %v1278 = vadd.f32 0.0, %v1277
    %1279 = vmatprep.mubr.bf16.mxu0 0
    %1280 = vmatmul.mubr.bf16.gmra.mrb[0].mxu0 %v378
    %v1281 = vpop.f32.mrb[0].mxu0
    %v1282 = vadd.f32 0.0, %v1281
    %v1283 = vpop.f32.mrb[0].mxu0
    %v1284 = vadd.f32 0.0, %v1283
    %v1285 = vpop.f32.mrb[0].mxu0
    %v1286 = vadd.f32 0.0, %v1285
    %v1287 = vpop.f32.mrb[0].mxu0
    %v1288 = vadd.f32 0.0, %v1287
    %1289 = vmatprep.mubr.bf16.mxu0 0
    %1290 = vmatmul.mubr.bf16.gmra.mrb[0].mxu0 %v379
    %v1291 = vpop.f32.mrb[0].mxu0
    %v1292 = vadd.f32 0.0, %v1291
    %v1293 = vpop.f32.mrb[0].mxu0
    %v1294 = vadd.f32 0.0, %v1293
    %v1295 = vpop.f32.mrb[0].mxu0
    %v1296 = vadd.f32 0.0, %v1295
    %v1297 = vpop.f32.mrb[0].mxu0
    %v1298 = vadd.f32 0.0, %v1297
    %1299 = vmatprep.mubr.bf16.mxu0 0
    %1300 = vmatmul.mubr.bf16.gmra.mrb[0].mxu0 %v380
    %v1301 = vpop.f32.mrb[0].mxu0
    %v1302 = vadd.f32 0.0, %v1301
    %v1303 = vpop.f32.mrb[0].mxu0
    %v1304 = vadd.f32 0.0, %v1303
    %v1305 = vpop.f32.mrb[0].mxu0
    %v1306 = vadd.f32 0.0, %v1305
    %v1307 = vpop.f32.mrb[0].mxu0
    %v1308 = vadd.f32 0.0, %v1307
    %1309 = vmatprep.mubr.bf16.mxu0 0
    %1310 = vmatmul.mubr.bf16.gmra.mrb[0].mxu0 %v381
    %v1311 = vpop.f32.mrb[0].mxu0
    %v1312 = vadd.f32 0.0, %v1311
    %v1313 = vpop.f32.mrb[0].mxu0
    %v1314 = vadd.f32 0.0, %v1313
    %v1315 = vpop.f32.mrb[0].mxu0
    %v1316 = vadd.f32 0.0, %v1315
    %v1317 = vpop.f32.mrb[0].mxu0
    %v1318 = vadd.f32 0.0, %v1317
    %1319 = vmatprep.mubr.bf16.mxu0 0
    %1320 = vmatmul.mubr.bf16.gmra.mrb[0].mxu0 %v382
    %v1321 = vpop.f32.mrb[0].mxu0
    %v1322 = vadd.f32 0.0, %v1321
    %v1323 = vpop.f32.mrb[0].mxu0
    %v1324 = vadd.f32 0.0, %v1323
    %v1325 = vpop.f32.mrb[0].mxu0
    %v1326 = vadd.f32 0.0, %v1325
    %v1327 = vpop.f32.mrb[0].mxu0
    %v1328 = vadd.f32 0.0, %v1327
    %1329 = vdwg.mxu0
    %v1330 = vadd.f32 %v1252, 1e-16
    %v1331 = vadd.f32 %v1256, 1e-16
    %v1332 = vadd.f32 %v1262, 1e-16
    %v1333 = vadd.f32 %v1266, 1e-16
    %v1334 = vadd.f32 %v1272, 1e-16
    %v1335 = vadd.f32 %v1276, 1e-16
    %v1336 = vadd.f32 %v1282, 1e-16
    %v1337 = vadd.f32 %v1286, 1e-16
    %v1338 = vadd.f32 %v1292, 1e-16
    %v1339 = vadd.f32 %v1296, 1e-16
    %v1340 = vadd.f32 %v1302, 1e-16
    %v1341 = vadd.f32 %v1306, 1e-16
    %v1342 = vadd.f32 %v1312, 1e-16
    %v1343 = vadd.f32 %v1316, 1e-16
    %v1344 = vadd.f32 %v1322, 1e-16
    %v1345 = vadd.f32 %v1326, 1e-16
    %v1346 = vrcp.pop %v1330
    %v1347 = vrcp.pop %v1331
    %v1348 = vrcp.pop %v1332
    %v1349 = vrcp.pop %v1333
    %v1350 = vrcp.pop %v1334
    %v1351 = vrcp.pop %v1335
    %v1352 = vrcp.pop %v1336
    %v1353 = vrcp.pop %v1337
    %v1354 = vrcp.pop %v1338
    %v1355 = vrcp.pop %v1339
    %v1356 = vrcp.pop %v1340
    %v1357 = vrcp.pop %v1341
    %v1358 = vrcp.pop %v1342
    %v1359 = vrcp.pop %v1343
    %v1360 = vrcp.pop %v1344
    %v1361 = vrcp.pop %v1345
    %v1362 = vmul.f32 %v1254, %v1346
    %v1363 = vmul.f32 %v1258, %v1347
    %v1364 = vmul.f32 %v1264, %v1348
    %v1365 = vmul.f32 %v1268, %v1349
    %v1366 = vmul.f32 %v1274, %v1350
    %v1367 = vmul.f32 %v1278, %v1351
    %v1368 = vmul.f32 %v1284, %v1352
    %v1369 = vmul.f32 %v1288, %v1353
    %v1370 = vmul.f32 %v1294, %v1354
    %v1371 = vmul.f32 %v1298, %v1355
    %v1372 = vmul.f32 %v1304, %v1356
    %v1373 = vmul.f32 %v1308, %v1357
    %v1374 = vmul.f32 %v1314, %v1358
    %v1375 = vmul.f32 %v1318, %v1359
    %v1376 = vmul.f32 %v1324, %v1360
    %v1377 = vmul.f32 %v1328, %v1361
    %v1378 = vld [vmem:[%s3] sm:$0x1]
    %v1380 = vlaneseq
    %v1381 = vshrl.u32 %v1380, 7
    %v1382 = vsub.s32 0, %v1381
    %v1383 = vrot.slane %v1378, %v1382
    %v1385 = vadd.f32 %v1362, %v1383
    %v1386 = vadd.f32 %v1363, %v1383
    %v1387 = vadd.f32 %v1364, %v1383
    %v1388 = vadd.f32 %v1365, %v1383
    %v1389 = vadd.f32 %v1366, %v1383
    %v1390 = vadd.f32 %v1367, %v1383
    %v1391 = vadd.f32 %v1368, %v1383
    %v1392 = vadd.f32 %v1369, %v1383
    %v1393 = vadd.f32 %v1370, %v1383
    %v1394 = vadd.f32 %v1371, %v1383
    %v1395 = vadd.f32 %v1372, %v1383
    %v1396 = vadd.f32 %v1373, %v1383
    %v1397 = vadd.f32 %v1374, %v1383
    %v1398 = vadd.f32 %v1375, %v1383
    %v1399 = vadd.f32 %v1376, %v1383
    %v1400 = vadd.f32 %v1377, %v1383
    %vm1401 = vcmp.gt.f32.partialorder %v1385, 0.0
    %vm1402 = vcmp.gt.f32.partialorder %v1386, 0.0
    %vm1403 = vcmp.gt.f32.partialorder %v1387, 0.0
    %vm1404 = vcmp.gt.f32.partialorder %v1388, 0.0
    %vm1405 = vcmp.gt.f32.partialorder %v1389, 0.0
    %vm1406 = vcmp.gt.f32.partialorder %v1390, 0.0
    %vm1407 = vcmp.gt.f32.partialorder %v1391, 0.0
    %vm1408 = vcmp.gt.f32.partialorder %v1392, 0.0
    %vm1409 = vcmp.gt.f32.partialorder %v1393, 0.0
    %vm1410 = vcmp.gt.f32.partialorder %v1394, 0.0
    %vm1411 = vcmp.gt.f32.partialorder %v1395, 0.0
    %vm1412 = vcmp.gt.f32.partialorder %v1396, 0.0
    %vm1413 = vcmp.gt.f32.partialorder %v1397, 0.0
    %vm1414 = vcmp.gt.f32.partialorder %v1398, 0.0
    %vm1415 = vcmp.gt.f32.partialorder %v1399, 0.0
    %vm1416 = vcmp.gt.f32.partialorder %v1400, 0.0
    %v1417 = vmul.f32 %v1385, 1.442695
    %v1418 = vpow.pop %v1417
    %v1419 = vmul.f32 %v1386, 1.442695
    %v1420 = vpow.pop %v1419
    %v1421 = vmul.f32 %v1387, 1.442695
    %v1422 = vpow.pop %v1421
    %v1423 = vmul.f32 %v1388, 1.442695
    %v1424 = vpow.pop %v1423
    %v1425 = vmul.f32 %v1389, 1.442695
    %v1426 = vpow.pop %v1425
    %v1427 = vmul.f32 %v1390, 1.442695
    %v1428 = vpow.pop %v1427
    %v1429 = vmul.f32 %v1391, 1.442695
    %v1430 = vpow.pop %v1429
    %v1431 = vmul.f32 %v1392, 1.442695
    %v1432 = vpow.pop %v1431
    %v1433 = vmul.f32 %v1393, 1.442695
    %v1434 = vpow.pop %v1433
    %v1435 = vmul.f32 %v1394, 1.442695
    %v1436 = vpow.pop %v1435
    %v1437 = vmul.f32 %v1395, 1.442695
    %v1438 = vpow.pop %v1437
    %v1439 = vmul.f32 %v1396, 1.442695
    %v1440 = vpow.pop %v1439
    %v1441 = vmul.f32 %v1397, 1.442695
    %v1442 = vpow.pop %v1441
    %v1443 = vmul.f32 %v1398, 1.442695
    %v1444 = vpow.pop %v1443
    %v1445 = vmul.f32 %v1399, 1.442695
    %v1446 = vpow.pop %v1445
    %v1447 = vmul.f32 %v1400, 1.442695
    %v1448 = vpow.pop %v1447
    %v1449 = vsub.f32 %v1418, 1.0
    %v1450 = vsub.f32 %v1420, 1.0
    %v1451 = vsub.f32 %v1422, 1.0
    %v1452 = vsub.f32 %v1424, 1.0
    %v1453 = vsub.f32 %v1426, 1.0
    %v1454 = vsub.f32 %v1428, 1.0
    %v1455 = vsub.f32 %v1430, 1.0
    %v1456 = vsub.f32 %v1432, 1.0
    %v1457 = vsub.f32 %v1434, 1.0
    %v1458 = vsub.f32 %v1436, 1.0
    %v1459 = vsub.f32 %v1438, 1.0
    %v1460 = vsub.f32 %v1440, 1.0
    %v1461 = vsub.f32 %v1442, 1.0
    %v1462 = vsub.f32 %v1444, 1.0
    %v1463 = vsub.f32 %v1446, 1.0
    %v1464 = vsub.f32 %v1448, 1.0
    %v1465 = vsel %vm1401, %v1385, %v1449
    %v1466 = vsel %vm1402, %v1386, %v1450
    %v1467 = vsel %vm1403, %v1387, %v1451
    %v1468 = vsel %vm1404, %v1388, %v1452
    %v1469 = vsel %vm1405, %v1389, %v1453
    %v1470 = vsel %vm1406, %v1390, %v1454
    %v1471 = vsel %vm1407, %v1391, %v1455
    %v1472 = vsel %vm1408, %v1392, %v1456
    %v1473 = vsel %vm1409, %v1393, %v1457
    %v1474 = vsel %vm1410, %v1394, %v1458
    %v1475 = vsel %vm1411, %v1395, %v1459
    %v1476 = vsel %vm1412, %v1396, %v1460
    %v1477 = vsel %vm1413, %v1397, %v1461
    %v1478 = vsel %vm1414, %v1398, %v1462
    %v1479 = vsel %vm1415, %v1399, %v1463
    %v1480 = vsel %vm1416, %v1400, %v1464
    %v1481 = vpack.c.bf16 %v1466, %v1465
    %v1482 = vpack.c.bf16 %v1468, %v1467
    %v1483 = vpack.c.bf16 %v1470, %v1469
    %v1484 = vpack.c.bf16 %v1472, %v1471
    %v1485 = vpack.c.bf16 %v1474, %v1473
    %v1486 = vpack.c.bf16 %v1476, %v1475
    %v1487 = vpack.c.bf16 %v1478, %v1477
    %v1488 = vpack.c.bf16 %v1480, %v1479
    %v1489 = vld [vmem:[#allocation7] sm:$0xff]
    %v1490 = vld [vmem:[#allocation7 + $0x8] sm:$0xff]
    %v1491 = vld [vmem:[#allocation7 + $0x10] sm:$0xff]
    %v1492 = vld [vmem:[#allocation7 + $0x18] sm:$0xff]
    %v1493 = vld [vmem:[#allocation7 + $0x20] sm:$0xff]
    %v1494 = vld [vmem:[#allocation7 + $0x28] sm:$0xff]
    %v1495 = vld [vmem:[#allocation7 + $0x30] sm:$0xff]
    %v1496 = vld [vmem:[#allocation7 + $0x38] sm:$0xff]
    %v1497 = vld [vmem:[#allocation7 + $0x40] sm:$0xff]
    %v1498 = vld [vmem:[#allocation7 + $0x48] sm:$0xff]
    %v1499 = vld [vmem:[#allocation7 + $0x50] sm:$0xff]
    %v1500 = vld [vmem:[#allocation7 + $0x58] sm:$0xff]
    %v1501 = vld [vmem:[#allocation7 + $0x60] sm:$0xff]
    %v1502 = vld [vmem:[#allocation7 + $0x68] sm:$0xff]
    %v1503 = vld [vmem:[#allocation7 + $0x70] sm:$0xff]
    %v1504 = vld [vmem:[#allocation7 + $0x78] sm:$0xff]
    %v1505 = vpack.c.bf16 %v1490, %v1489
    %v1506 = vpack.c.bf16 %v1492, %v1491
    %v1507 = vpack.c.bf16 %v1494, %v1493
    %v1508 = vpack.c.bf16 %v1496, %v1495
    %v1509 = vpack.c.bf16 %v1498, %v1497
    %v1510 = vpack.c.bf16 %v1500, %v1499
    %v1511 = vpack.c.bf16 %v1502, %v1501
    %v1512 = vpack.c.bf16 %v1504, %v1503
    %1513 = vmatprep.subr.bf16.mxu0 0
    %1514 = vmatpush1.bf16.msra.mxu0 %v1505
    %1515 = vmatprep.subr.bf16.mxu0 0
    %1516 = vmatpush1.bf16.msra.mxu0 %v1506
    %1517 = vmatprep.subr.bf16.mxu0 0
    %1518 = vmatpush1.bf16.msra.mxu0 %v1507
    %1519 = vmatprep.subr.bf16.mxu0 0
    %1520 = vmatpush1.bf16.msra.mxu0 %v1508
    %1521 = vmatprep.subr.bf16.mxu0 0
    %1522 = vmatpush1.bf16.msra.mxu0 %v1509
    %1523 = vmatprep.subr.bf16.mxu0 0
    %1524 = vmatpush1.bf16.msra.mxu0 %v1510
    %1525 = vmatprep.subr.bf16.mxu0 0
    %1526 = vmatpush1.bf16.msra.mxu0 %v1511
    %1527 = vmatprep.subr.bf16.mxu0 0
    %1528 = vmatpush1.bf16.msra.mxu0 %v1512
    %1529 = vmatprep.subr.bf16.mxu0 0
    %1530 = vmatpush1.bf16.msra.mxu0 0
    %1531 = vmatprep.subr.bf16.mxu0 0
    %1532 = vmatpush1.bf16.msra.mxu0 0
    %1533 = vmatprep.subr.bf16.mxu0 0
    %1534 = vmatpush1.bf16.msra.mxu0 0
    %1535 = vmatprep.subr.bf16.mxu0 0
    %1536 = vmatpush1.bf16.msra.mxu0 0
    %1537 = vmatprep.subr.bf16.mxu0 0
    %1538 = vmatpush1.bf16.msra.mxu0 0
    %1539 = vmatprep.subr.bf16.mxu0 0
    %1540 = vmatpush1.bf16.msra.mxu0 0
    %1541 = vmatprep.subr.bf16.mxu0 0
    %1542 = vmatpush1.bf16.msra.mxu0 0
    %1543 = vmatprep.subr.bf16.mxu0 0
    %1544 = vmatpush1.bf16.msra.mxu0 0
    %1545 = vmatprep.mubr.bf16.mxu0 0
    %1546 = vmatmul.mubr.bf16.gmra.mrb[0].mxu0 %v1481
    %v1547 = vpop.f32.mrb[0].mxu0
    %v1548 = vadd.f32 0.0, %v1547
    %v1549 = vpop.f32.mrb[0].mxu0
    %v1550 = vpop.f32.mrb[0].mxu0
    %v1551 = vadd.f32 0.0, %v1550
    %v1552 = vpop.f32.mrb[0].mxu0
    %1553 = vmatprep.mubr.bf16.mxu0 0
    %1554 = vmatmul.mubr.bf16.gmra.mrb[0].mxu0 %v1482
    %v1555 = vpop.f32.mrb[0].mxu0
    %v1556 = vadd.f32 0.0, %v1555
    %v1557 = vpop.f32.mrb[0].mxu0
    %v1558 = vpop.f32.mrb[0].mxu0
    %v1559 = vadd.f32 0.0, %v1558
    %v1560 = vpop.f32.mrb[0].mxu0
    %1561 = vmatprep.mubr.bf16.mxu0 0
    %1562 = vmatmul.mubr.bf16.gmra.mrb[0].mxu0 %v1483
    %v1563 = vpop.f32.mrb[0].mxu0
    %v1564 = vadd.f32 0.0, %v1563
    %v1565 = vpop.f32.mrb[0].mxu0
    %v1566 = vpop.f32.mrb[0].mxu0
    %v1567 = vadd.f32 0.0, %v1566
    %v1568 = vpop.f32.mrb[0].mxu0
    %1569 = vmatprep.mubr.bf16.mxu0 0
    %1570 = vmatmul.mubr.bf16.gmra.mrb[0].mxu0 %v1484
    %v1571 = vpop.f32.mrb[0].mxu0
    %v1572 = vadd.f32 0.0, %v1571
    %v1573 = vpop.f32.mrb[0].mxu0
    %v1574 = vpop.f32.mrb[0].mxu0
    %v1575 = vadd.f32 0.0, %v1574
    %v1576 = vpop.f32.mrb[0].mxu0
    %1577 = vmatprep.mubr.bf16.mxu0 0
    %1578 = vmatmul.mubr.bf16.gmra.mrb[0].mxu0 %v1485
    %v1579 = vpop.f32.mrb[0].mxu0
    %v1580 = vadd.f32 0.0, %v1579
    %v1581 = vpop.f32.mrb[0].mxu0
    %v1582 = vpop.f32.mrb[0].mxu0
    %v1583 = vadd.f32 0.0, %v1582
    %v1584 = vpop.f32.mrb[0].mxu0
    %1585 = vmatprep.mubr.bf16.mxu0 0
    %1586 = vmatmul.mubr.bf16.gmra.mrb[0].mxu0 %v1486
    %v1587 = vpop.f32.mrb[0].mxu0
    %v1588 = vadd.f32 0.0, %v1587
    %v1589 = vpop.f32.mrb[0].mxu0
    %v1590 = vpop.f32.mrb[0].mxu0
    %v1591 = vadd.f32 0.0, %v1590
    %v1592 = vpop.f32.mrb[0].mxu0
    %1593 = vmatprep.mubr.bf16.mxu0 0
    %1594 = vmatmul.mubr.bf16.gmra.mrb[0].mxu0 %v1487
    %v1595 = vpop.f32.mrb[0].mxu0
    %v1596 = vadd.f32 0.0, %v1595
    %v1597 = vpop.f32.mrb[0].mxu0
    %v1598 = vpop.f32.mrb[0].mxu0
    %v1599 = vadd.f32 0.0, %v1598
    %v1600 = vpop.f32.mrb[0].mxu0
    %1601 = vmatprep.mubr.bf16.mxu0 0
    %1602 = vmatmul.mubr.bf16.gmra.mrb[0].mxu0 %v1488
    %v1603 = vpop.f32.mrb[0].mxu0
    %v1604 = vadd.f32 0.0, %v1603
    %v1605 = vpop.f32.mrb[0].mxu0
    %v1606 = vpop.f32.mrb[0].mxu0
    %v1607 = vadd.f32 0.0, %v1606
    %v1608 = vpop.f32.mrb[0].mxu0
    %1609 = vdwg.mxu0
    %v1610 = vpack.c.bf16 %v1551, %v1548
    %v1611 = vpack.c.bf16 %v1559, %v1556
    %v1612 = vpack.c.bf16 %v1567, %v1564
    %v1613 = vpack.c.bf16 %v1575, %v1572
    %v1614 = vpack.c.bf16 %v1583, %v1580
    %v1615 = vpack.c.bf16 %v1591, %v1588
    %v1616 = vpack.c.bf16 %v1599, %v1596
    %v1617 = vpack.c.bf16 %v1607, %v1604
    %v1618 = vld [vmem:[#allocation8] sm:$0xff]
    %v1619 = vld [vmem:[#allocation8 + $0x8] sm:$0xff]
    %v1620 = vld [vmem:[#allocation8 + $0x10] sm:$0xff]
    %v1621 = vld [vmem:[#allocation8 + $0x18] sm:$0xff]
    %v1622 = vld [vmem:[#allocation8 + $0x20] sm:$0xff]
    %v1623 = vld [vmem:[#allocation8 + $0x28] sm:$0xff]
    %v1624 = vld [vmem:[#allocation8 + $0x30] sm:$0xff]
    %v1625 = vld [vmem:[#allocation8 + $0x38] sm:$0xff]
    %v1626 = vld [vmem:[#allocation8 + $0x40] sm:$0xff]
    %v1627 = vld [vmem:[#allocation8 + $0x48] sm:$0xff]
    %v1628 = vld [vmem:[#allocation8 + $0x50] sm:$0xff]
    %v1629 = vld [vmem:[#allocation8 + $0x58] sm:$0xff]
    %v1630 = vld [vmem:[#allocation8 + $0x60] sm:$0xff]
    %v1631 = vld [vmem:[#allocation8 + $0x68] sm:$0xff]
    %v1632 = vld [vmem:[#allocation8 + $0x70] sm:$0xff]
    %v1633 = vld [vmem:[#allocation8 + $0x78] sm:$0xff]
    %v1634 = vld [vmem:[#allocation8 + $0x80] sm:$0xff]
    %v1635 = vld [vmem:[#allocation8 + $0x88] sm:$0xff]
    %v1636 = vld [vmem:[#allocation8 + $0x90] sm:$0xff]
    %v1637 = vld [vmem:[#allocation8 + $0x98] sm:$0xff]
    %v1638 = vld [vmem:[#allocation8 + $0xa0] sm:$0xff]
    %v1639 = vld [vmem:[#allocation8 + $0xa8] sm:$0xff]
    %v1640 = vld [vmem:[#allocation8 + $0xb0] sm:$0xff]
    %v1641 = vld [vmem:[#allocation8 + $0xb8] sm:$0xff]
    %v1642 = vld [vmem:[#allocation8 + $0xc0] sm:$0xff]
    %v1643 = vld [vmem:[#allocation8 + $0xc8] sm:$0xff]
    %v1644 = vld [vmem:[#allocation8 + $0xd0] sm:$0xff]
    %v1645 = vld [vmem:[#allocation8 + $0xd8] sm:$0xff]
    %v1646 = vld [vmem:[#allocation8 + $0xe0] sm:$0xff]
    %v1647 = vld [vmem:[#allocation8 + $0xe8] sm:$0xff]
    %v1648 = vld [vmem:[#allocation8 + $0xf0] sm:$0xff]
    %v1649 = vld [vmem:[#allocation8 + $0xf8] sm:$0xff]
    %v1650 = vpack.c.bf16 %v1620, %v1618
    %v1651 = vpack.c.bf16 %v1621, %v1619
    %v1652 = vpack.c.bf16 %v1624, %v1622
    %v1653 = vpack.c.bf16 %v1625, %v1623
    %v1654 = vpack.c.bf16 %v1628, %v1626
    %v1655 = vpack.c.bf16 %v1629, %v1627
    %v1656 = vpack.c.bf16 %v1632, %v1630
    %v1657 = vpack.c.bf16 %v1633, %v1631
    %v1658 = vpack.c.bf16 %v1636, %v1634
    %v1659 = vpack.c.bf16 %v1637, %v1635
    %v1660 = vpack.c.bf16 %v1640, %v1638
    %v1661 = vpack.c.bf16 %v1641, %v1639
    %v1662 = vpack.c.bf16 %v1644, %v1642
    %v1663 = vpack.c.bf16 %v1645, %v1643
    %v1664 = vpack.c.bf16 %v1648, %v1646
    %v1665 = vpack.c.bf16 %v1649, %v1647
    %1666 = vmatprep.subr.bf16.mxu0 %v1651
    %1667 = vmatpush1.bf16.msra.mxu0 %v1650
    %1668 = vmatprep.subr.bf16.mxu0 %v1653
    %1669 = vmatpush1.bf16.msra.mxu0 %v1652
    %1670 = vmatprep.subr.bf16.mxu0 %v1655
    %1671 = vmatpush1.bf16.msra.mxu0 %v1654
    %1672 = vmatprep.subr.bf16.mxu0 %v1657
    %1673 = vmatpush1.bf16.msra.mxu0 %v1656
    %1674 = vmatprep.subr.bf16.mxu0 %v1659
    %1675 = vmatpush1.bf16.msra.mxu0 %v1658
    %1676 = vmatprep.subr.bf16.mxu0 %v1661
    %1677 = vmatpush1.bf16.msra.mxu0 %v1660
    %1678 = vmatprep.subr.bf16.mxu0 %v1663
    %1679 = vmatpush1.bf16.msra.mxu0 %v1662
    %1680 = vmatprep.subr.bf16.mxu0 %v1665
    %1681 = vmatpush1.bf16.msra.mxu0 %v1664
    %1682 = vmatprep.subr.bf16.mxu0 0
    %1683 = vmatpush1.bf16.msra.mxu0 0
    %1684 = vmatprep.subr.bf16.mxu0 0
    %1685 = vmatpush1.bf16.msra.mxu0 0
    %1686 = vmatprep.subr.bf16.mxu0 0
    %1687 = vmatpush1.bf16.msra.mxu0 0
    %1688 = vmatprep.subr.bf16.mxu0 0
    %1689 = vmatpush1.bf16.msra.mxu0 0
    %1690 = vmatprep.subr.bf16.mxu0 0
    %1691 = vmatpush1.bf16.msra.mxu0 0
    %1692 = vmatprep.subr.bf16.mxu0 0
    %1693 = vmatpush1.bf16.msra.mxu0 0
    %1694 = vmatprep.subr.bf16.mxu0 0
    %1695 = vmatpush1.bf16.msra.mxu0 0
    %1696 = vmatprep.subr.bf16.mxu0 0
    %1697 = vmatpush1.bf16.msra.mxu0 0
    %1698 = vmatprep.mubr.bf16.mxu0 0
    %1699 = vmatmul.mubr.bf16.gmra.mrb[0].mxu0 %v1610
    %v1700 = vpop.f32.mrb[0].mxu0
    %v1701 = vadd.f32 0.0, %v1700
    %v1702 = vpop.f32.mrb[0].mxu0
    %v1703 = vadd.f32 0.0, %v1702
    %v1704 = vpop.f32.mrb[0].mxu0
    %v1705 = vadd.f32 0.0, %v1704
    %v1706 = vpop.f32.mrb[0].mxu0
    %v1707 = vadd.f32 0.0, %v1706
    %1708 = vmatprep.mubr.bf16.mxu0 0
    %1709 = vmatmul.mubr.bf16.gmra.mrb[0].mxu0 %v1611
    %v1710 = vpop.f32.mrb[0].mxu0
    %v1711 = vadd.f32 0.0, %v1710
    %v1712 = vpop.f32.mrb[0].mxu0
    %v1713 = vadd.f32 0.0, %v1712
    %v1714 = vpop.f32.mrb[0].mxu0
    %v1715 = vadd.f32 0.0, %v1714
    %v1716 = vpop.f32.mrb[0].mxu0
    %v1717 = vadd.f32 0.0, %v1716
    %1718 = vmatprep.mubr.bf16.mxu0 0
    %1719 = vmatmul.mubr.bf16.gmra.mrb[0].mxu0 %v1612
    %v1720 = vpop.f32.mrb[0].mxu0
    %v1721 = vadd.f32 0.0, %v1720
    %v1722 = vpop.f32.mrb[0].mxu0
    %v1723 = vadd.f32 0.0, %v1722
    %v1724 = vpop.f32.mrb[0].mxu0
    %v1725 = vadd.f32 0.0, %v1724
    %v1726 = vpop.f32.mrb[0].mxu0
    %v1727 = vadd.f32 0.0, %v1726
    %1728 = vmatprep.mubr.bf16.mxu0 0
    %1729 = vmatmul.mubr.bf16.gmra.mrb[0].mxu0 %v1613
    %v1730 = vpop.f32.mrb[0].mxu0
    %v1731 = vadd.f32 0.0, %v1730
    %v1732 = vpop.f32.mrb[0].mxu0
    %v1733 = vadd.f32 0.0, %v1732
    %v1734 = vpop.f32.mrb[0].mxu0
    %v1735 = vadd.f32 0.0, %v1734
    %v1736 = vpop.f32.mrb[0].mxu0
    %v1737 = vadd.f32 0.0, %v1736
    %1738 = vmatprep.mubr.bf16.mxu0 0
    %1739 = vmatmul.mubr.bf16.gmra.mrb[0].mxu0 %v1614
    %v1740 = vpop.f32.mrb[0].mxu0
    %v1741 = vadd.f32 0.0, %v1740
    %v1742 = vpop.f32.mrb[0].mxu0
    %v1743 = vadd.f32 0.0, %v1742
    %v1744 = vpop.f32.mrb[0].mxu0
    %v1745 = vadd.f32 0.0, %v1744
    %v1746 = vpop.f32.mrb[0].mxu0
    %v1747 = vadd.f32 0.0, %v1746
    %1748 = vmatprep.mubr.bf16.mxu0 0
    %1749 = vmatmul.mubr.bf16.gmra.mrb[0].mxu0 %v1615
    %v1750 = vpop.f32.mrb[0].mxu0
    %v1751 = vadd.f32 0.0, %v1750
    %v1752 = vpop.f32.mrb[0].mxu0
    %v1753 = vadd.f32 0.0, %v1752
    %v1754 = vpop.f32.mrb[0].mxu0
    %v1755 = vadd.f32 0.0, %v1754
    %v1756 = vpop.f32.mrb[0].mxu0
    %v1757 = vadd.f32 0.0, %v1756
    %1758 = vmatprep.mubr.bf16.mxu0 0
    %1759 = vmatmul.mubr.bf16.gmra.mrb[0].mxu0 %v1616
    %v1760 = vpop.f32.mrb[0].mxu0
    %v1761 = vadd.f32 0.0, %v1760
    %v1762 = vpop.f32.mrb[0].mxu0
    %v1763 = vadd.f32 0.0, %v1762
    %v1764 = vpop.f32.mrb[0].mxu0
    %v1765 = vadd.f32 0.0, %v1764
    %v1766 = vpop.f32.mrb[0].mxu0
    %v1767 = vadd.f32 0.0, %v1766
    %1768 = vmatprep.mubr.bf16.mxu0 0
    %1769 = vmatmul.mubr.bf16.gmra.mrb[0].mxu0 %v1617
    %v1770 = vpop.f32.mrb[0].mxu0
    %v1771 = vadd.f32 0.0, %v1770
    %v1772 = vpop.f32.mrb[0].mxu0
    %v1773 = vadd.f32 0.0, %v1772
    %v1774 = vpop.f32.mrb[0].mxu0
    %v1775 = vadd.f32 0.0, %v1774
    %v1776 = vpop.f32.mrb[0].mxu0
    %v1777 = vadd.f32 0.0, %v1776
    %1778 = vdwg.mxu0
    %v1779 = vpack.c.bf16 %v1705, %v1701
    %v1780 = vpack.c.bf16 %v1707, %v1703
    %v1781 = vpack.c.bf16 %v1715, %v1711
    %v1782 = vpack.c.bf16 %v1717, %v1713
    %v1783 = vpack.c.bf16 %v1725, %v1721
    %v1784 = vpack.c.bf16 %v1727, %v1723
    %v1785 = vpack.c.bf16 %v1735, %v1731
    %v1786 = vpack.c.bf16 %v1737, %v1733
    %v1787 = vpack.c.bf16 %v1745, %v1741
    %v1788 = vpack.c.bf16 %v1747, %v1743
    %v1789 = vpack.c.bf16 %v1755, %v1751
    %v1790 = vpack.c.bf16 %v1757, %v1753
    %v1791 = vpack.c.bf16 %v1765, %v1761
    %v1792 = vpack.c.bf16 %v1767, %v1763
    %v1793 = vpack.c.bf16 %v1775, %v1771
    %v1794 = vpack.c.bf16 %v1777, %v1773
    %1795 = vmatprep.subr.bf16.mxu0 %v1610
    %1796 = vmatpush1.bf16.msra.mxu0 %v1779
    %1797 = vmatprep.subr.bf16.mxu0 %v1611
    %1798 = vmatpush1.bf16.msra.mxu0 %v1781
    %1799 = vmatprep.subr.bf16.mxu0 %v1612
    %1800 = vmatpush1.bf16.msra.mxu0 %v1783
    %1801 = vmatprep.subr.bf16.mxu0 %v1613
    %1802 = vmatpush1.bf16.msra.mxu0 %v1785
    %1803 = vmatprep.subr.bf16.mxu0 %v1614
    %1804 = vmatpush1.bf16.msra.mxu0 %v1787
    %1805 = vmatprep.subr.bf16.mxu0 %v1615
    %1806 = vmatpush1.bf16.msra.mxu0 %v1789
    %1807 = vmatprep.subr.bf16.mxu0 %v1616
    %1808 = vmatpush1.bf16.msra.mxu0 %v1791
    %1809 = vmatprep.subr.bf16.mxu0 %v1617
    %1810 = vmatpush1.bf16.msra.mxu0 %v1793
    %1811 = vmatprep.subr.bf16.mxu0 0
    %1812 = vmatpush1.bf16.msra.mxu0 0
    %1813 = vmatprep.subr.bf16.mxu0 0
    %1814 = vmatpush1.bf16.msra.mxu0 0
    %1815 = vmatprep.subr.bf16.mxu0 0
    %1816 = vmatpush1.bf16.msra.mxu0 0
    %1817 = vmatprep.subr.bf16.mxu0 0
    %1818 = vmatpush1.bf16.msra.mxu0 0
    %1819 = vmatprep.subr.bf16.mxu0 0
    %1820 = vmatpush1.bf16.msra.mxu0 0
    %1821 = vmatprep.subr.bf16.mxu0 0
    %1822 = vmatpush1.bf16.msra.mxu0 0
    %1823 = vmatprep.subr.bf16.mxu0 0
    %1824 = vmatpush1.bf16.msra.mxu0 0
    %1825 = vmatprep.subr.bf16.mxu0 0
    %1826 = vmatpush1.bf16.msra.mxu0 0
    %1827 = vmatprep.mubr.bf16.mxu0 0
    %1828 = vmatmul.mubr.bf16.gmra.mrb[0].mxu0 %v209
    %v1829 = vpop.f32.mrb[0].mxu0
    %v1830 = vadd.f32 0.0, %v1829
    %v1831 = vpop.f32.mrb[0].mxu0
    %v1832 = vadd.f32 0.0, %v1831
    %v1833 = vpop.f32.mrb[0].mxu0
    %v1834 = vadd.f32 0.0, %v1833
    %v1835 = vpop.f32.mrb[0].mxu0
    %v1836 = vadd.f32 0.0, %v1835
    %1837 = vmatprep.mubr.bf16.mxu0 0
    %1838 = vmatmul.mubr.bf16.gmra.mrb[0].mxu0 %v210
    %v1839 = vpop.f32.mrb[0].mxu0
    %v1840 = vadd.f32 0.0, %v1839
    %v1841 = vpop.f32.mrb[0].mxu0
    %v1842 = vadd.f32 0.0, %v1841
    %v1843 = vpop.f32.mrb[0].mxu0
    %v1844 = vadd.f32 0.0, %v1843
    %v1845 = vpop.f32.mrb[0].mxu0
    %v1846 = vadd.f32 0.0, %v1845
    %1847 = vmatprep.mubr.bf16.mxu0 0
    %1848 = vmatmul.mubr.bf16.gmra.mrb[0].mxu0 %v211
    %v1849 = vpop.f32.mrb[0].mxu0
    %v1850 = vadd.f32 0.0, %v1849
    %v1851 = vpop.f32.mrb[0].mxu0
    %v1852 = vadd.f32 0.0, %v1851
    %v1853 = vpop.f32.mrb[0].mxu0
    %v1854 = vadd.f32 0.0, %v1853
    %v1855 = vpop.f32.mrb[0].mxu0
    %v1856 = vadd.f32 0.0, %v1855
    %1857 = vmatprep.mubr.bf16.mxu0 0
    %1858 = vmatmul.mubr.bf16.gmra.mrb[0].mxu0 %v212
    %v1859 = vpop.f32.mrb[0].mxu0
    %v1860 = vadd.f32 0.0, %v1859
    %v1861 = vpop.f32.mrb[0].mxu0
    %v1862 = vadd.f32 0.0, %v1861
    %v1863 = vpop.f32.mrb[0].mxu0
    %v1864 = vadd.f32 0.0, %v1863
    %v1865 = vpop.f32.mrb[0].mxu0
    %v1866 = vadd.f32 0.0, %v1865
    %1867 = vmatprep.mubr.bf16.mxu0 0
    %1868 = vmatmul.mubr.bf16.gmra.mrb[0].mxu0 %v213
    %v1869 = vpop.f32.mrb[0].mxu0
    %v1870 = vadd.f32 0.0, %v1869
    %v1871 = vpop.f32.mrb[0].mxu0
    %v1872 = vadd.f32 0.0, %v1871
    %v1873 = vpop.f32.mrb[0].mxu0
    %v1874 = vadd.f32 0.0, %v1873
    %v1875 = vpop.f32.mrb[0].mxu0
    %v1876 = vadd.f32 0.0, %v1875
    %1877 = vmatprep.mubr.bf16.mxu0 0
    %1878 = vmatmul.mubr.bf16.gmra.mrb[0].mxu0 %v214
    %v1879 = vpop.f32.mrb[0].mxu0
    %v1880 = vadd.f32 0.0, %v1879
    %v1881 = vpop.f32.mrb[0].mxu0
    %v1882 = vadd.f32 0.0, %v1881
    %v1883 = vpop.f32.mrb[0].mxu0
    %v1884 = vadd.f32 0.0, %v1883
    %v1885 = vpop.f32.mrb[0].mxu0
    %v1886 = vadd.f32 0.0, %v1885
    %1887 = vmatprep.mubr.bf16.mxu0 0
    %1888 = vmatmul.mubr.bf16.gmra.mrb[0].mxu0 %v215
    %v1889 = vpop.f32.mrb[0].mxu0
    %v1890 = vadd.f32 0.0, %v1889
    %v1891 = vpop.f32.mrb[0].mxu0
    %v1892 = vadd.f32 0.0, %v1891
    %v1893 = vpop.f32.mrb[0].mxu0
    %v1894 = vadd.f32 0.0, %v1893
    %v1895 = vpop.f32.mrb[0].mxu0
    %v1896 = vadd.f32 0.0, %v1895
    %1897 = vmatprep.mubr.bf16.mxu0 0
    %1898 = vmatmul.mubr.bf16.gmra.mrb[0].mxu0 %v216
    %v1899 = vpop.f32.mrb[0].mxu0
    %v1900 = vadd.f32 0.0, %v1899
    %v1901 = vpop.f32.mrb[0].mxu0
    %v1902 = vadd.f32 0.0, %v1901
    %v1903 = vpop.f32.mrb[0].mxu0
    %v1904 = vadd.f32 0.0, %v1903
    %v1905 = vpop.f32.mrb[0].mxu0
    %v1906 = vadd.f32 0.0, %v1905
    %1907 = vdwg.mxu0
    %1908 = vmatprep.subr.bf16.mxu0 0
    %1909 = vmatpush1.bf16.msra.mxu0 %v1780
    %1910 = vmatprep.subr.bf16.mxu0 0
    %1911 = vmatpush1.bf16.msra.mxu0 %v1782
    %1912 = vmatprep.subr.bf16.mxu0 0
    %1913 = vmatpush1.bf16.msra.mxu0 %v1784
    %1914 = vmatprep.subr.bf16.mxu0 0
    %1915 = vmatpush1.bf16.msra.mxu0 %v1786
    %1916 = vmatprep.subr.bf16.mxu0 0
    %1917 = vmatpush1.bf16.msra.mxu0 %v1788
    %1918 = vmatprep.subr.bf16.mxu0 0
    %1919 = vmatpush1.bf16.msra.mxu0 %v1790
    %1920 = vmatprep.subr.bf16.mxu0 0
    %1921 = vmatpush1.bf16.msra.mxu0 %v1792
    %1922 = vmatprep.subr.bf16.mxu0 0
    %1923 = vmatpush1.bf16.msra.mxu0 %v1794
    %1924 = vmatprep.subr.bf16.mxu0 0
    %1925 = vmatpush1.bf16.msra.mxu0 0
    %1926 = vmatprep.subr.bf16.mxu0 0
    %1927 = vmatpush1.bf16.msra.mxu0 0
    %1928 = vmatprep.subr.bf16.mxu0 0
    %1929 = vmatpush1.bf16.msra.mxu0 0
    %1930 = vmatprep.subr.bf16.mxu0 0
    %1931 = vmatpush1.bf16.msra.mxu0 0
    %1932 = vmatprep.subr.bf16.mxu0 0
    %1933 = vmatpush1.bf16.msra.mxu0 0
    %1934 = vmatprep.subr.bf16.mxu0 0
    %1935 = vmatpush1.bf16.msra.mxu0 0
    %1936 = vmatprep.subr.bf16.mxu0 0
    %1937 = vmatpush1.bf16.msra.mxu0 0
    %1938 = vmatprep.subr.bf16.mxu0 0
    %1939 = vmatpush1.bf16.msra.mxu0 0
    %1940 = vmatprep.mubr.bf16.mxu0 0
    %1941 = vmatmul.mubr.bf16.gmra.mrb[0].mxu0 %v313
    %v1942 = vpop.f32.mrb[0].mxu0
    %v1943 = vadd.f32 0.0, %v1942
    %v1944 = vpop.f32.mrb[0].mxu0
    %v1945 = vpop.f32.mrb[0].mxu0
    %v1946 = vadd.f32 0.0, %v1945
    %v1947 = vpop.f32.mrb[0].mxu0
    %1948 = vmatprep.mubr.bf16.mxu0 0
    %1949 = vmatmul.mubr.bf16.gmra.mrb[0].mxu0 %v314
    %v1950 = vpop.f32.mrb[0].mxu0
    %v1951 = vadd.f32 0.0, %v1950
    %v1952 = vpop.f32.mrb[0].mxu0
    %v1953 = vpop.f32.mrb[0].mxu0
    %v1954 = vadd.f32 0.0, %v1953
    %v1955 = vpop.f32.mrb[0].mxu0
    %1956 = vmatprep.mubr.bf16.mxu0 0
    %1957 = vmatmul.mubr.bf16.gmra.mrb[0].mxu0 %v315
    %v1958 = vpop.f32.mrb[0].mxu0
    %v1959 = vadd.f32 0.0, %v1958
    %v1960 = vpop.f32.mrb[0].mxu0
    %v1961 = vpop.f32.mrb[0].mxu0
    %v1962 = vadd.f32 0.0, %v1961
    %v1963 = vpop.f32.mrb[0].mxu0
    %1964 = vmatprep.mubr.bf16.mxu0 0
    %1965 = vmatmul.mubr.bf16.gmra.mrb[0].mxu0 %v316
    %v1966 = vpop.f32.mrb[0].mxu0
    %v1967 = vadd.f32 0.0, %v1966
    %v1968 = vpop.f32.mrb[0].mxu0
    %v1969 = vpop.f32.mrb[0].mxu0
    %v1970 = vadd.f32 0.0, %v1969
    %v1971 = vpop.f32.mrb[0].mxu0
    %1972 = vmatprep.mubr.bf16.mxu0 0
    %1973 = vmatmul.mubr.bf16.gmra.mrb[0].mxu0 %v317
    %v1974 = vpop.f32.mrb[0].mxu0
    %v1975 = vadd.f32 0.0, %v1974
    %v1976 = vpop.f32.mrb[0].mxu0
    %v1977 = vpop.f32.mrb[0].mxu0
    %v1978 = vadd.f32 0.0, %v1977
    %v1979 = vpop.f32.mrb[0].mxu0
    %1980 = vmatprep.mubr.bf16.mxu0 0
    %1981 = vmatmul.mubr.bf16.gmra.mrb[0].mxu0 %v318
    %v1982 = vpop.f32.mrb[0].mxu0
    %v1983 = vadd.f32 0.0, %v1982
    %v1984 = vpop.f32.mrb[0].mxu0
    %v1985 = vpop.f32.mrb[0].mxu0
    %v1986 = vadd.f32 0.0, %v1985
    %v1987 = vpop.f32.mrb[0].mxu0
    %1988 = vmatprep.mubr.bf16.mxu0 0
    %1989 = vmatmul.mubr.bf16.gmra.mrb[0].mxu0 %v319
    %v1990 = vpop.f32.mrb[0].mxu0
    %v1991 = vadd.f32 0.0, %v1990
    %v1992 = vpop.f32.mrb[0].mxu0
    %v1993 = vpop.f32.mrb[0].mxu0
    %v1994 = vadd.f32 0.0, %v1993
    %v1995 = vpop.f32.mrb[0].mxu0
    %1996 = vmatprep.mubr.bf16.mxu0 0
    %1997 = vmatmul.mubr.bf16.gmra.mrb[0].mxu0 %v320
    %v1998 = vpop.f32.mrb[0].mxu0
    %v1999 = vadd.f32 0.0, %v1998
    %v2000 = vpop.f32.mrb[0].mxu0
    %v2001 = vpop.f32.mrb[0].mxu0
    %v2002 = vadd.f32 0.0, %v2001
    %v2003 = vpop.f32.mrb[0].mxu0
    %2004 = vdwg.mxu0
    %v2005 = vadd.f32 %v1830, %v1943
    %v2006 = vadd.f32 %v1834, %v1946
    %v2007 = vadd.f32 %v1840, %v1951
    %v2008 = vadd.f32 %v1844, %v1954
    %v2009 = vadd.f32 %v1850, %v1959
    %v2010 = vadd.f32 %v1854, %v1962
    %v2011 = vadd.f32 %v1860, %v1967
    %v2012 = vadd.f32 %v1864, %v1970
    %v2013 = vadd.f32 %v1870, %v1975
    %v2014 = vadd.f32 %v1874, %v1978
    %v2015 = vadd.f32 %v1880, %v1983
    %v2016 = vadd.f32 %v1884, %v1986
    %v2017 = vadd.f32 %v1890, %v1991
    %v2018 = vadd.f32 %v1894, %v1994
    %v2019 = vadd.f32 %v1900, %v1999
    %v2020 = vadd.f32 %v1904, %v2002
    %vm2021 = vcmp.gt.f32.partialorder %v2005, 0.0
    %vm2022 = vcmp.gt.f32.partialorder %v2006, 0.0
    %vm2023 = vcmp.gt.f32.partialorder %v2007, 0.0
    %vm2024 = vcmp.gt.f32.partialorder %v2008, 0.0
    %vm2025 = vcmp.gt.f32.partialorder %v2009, 0.0
    %vm2026 = vcmp.gt.f32.partialorder %v2010, 0.0
    %vm2027 = vcmp.gt.f32.partialorder %v2011, 0.0
    %vm2028 = vcmp.gt.f32.partialorder %v2012, 0.0
    %vm2029 = vcmp.gt.f32.partialorder %v2013, 0.0
    %vm2030 = vcmp.gt.f32.partialorder %v2014, 0.0
    %vm2031 = vcmp.gt.f32.partialorder %v2015, 0.0
    %vm2032 = vcmp.gt.f32.partialorder %v2016, 0.0
    %vm2033 = vcmp.gt.f32.partialorder %v2017, 0.0
    %vm2034 = vcmp.gt.f32.partialorder %v2018, 0.0
    %vm2035 = vcmp.gt.f32.partialorder %v2019, 0.0
    %vm2036 = vcmp.gt.f32.partialorder %v2020, 0.0
    %v2037 = vmul.f32 %v2005, 0.2
    %v2038 = vmul.f32 %v2006, 0.2
    %v2039 = vmul.f32 %v2007, 0.2
    %v2040 = vmul.f32 %v2008, 0.2
    %v2041 = vmul.f32 %v2009, 0.2
    %v2042 = vmul.f32 %v2010, 0.2
    %v2043 = vmul.f32 %v2011, 0.2
    %v2044 = vmul.f32 %v2012, 0.2
    %v2045 = vmul.f32 %v2013, 0.2
    %v2046 = vmul.f32 %v2014, 0.2
    %v2047 = vmul.f32 %v2015, 0.2
    %v2048 = vmul.f32 %v2016, 0.2
    %v2049 = vmul.f32 %v2017, 0.2
    %v2050 = vmul.f32 %v2018, 0.2
    %v2051 = vmul.f32 %v2019, 0.2
    %v2052 = vmul.f32 %v2020, 0.2
    %v2053 = vsel %vm2021, %v2005, %v2037
    %v2054 = vsel %vm2022, %v2006, %v2038
    %v2055 = vsel %vm2023, %v2007, %v2039
    %v2056 = vsel %vm2024, %v2008, %v2040
    %v2057 = vsel %vm2025, %v2009, %v2041
    %v2058 = vsel %vm2026, %v2010, %v2042
    %v2059 = vsel %vm2027, %v2011, %v2043
    %v2060 = vsel %vm2028, %v2012, %v2044
    %v2061 = vsel %vm2029, %v2013, %v2045
    %v2062 = vsel %vm2030, %v2014, %v2046
    %v2063 = vsel %vm2031, %v2015, %v2047
    %v2064 = vsel %vm2032, %v2016, %v2048
    %v2065 = vsel %vm2033, %v2017, %v2049
    %v2066 = vsel %vm2034, %v2018, %v2050
    %v2067 = vsel %vm2035, %v2019, %v2051
    %v2068 = vsel %vm2036, %v2020, %v2052
    %v2069 = vsel %vm400, %v2053, -1e+30
    %v2070 = vsel %vm401, %v2054, -1e+30
    %v2071 = vsel %vm402, %v2055, -1e+30
    %v2072 = vsel %vm403, %v2056, -1e+30
    %v2073 = vsel %vm404, %v2057, -1e+30
    %v2074 = vsel %vm405, %v2058, -1e+30
    %v2075 = vsel %vm406, %v2059, -1e+30
    %v2076 = vsel %vm407, %v2060, -1e+30
    %v2077 = vsel %vm408, %v2061, -1e+30
    %v2078 = vsel %vm409, %v2062, -1e+30
    %v2079 = vsel %vm410, %v2063, -1e+30
    %v2080 = vsel %vm411, %v2064, -1e+30
    %v2081 = vsel %vm412, %v2065, -1e+30
    %v2082 = vsel %vm413, %v2066, -1e+30
    %v2083 = vsel %vm414, %v2067, -1e+30
    %v2084 = vsel %vm415, %v2068, -1e+30
    %v2085 = vmax.f32 %v2069, %v2073
    %v2086 = vmax.f32 %v2070, %v2074
    %v2087 = vmax.f32 %v2071, %v2075
    %v2088 = vmax.f32 %v2072, %v2076
    %v2089 = vmax.f32 %v2085, %v2077
    %v2090 = vmax.f32 %v2086, %v2078
    %v2091 = vmax.f32 %v2087, %v2079
    %v2092 = vmax.f32 %v2088, %v2080
    %v2093 = vmax.f32 %v2089, %v2081
    %v2094 = vmax.f32 %v2090, %v2082
    %v2095 = vmax.f32 %v2091, %v2083
    %v2096 = vmax.f32 %v2092, %v2084
    %v2097 = vmax.f32 %v2093, %v2094
    %v2098 = vmax.f32 %v2095, %v2096
    %v2099 = vmax.f32 %v2097, %v2098
    %2100 = vmax.xlane.f32.xlu0 %v2099
    %v2101 = vpop.xlane.xlu0 %2100
    %v2102 = vrot.slane %v2101, 4
    %v2103 = vmax.f32 %v2101, %v2102
    %v2104 = vrot.slane %v2103, 2
    %v2105 = vmax.f32 %v2103, %v2104
    %v2106 = vrot.slane %v2105, 1
    %v2107 = vmax.f32 %v2105, %v2106
    %s2108 = vtos %v2107
    %v2109 = vsel %vm400, %v2053, 1e+30
    %v2110 = vsel %vm401, %v2054, 1e+30
    %v2111 = vsel %vm402, %v2055, 1e+30
    %v2112 = vsel %vm403, %v2056, 1e+30
    %v2113 = vsel %vm404, %v2057, 1e+30
    %v2114 = vsel %vm405, %v2058, 1e+30
    %v2115 = vsel %vm406, %v2059, 1e+30
    %v2116 = vsel %vm407, %v2060, 1e+30
    %v2117 = vsel %vm408, %v2061, 1e+30
    %v2118 = vsel %vm409, %v2062, 1e+30
    %v2119 = vsel %vm410, %v2063, 1e+30
    %v2120 = vsel %vm411, %v2064, 1e+30
    %v2121 = vsel %vm412, %v2065, 1e+30
    %v2122 = vsel %vm413, %v2066, 1e+30
    %v2123 = vsel %vm414, %v2067, 1e+30
    %v2124 = vsel %vm415, %v2068, 1e+30
    %v2125 = vmin.f32 %v2109, %v2113
    %v2126 = vmin.f32 %v2110, %v2114
    %v2127 = vmin.f32 %v2111, %v2115
    %v2128 = vmin.f32 %v2112, %v2116
    %v2129 = vmin.f32 %v2125, %v2117
    %v2130 = vmin.f32 %v2126, %v2118
    %v2131 = vmin.f32 %v2127, %v2119
    %v2132 = vmin.f32 %v2128, %v2120
    %v2133 = vmin.f32 %v2129, %v2121
    %v2134 = vmin.f32 %v2130, %v2122
    %v2135 = vmin.f32 %v2131, %v2123
    %v2136 = vmin.f32 %v2132, %v2124
    %v2137 = vmin.f32 %v2133, %v2134
    %v2138 = vmin.f32 %v2135, %v2136
    %v2139 = vmin.f32 %v2137, %v2138
    %2140 = vmin.xlane.f32.xlu0 %v2139
    %v2141 = vpop.xlane.xlu0 %2140
    %v2142 = vrot.slane %v2141, 4
    %v2143 = vmin.f32 %v2141, %v2142
    %v2144 = vrot.slane %v2143, 2
    %v2145 = vmin.f32 %v2143, %v2144
    %v2146 = vrot.slane %v2145, 1
    %v2147 = vmin.f32 %v2145, %v2146
    %s2148 = vtos %v2147
    %s2149 = ssub.f32 %s2108, %s2148
    %s2150 = smax.f32 %s2149, 1e-12
    %v2151 = vstv %s2108
    %v2152 = vsub.f32 %v2069, %v2151
    %v2153 = vsub.f32 %v2070, %v2151
    %v2154 = vsub.f32 %v2071, %v2151
    %v2155 = vsub.f32 %v2072, %v2151
    %v2156 = vsub.f32 %v2073, %v2151
    %v2157 = vsub.f32 %v2074, %v2151
    %v2158 = vsub.f32 %v2075, %v2151
    %v2159 = vsub.f32 %v2076, %v2151
    %v2160 = vsub.f32 %v2077, %v2151
    %v2161 = vsub.f32 %v2078, %v2151
    %v2162 = vsub.f32 %v2079, %v2151
    %v2163 = vsub.f32 %v2080, %v2151
    %v2164 = vsub.f32 %v2081, %v2151
    %v2165 = vsub.f32 %v2082, %v2151
    %v2166 = vsub.f32 %v2083, %v2151
    %v2167 = vsub.f32 %v2084, %v2151
    %v2168 = vmul.f32 %v2152, 3.0
    %v2169 = vmul.f32 %v2153, 3.0
    %v2170 = vmul.f32 %v2154, 3.0
    %v2171 = vmul.f32 %v2155, 3.0
    %v2172 = vmul.f32 %v2156, 3.0
    %v2173 = vmul.f32 %v2157, 3.0
    %v2174 = vmul.f32 %v2158, 3.0
    %v2175 = vmul.f32 %v2159, 3.0
    %v2176 = vmul.f32 %v2160, 3.0
    %v2177 = vmul.f32 %v2161, 3.0
    %v2178 = vmul.f32 %v2162, 3.0
    %v2179 = vmul.f32 %v2163, 3.0
    %v2180 = vmul.f32 %v2164, 3.0
    %v2181 = vmul.f32 %v2165, 3.0
    %v2182 = vmul.f32 %v2166, 3.0
    %v2183 = vmul.f32 %v2167, 3.0
    %v2184 = vstv %s2150
    %v2185 = vrcp.pop %v2184
    %v2186 = vmul.f32 %v2168, %v2185
    %v2187 = vmul.f32 %v2169, %v2185
    %v2188 = vmul.f32 %v2170, %v2185
    %v2189 = vmul.f32 %v2171, %v2185
    %v2190 = vmul.f32 %v2172, %v2185
    %v2191 = vmul.f32 %v2173, %v2185
    %v2192 = vmul.f32 %v2174, %v2185
    %v2193 = vmul.f32 %v2175, %v2185
    %v2194 = vmul.f32 %v2176, %v2185
    %v2195 = vmul.f32 %v2177, %v2185
    %v2196 = vmul.f32 %v2178, %v2185
    %v2197 = vmul.f32 %v2179, %v2185
    %v2198 = vmul.f32 %v2180, %v2185
    %v2199 = vmul.f32 %v2181, %v2185
    %v2200 = vmul.f32 %v2182, %v2185
    %v2201 = vmul.f32 %v2183, %v2185
    %v2202 = vmul.f32 %v2186, 1.442695
    %v2203 = vpow.pop %v2202
    %v2204 = vmul.f32 %v2187, 1.442695
    %v2205 = vpow.pop %v2204
    %v2206 = vmul.f32 %v2188, 1.442695
    %v2207 = vpow.pop %v2206
    %v2208 = vmul.f32 %v2189, 1.442695
    %v2209 = vpow.pop %v2208
    %v2210 = vmul.f32 %v2190, 1.442695
    %v2211 = vpow.pop %v2210
    %v2212 = vmul.f32 %v2191, 1.442695
    %v2213 = vpow.pop %v2212
    %v2214 = vmul.f32 %v2192, 1.442695
    %v2215 = vpow.pop %v2214
    %v2216 = vmul.f32 %v2193, 1.442695
    %v2217 = vpow.pop %v2216
    %v2218 = vmul.f32 %v2194, 1.442695
    %v2219 = vpow.pop %v2218
    %v2220 = vmul.f32 %v2195, 1.442695
    %v2221 = vpow.pop %v2220
    %v2222 = vmul.f32 %v2196, 1.442695
    %v2223 = vpow.pop %v2222
    %v2224 = vmul.f32 %v2197, 1.442695
    %v2225 = vpow.pop %v2224
    %v2226 = vmul.f32 %v2198, 1.442695
    %v2227 = vpow.pop %v2226
    %v2228 = vmul.f32 %v2199, 1.442695
    %v2229 = vpow.pop %v2228
    %v2230 = vmul.f32 %v2200, 1.442695
    %v2231 = vpow.pop %v2230
    %v2232 = vmul.f32 %v2201, 1.442695
    %v2233 = vpow.pop %v2232
    %v2234 = vmul.f32 %v2203, %v1832
    %v2235 = vmul.f32 %v2205, %v1836
    %v2236 = vmul.f32 %v2207, %v1842
    %v2237 = vmul.f32 %v2209, %v1846
    %v2238 = vmul.f32 %v2211, %v1852
    %v2239 = vmul.f32 %v2213, %v1856
    %v2240 = vmul.f32 %v2215, %v1862
    %v2241 = vmul.f32 %v2217, %v1866
    %v2242 = vmul.f32 %v2219, %v1872
    %v2243 = vmul.f32 %v2221, %v1876
    %v2244 = vmul.f32 %v2223, %v1882
    %v2245 = vmul.f32 %v2225, %v1886
    %v2246 = vmul.f32 %v2227, %v1892
    %v2247 = vmul.f32 %v2229, %v1896
    %v2248 = vmul.f32 %v2231, %v1902
    %v2249 = vmul.f32 %v2233, %v1906
    %v2250 = vpack.c.bf16 %v2205, %v2203
    %v2251 = vpack.c.bf16 %v2235, %v2234
    %v2252 = vpack.c.bf16 %v2209, %v2207
    %v2253 = vpack.c.bf16 %v2237, %v2236
    %v2254 = vpack.c.bf16 %v2213, %v2211
    %v2255 = vpack.c.bf16 %v2239, %v2238
    %v2256 = vpack.c.bf16 %v2217, %v2215
    %v2257 = vpack.c.bf16 %v2241, %v2240
    %v2258 = vpack.c.bf16 %v2221, %v2219
    %v2259 = vpack.c.bf16 %v2243, %v2242
    %v2260 = vpack.c.bf16 %v2225, %v2223
    %v2261 = vpack.c.bf16 %v2245, %v2244
    %v2262 = vpack.c.bf16 %v2229, %v2227
    %v2263 = vpack.c.bf16 %v2247, %v2246
    %v2264 = vpack.c.bf16 %v2233, %v2231
    %v2265 = vpack.c.bf16 %v2249, %v2248
    %2266 = vmatprep.subr.bf16.mxu0 %v2251
    %2267 = vmatpush1.bf16.msra.mxu0 %v2250
    %2268 = vmatprep.subr.bf16.mxu0 %v2253
    %2269 = vmatpush1.bf16.msra.mxu0 %v2252
    %2270 = vmatprep.subr.bf16.mxu0 %v2255
    %2271 = vmatpush1.bf16.msra.mxu0 %v2254
    %2272 = vmatprep.subr.bf16.mxu0 %v2257
    %2273 = vmatpush1.bf16.msra.mxu0 %v2256
    %2274 = vmatprep.subr.bf16.mxu0 %v2259
    %2275 = vmatpush1.bf16.msra.mxu0 %v2258
    %2276 = vmatprep.subr.bf16.mxu0 %v2261
    %2277 = vmatpush1.bf16.msra.mxu0 %v2260
    %2278 = vmatprep.subr.bf16.mxu0 %v2263
    %2279 = vmatpush1.bf16.msra.mxu0 %v2262
    %2280 = vmatprep.subr.bf16.mxu0 %v2265
    %2281 = vmatpush1.bf16.msra.mxu0 %v2264
    %2282 = vmatprep.subr.bf16.mxu0 0
    %2283 = vmatpush1.bf16.msra.mxu0 0
    %2284 = vmatprep.subr.bf16.mxu0 0
    %2285 = vmatpush1.bf16.msra.mxu0 0
    %2286 = vmatprep.subr.bf16.mxu0 0
    %2287 = vmatpush1.bf16.msra.mxu0 0
    %2288 = vmatprep.subr.bf16.mxu0 0
    %2289 = vmatpush1.bf16.msra.mxu0 0
    %2290 = vmatprep.subr.bf16.mxu0 0
    %2291 = vmatpush1.bf16.msra.mxu0 0
    %2292 = vmatprep.subr.bf16.mxu0 0
    %2293 = vmatpush1.bf16.msra.mxu0 0
    %2294 = vmatprep.subr.bf16.mxu0 0
    %2295 = vmatpush1.bf16.msra.mxu0 0
    %2296 = vmatprep.subr.bf16.mxu0 0
    %2297 = vmatpush1.bf16.msra.mxu0 0
    %2298 = vmatprep.mubr.bf16.mxu0 0
    %2299 = vmatmul.mubr.bf16.gmra.mrb[0].mxu0 %v375
    %v2300 = vpop.f32.mrb[0].mxu0
    %v2301 = vadd.f32 0.0, %v2300
    %v2302 = vpop.f32.mrb[0].mxu0
    %v2303 = vadd.f32 0.0, %v2302
    %v2304 = vpop.f32.mrb[0].mxu0
    %v2305 = vadd.f32 0.0, %v2304
    %v2306 = vpop.f32.mrb[0].mxu0
    %v2307 = vadd.f32 0.0, %v2306
    %2308 = vmatprep.mubr.bf16.mxu0 0
    %2309 = vmatmul.mubr.bf16.gmra.mrb[0].mxu0 %v376
    %v2310 = vpop.f32.mrb[0].mxu0
    %v2311 = vadd.f32 0.0, %v2310
    %v2312 = vpop.f32.mrb[0].mxu0
    %v2313 = vadd.f32 0.0, %v2312
    %v2314 = vpop.f32.mrb[0].mxu0
    %v2315 = vadd.f32 0.0, %v2314
    %v2316 = vpop.f32.mrb[0].mxu0
    %v2317 = vadd.f32 0.0, %v2316
    %2318 = vmatprep.mubr.bf16.mxu0 0
    %2319 = vmatmul.mubr.bf16.gmra.mrb[0].mxu0 %v377
    %v2320 = vpop.f32.mrb[0].mxu0
    %v2321 = vadd.f32 0.0, %v2320
    %v2322 = vpop.f32.mrb[0].mxu0
    %v2323 = vadd.f32 0.0, %v2322
    %v2324 = vpop.f32.mrb[0].mxu0
    %v2325 = vadd.f32 0.0, %v2324
    %v2326 = vpop.f32.mrb[0].mxu0
    %v2327 = vadd.f32 0.0, %v2326
    %2328 = vmatprep.mubr.bf16.mxu0 0
    %2329 = vmatmul.mubr.bf16.gmra.mrb[0].mxu0 %v378
    %v2330 = vpop.f32.mrb[0].mxu0
    %v2331 = vadd.f32 0.0, %v2330
    %v2332 = vpop.f32.mrb[0].mxu0
    %v2333 = vadd.f32 0.0, %v2332
    %v2334 = vpop.f32.mrb[0].mxu0
    %v2335 = vadd.f32 0.0, %v2334
    %v2336 = vpop.f32.mrb[0].mxu0
    %v2337 = vadd.f32 0.0, %v2336
    %2338 = vmatprep.mubr.bf16.mxu0 0
    %2339 = vmatmul.mubr.bf16.gmra.mrb[0].mxu0 %v379
    %v2340 = vpop.f32.mrb[0].mxu0
    %v2341 = vadd.f32 0.0, %v2340
    %v2342 = vpop.f32.mrb[0].mxu0
    %v2343 = vadd.f32 0.0, %v2342
    %v2344 = vpop.f32.mrb[0].mxu0
    %v2345 = vadd.f32 0.0, %v2344
    %v2346 = vpop.f32.mrb[0].mxu0
    %v2347 = vadd.f32 0.0, %v2346
    %2348 = vmatprep.mubr.bf16.mxu0 0
    %2349 = vmatmul.mubr.bf16.gmra.mrb[0].mxu0 %v380
    %v2350 = vpop.f32.mrb[0].mxu0
    %v2351 = vadd.f32 0.0, %v2350
    %v2352 = vpop.f32.mrb[0].mxu0
    %v2353 = vadd.f32 0.0, %v2352
    %v2354 = vpop.f32.mrb[0].mxu0
    %v2355 = vadd.f32 0.0, %v2354
    %v2356 = vpop.f32.mrb[0].mxu0
    %v2357 = vadd.f32 0.0, %v2356
    %2358 = vmatprep.mubr.bf16.mxu0 0
    %2359 = vmatmul.mubr.bf16.gmra.mrb[0].mxu0 %v381
    %v2360 = vpop.f32.mrb[0].mxu0
    %v2361 = vadd.f32 0.0, %v2360
    %v2362 = vpop.f32.mrb[0].mxu0
    %v2363 = vadd.f32 0.0, %v2362
    %v2364 = vpop.f32.mrb[0].mxu0
    %v2365 = vadd.f32 0.0, %v2364
    %v2366 = vpop.f32.mrb[0].mxu0
    %v2367 = vadd.f32 0.0, %v2366
    %2368 = vmatprep.mubr.bf16.mxu0 0
    %2369 = vmatmul.mubr.bf16.gmra.mrb[0].mxu0 %v382
    %v2370 = vpop.f32.mrb[0].mxu0
    %v2371 = vadd.f32 0.0, %v2370
    %v2372 = vpop.f32.mrb[0].mxu0
    %v2373 = vadd.f32 0.0, %v2372
    %v2374 = vpop.f32.mrb[0].mxu0
    %v2375 = vadd.f32 0.0, %v2374
    %v2376 = vpop.f32.mrb[0].mxu0
    %v2377 = vadd.f32 0.0, %v2376
    %2378 = vdwg.mxu0
    %v2379 = vadd.f32 %v2301, 1e-16
    %v2380 = vadd.f32 %v2305, 1e-16
    %v2381 = vadd.f32 %v2311, 1e-16
    %v2382 = vadd.f32 %v2315, 1e-16
    %v2383 = vadd.f32 %v2321, 1e-16
    %v2384 = vadd.f32 %v2325, 1e-16
    %v2385 = vadd.f32 %v2331, 1e-16
    %v2386 = vadd.f32 %v2335, 1e-16
    %v2387 = vadd.f32 %v2341, 1e-16
    %v2388 = vadd.f32 %v2345, 1e-16
    %v2389 = vadd.f32 %v2351, 1e-16
    %v2390 = vadd.f32 %v2355, 1e-16
    %v2391 = vadd.f32 %v2361, 1e-16
    %v2392 = vadd.f32 %v2365, 1e-16
    %v2393 = vadd.f32 %v2371, 1e-16
    %v2394 = vadd.f32 %v2375, 1e-16
    %v2395 = vrcp.pop %v2379
    %v2396 = vrcp.pop %v2380
    %v2397 = vrcp.pop %v2381
    %v2398 = vrcp.pop %v2382
    %v2399 = vrcp.pop %v2383
    %v2400 = vrcp.pop %v2384
    %v2401 = vrcp.pop %v2385
    %v2402 = vrcp.pop %v2386
    %v2403 = vrcp.pop %v2387
    %v2404 = vrcp.pop %v2388
    %v2405 = vrcp.pop %v2389
    %v2406 = vrcp.pop %v2390
    %v2407 = vrcp.pop %v2391
    %v2408 = vrcp.pop %v2392
    %v2409 = vrcp.pop %v2393
    %v2410 = vrcp.pop %v2394
    %v2411 = vmul.f32 %v2303, %v2395
    %v2412 = vmul.f32 %v2307, %v2396
    %v2413 = vmul.f32 %v2313, %v2397
    %v2414 = vmul.f32 %v2317, %v2398
    %v2415 = vmul.f32 %v2323, %v2399
    %v2416 = vmul.f32 %v2327, %v2400
    %v2417 = vmul.f32 %v2333, %v2401
    %v2418 = vmul.f32 %v2337, %v2402
    %v2419 = vmul.f32 %v2343, %v2403
    %v2420 = vmul.f32 %v2347, %v2404
    %v2421 = vmul.f32 %v2353, %v2405
    %v2422 = vmul.f32 %v2357, %v2406
    %v2423 = vmul.f32 %v2363, %v2407
    %v2424 = vmul.f32 %v2367, %v2408
    %v2425 = vmul.f32 %v2373, %v2409
    %v2426 = vmul.f32 %v2377, %v2410
    %2427 = vst [vmem:[#allocation12] sm:$0xff] %v2411
    %2428 = vst [vmem:[#allocation12 + $0x8] sm:$0xff] %v2412
    %2429 = vst [vmem:[#allocation12 + $0x10] sm:$0xff] %v2413
    %2430 = vst [vmem:[#allocation12 + $0x18] sm:$0xff] %v2414
    %2431 = vst [vmem:[#allocation12 + $0x20] sm:$0xff] %v2415
    %2432 = vst [vmem:[#allocation12 + $0x28] sm:$0xff] %v2416
    %2433 = vst [vmem:[#allocation12 + $0x30] sm:$0xff] %v2417
    %2434 = vst [vmem:[#allocation12 + $0x38] sm:$0xff] %v2418
    %2435 = vst [vmem:[#allocation12 + $0x40] sm:$0xff] %v2419
    %2436 = vst [vmem:[#allocation12 + $0x48] sm:$0xff] %v2420
    %2437 = vst [vmem:[#allocation12 + $0x50] sm:$0xff] %v2421
    %2438 = vst [vmem:[#allocation12 + $0x58] sm:$0xff] %v2422
    %2439 = vst [vmem:[#allocation12 + $0x60] sm:$0xff] %v2423
    %2440 = vst [vmem:[#allocation12 + $0x68] sm:$0xff] %v2424
    %2441 = vst [vmem:[#allocation12 + $0x70] sm:$0xff] %v2425
    %2442 = vst [vmem:[#allocation12 + $0x78] sm:$0xff] %v2426
    %v2443 = vpack.c.bf16 %v2412, %v2411
    %v2444 = vpack.c.bf16 %v2414, %v2413
    %v2445 = vpack.c.bf16 %v2416, %v2415
    %v2446 = vpack.c.bf16 %v2418, %v2417
    %v2447 = vpack.c.bf16 %v2420, %v2419
    %v2448 = vpack.c.bf16 %v2422, %v2421
    %v2449 = vpack.c.bf16 %v2424, %v2423
    %v2450 = vpack.c.bf16 %v2426, %v2425
    %v2451 = vld [vmem:[#allocation10] sm:$0xff]
    %v2452 = vld [vmem:[#allocation10 + $0x8] sm:$0xff]
    %v2453 = vld [vmem:[#allocation10 + $0x10] sm:$0xff]
    %v2454 = vld [vmem:[#allocation10 + $0x18] sm:$0xff]
    %v2455 = vld [vmem:[#allocation10 + $0x20] sm:$0xff]
    %v2456 = vld [vmem:[#allocation10 + $0x28] sm:$0xff]
    %v2457 = vld [vmem:[#allocation10 + $0x30] sm:$0xff]
    %v2458 = vld [vmem:[#allocation10 + $0x38] sm:$0xff]
    %v2459 = vld [vmem:[#allocation10 + $0x40] sm:$0xff]
    %v2460 = vld [vmem:[#allocation10 + $0x48] sm:$0xff]
    %v2461 = vld [vmem:[#allocation10 + $0x50] sm:$0xff]
    %v2462 = vld [vmem:[#allocation10 + $0x58] sm:$0xff]
    %v2463 = vld [vmem:[#allocation10 + $0x60] sm:$0xff]
    %v2464 = vld [vmem:[#allocation10 + $0x68] sm:$0xff]
    %v2465 = vld [vmem:[#allocation10 + $0x70] sm:$0xff]
    %v2466 = vld [vmem:[#allocation10 + $0x78] sm:$0xff]
    %v2467 = vpack.c.bf16 %v2452, %v2451
    %v2468 = vpack.c.bf16 %v2454, %v2453
    %v2469 = vpack.c.bf16 %v2456, %v2455
    %v2470 = vpack.c.bf16 %v2458, %v2457
    %v2471 = vpack.c.bf16 %v2460, %v2459
    %v2472 = vpack.c.bf16 %v2462, %v2461
    %v2473 = vpack.c.bf16 %v2464, %v2463
    %v2474 = vpack.c.bf16 %v2466, %v2465
    %v2475 = vld [vmem:[%s7] sm:$0x1]
    %v2477 = vlaneseq
    %v2478 = vshrl.u32 %v2477, 7
    %v2479 = vsub.s32 0, %v2478
    %v2480 = vrot.slane %v2475, %v2479
    %2482 = vmatprep.subr.bf16.mxu0 0
    %2483 = vmatpush1.bf16.msra.mxu0 %v2467
    %2484 = vmatprep.subr.bf16.mxu0 0
    %2485 = vmatpush1.bf16.msra.mxu0 %v2468
    %2486 = vmatprep.subr.bf16.mxu0 0
    %2487 = vmatpush1.bf16.msra.mxu0 %v2469
    %2488 = vmatprep.subr.bf16.mxu0 0
    %2489 = vmatpush1.bf16.msra.mxu0 %v2470
    %2490 = vmatprep.subr.bf16.mxu0 0
    %2491 = vmatpush1.bf16.msra.mxu0 %v2471
    %2492 = vmatprep.subr.bf16.mxu0 0
    %2493 = vmatpush1.bf16.msra.mxu0 %v2472
    %2494 = vmatprep.subr.bf16.mxu0 0
    %2495 = vmatpush1.bf16.msra.mxu0 %v2473
    %2496 = vmatprep.subr.bf16.mxu0 0
    %2497 = vmatpush1.bf16.msra.mxu0 %v2474
    %2498 = vmatprep.subr.bf16.mxu0 0
    %2499 = vmatpush1.bf16.msra.mxu0 0
    %2500 = vmatprep.subr.bf16.mxu0 0
    %2501 = vmatpush1.bf16.msra.mxu0 0
    %2502 = vmatprep.subr.bf16.mxu0 0
    %2503 = vmatpush1.bf16.msra.mxu0 0
    %2504 = vmatprep.subr.bf16.mxu0 0
    %2505 = vmatpush1.bf16.msra.mxu0 0
    %2506 = vmatprep.subr.bf16.mxu0 0
    %2507 = vmatpush1.bf16.msra.mxu0 0
    %2508 = vmatprep.subr.bf16.mxu0 0
    %2509 = vmatpush1.bf16.msra.mxu0 0
    %2510 = vmatprep.subr.bf16.mxu0 0
    %2511 = vmatpush1.bf16.msra.mxu0 0
    %2512 = vmatprep.subr.bf16.mxu0 0
    %2513 = vmatpush1.bf16.msra.mxu0 0
    %2514 = vmatprep.mubr.bf16.mxu0 0
    %2515 = vmatmul.mubr.bf16.gmra.mrb[0].mxu0 %v2443
    %v2516 = vpop.f32.mrb[0].mxu0
    %v2517 = vadd.f32 %v2480, %v2516
    %v2518 = vpop.f32.mrb[0].mxu0
    %v2519 = vpop.f32.mrb[0].mxu0
    %v2520 = vadd.f32 %v2480, %v2519
    %v2521 = vpop.f32.mrb[0].mxu0
    %2522 = vmatprep.mubr.bf16.mxu0 0
    %2523 = vmatmul.mubr.bf16.gmra.mrb[0].mxu0 %v2444
    %v2524 = vpop.f32.mrb[0].mxu0
    %v2525 = vadd.f32 %v2480, %v2524
    %v2526 = vpop.f32.mrb[0].mxu0
    %v2527 = vpop.f32.mrb[0].mxu0
    %v2528 = vadd.f32 %v2480, %v2527
    %v2529 = vpop.f32.mrb[0].mxu0
    %2530 = vmatprep.mubr.bf16.mxu0 0
    %2531 = vmatmul.mubr.bf16.gmra.mrb[0].mxu0 %v2445
    %v2532 = vpop.f32.mrb[0].mxu0
    %v2533 = vadd.f32 %v2480, %v2532
    %v2534 = vpop.f32.mrb[0].mxu0
    %v2535 = vpop.f32.mrb[0].mxu0
    %v2536 = vadd.f32 %v2480, %v2535
    %v2537 = vpop.f32.mrb[0].mxu0
    %2538 = vmatprep.mubr.bf16.mxu0 0
    %2539 = vmatmul.mubr.bf16.gmra.mrb[0].mxu0 %v2446
    %v2540 = vpop.f32.mrb[0].mxu0
    %v2541 = vadd.f32 %v2480, %v2540
    %v2542 = vpop.f32.mrb[0].mxu0
    %v2543 = vpop.f32.mrb[0].mxu0
    %v2544 = vadd.f32 %v2480, %v2543
    %v2545 = vpop.f32.mrb[0].mxu0
    %2546 = vmatprep.mubr.bf16.mxu0 0
    %2547 = vmatmul.mubr.bf16.gmra.mrb[0].mxu0 %v2447
    %v2548 = vpop.f32.mrb[0].mxu0
    %v2549 = vadd.f32 %v2480, %v2548
    %v2550 = vpop.f32.mrb[0].mxu0
    %v2551 = vpop.f32.mrb[0].mxu0
    %v2552 = vadd.f32 %v2480, %v2551
    %v2553 = vpop.f32.mrb[0].mxu0
    %2554 = vmatprep.mubr.bf16.mxu0 0
    %2555 = vmatmul.mubr.bf16.gmra.mrb[0].mxu0 %v2448
    %v2556 = vpop.f32.mrb[0].mxu0
    %v2557 = vadd.f32 %v2480, %v2556
    %v2558 = vpop.f32.mrb[0].mxu0
    %v2559 = vpop.f32.mrb[0].mxu0
    %v2560 = vadd.f32 %v2480, %v2559
    %v2561 = vpop.f32.mrb[0].mxu0
    %2562 = vmatprep.mubr.bf16.mxu0 0
    %2563 = vmatmul.mubr.bf16.gmra.mrb[0].mxu0 %v2449
    %v2564 = vpop.f32.mrb[0].mxu0
    %v2565 = vadd.f32 %v2480, %v2564
    %v2566 = vpop.f32.mrb[0].mxu0
    %v2567 = vpop.f32.mrb[0].mxu0
    %v2568 = vadd.f32 %v2480, %v2567
    %v2569 = vpop.f32.mrb[0].mxu0
    %2570 = vmatprep.mubr.bf16.mxu0 0
    %2571 = vmatmul.mubr.bf16.gmra.mrb[0].mxu0 %v2450
    %v2572 = vpop.f32.mrb[0].mxu0
    %v2573 = vadd.f32 %v2480, %v2572
    %v2574 = vpop.f32.mrb[0].mxu0
    %v2575 = vpop.f32.mrb[0].mxu0
    %v2576 = vadd.f32 %v2480, %v2575
    %v2577 = vpop.f32.mrb[0].mxu0
    %2578 = vdwg.mxu0
    %2579 = vst [vmem:[#allocation11] sm:$0xff] %v2517
    %2580 = vst [vmem:[#allocation11 + $0x8] sm:$0xff] %v2520
    %2581 = vst [vmem:[#allocation11 + $0x10] sm:$0xff] %v2525
    %2582 = vst [vmem:[#allocation11 + $0x18] sm:$0xff] %v2528
    %2583 = vst [vmem:[#allocation11 + $0x20] sm:$0xff] %v2533
    %2584 = vst [vmem:[#allocation11 + $0x28] sm:$0xff] %v2536
    %2585 = vst [vmem:[#allocation11 + $0x30] sm:$0xff] %v2541
    %2586 = vst [vmem:[#allocation11 + $0x38] sm:$0xff] %v2544
    %2587 = vst [vmem:[#allocation11 + $0x40] sm:$0xff] %v2549
    %2588 = vst [vmem:[#allocation11 + $0x48] sm:$0xff] %v2552
    %2589 = vst [vmem:[#allocation11 + $0x50] sm:$0xff] %v2557
    %2590 = vst [vmem:[#allocation11 + $0x58] sm:$0xff] %v2560
    %2591 = vst [vmem:[#allocation11 + $0x60] sm:$0xff] %v2565
    %2592 = vst [vmem:[#allocation11 + $0x68] sm:$0xff] %v2568
    %2593 = vst [vmem:[#allocation11 + $0x70] sm:$0xff] %v2573
    %2594 = vst [vmem:[#allocation11 + $0x78] sm:$0xff] %v2576
    // Predicated region
    $region66: #{tpu_custom_call.1} parent=1 // pred_check
      _
    $region67: #{tpu_custom_call.1} parent=1 // pred_check_branch
      %2596 = sbr.rel (0) target = $region69
    $region68: #{tpu_custom_call.1} parent=1 // pred_region
      %s2598 = ssub.s32 2048, 2048
      %2599 = vsyncadd [#allocation4], %s2598
      %s2600 = sshll.u32 [#allocation11], 4
      %s2601 = int_to_ptr.vmem [resolvable:$true] %s2600
      %2606 = dma.vmem_to_hbm [thread:$0]  %s2601, 2048, %s11, [#allocation4], 128, 128, 8
    $region69: #{tpu_custom_call.1} parent=1 // pred_fallthru
      _
    // Predicated region
    $region70: #{tpu_custom_call.1} parent=1 // pred_check
      _
    $region71: #{tpu_custom_call.1} parent=1 // pred_check_branch
      %2608 = sbr.rel (0) target = $region73
    $region72: #{tpu_custom_call.1} parent=1 // pred_region
      %s2610 = ssub.s32 2048, 2048
      %2611 = vsyncadd [#allocation13], %s2610
      %s2612 = sshll.u32 [#allocation12], 4
      %s2613 = int_to_ptr.vmem [resolvable:$true] %s2612
      %2618 = dma.vmem_to_hbm [thread:$0]  %s2613, 2048, %s12, [#allocation13], 128, 128, 8
    $region73: #{tpu_custom_call.1} parent=1 // pred_fallthru
      _
    // Predicated region
    $region74: #{tpu_custom_call.1} parent=1 // pred_check
      _
    $region75: #{tpu_custom_call.1} parent=1 // pred_check_branch
      %2620 = sbr.rel (0) target = $region77
    $region76: #{tpu_custom_call.1} parent=1 // pred_region
      %2621 = dma.done [#allocation4], 2048
    $region77: #{tpu_custom_call.1} parent=1 // pred_fallthru
      _
    // Predicated region
    $region78: #{tpu_custom_call.1} parent=1 // pred_check
      _
    $region79: #{tpu_custom_call.1} parent=1 // pred_check_branch
      %2623 = sbr.rel (0) target = $region81
    $region80: #{tpu_custom_call.1} parent=1 // pred_region
      %2624 = dma.done [#allocation13], 2048
    $region81: #{tpu_custom_call.1} parent=1 // pred_fallthru
      _
    %2625 = vsyncpa [#allocation3], 1
    %2626 = vsyncpa [#allocation6], 1
    %2627 = vsyncpa [#allocation9], 1
    %2628 = vsyncpa [#allocation4], 1
    %2629 = vsyncpa [#allocation13], 1

</llo_original>
